<compile_context>
chip_gen: v5e
topology: v5e:2x2
jax: 0.10.0
libtpu: 0.0.40
codegen_flags: <defaults>
</compile_context>

<pallas_src>
import functools
from math import pi as PI

import jax
import jax.numpy as jnp
from jax import lax
from jax.experimental import pallas as pl
from jax.experimental.pallas import tpu as pltpu

LOG2 = 0.6931471805599453


def _round_up(x, m):
    return ((x + m - 1) // m) * m


def _softplus(x):
    # Plain softplus; the ShiftedSoftplus -log(2) shift is folded into the
    # *following* Linear layer's bias at init time.  Numerically stable form.
    return jnp.maximum(x, 0.0) + jnp.log1p(jnp.exp(-jnp.abs(x)))


def _full_spec(shape):
    nd = len(shape)
    return pl.BlockSpec(shape, lambda i, _nd=nd: (0,) * _nd)


def _aligned(x, m):
    # pl.multiple_of hint only makes sense on traced values.
    return x if isinstance(x, int) else pl.multiple_of(x, m)


def _pick_blk_src(n, max_edge_rows):
    """Source nodes per edge block: divides n, multiple of 8, BS*n <= cap."""
    if n * n <= max_edge_rows:
        return n
    best = 8
    for bs in range(8, n + 1, 8):
        if n % bs == 0 and bs * n <= max_edge_rows:
            best = bs
    return best


# --------------------------------------------------------------------------
# Fused kernel: rbf -> num_layers x (update_e + conv + update_v) -> update_u
# --------------------------------------------------------------------------
def schnet_kernel(dist_ref, cmask_ref, onehot_ref, offset_ref, v0_ref,
                  lin_w_ref, m1w_ref, m1b_ref, m2w_ref, m2b_ref,
                  u1w_ref, u1b_ref, u2w_ref, u2b_ref,
                  r1w_ref, r1b_ref, r2w_ref, r2b_ref,
                  u_ref,
                  rbf_scr, vlin_scr, agg_scr,
                  *, coeff, n_nodes, num_layers, blk_src):
    f32, bf16 = jnp.float32, jnp.bfloat16
    N = n_nodes
    BS = blk_src
    ROWS = BS * N                      # edge rows per block (multiple of 8)
    n_blocks = N // BS
    Fp = agg_scr.shape[1]

    def for_each_block(body):
        if n_blocks == 1:
            body(0)
        else:
            def wrapped(b, carry):
                body(b)
                return carry
            lax.fori_loop(0, n_blocks, wrapped, 0, unroll=2)

    off = offset_ref[...]              # (1, Gp); pad slots hold 1e6 -> rbf == 0

    # ---- Gaussian RBF expansion, computed once (blockwise) into bf16 scratch.
    def rbf_block(b):
        r0 = _aligned(b * ROWS, 8)
        d = dist_ref[pl.ds(r0, ROWS), :]                       # (ROWS, 1)
        diff = d - off                                          # (ROWS, Gp)
        rbf_scr[pl.ds(r0, ROWS), :] = jnp.exp(coeff * (diff * diff)).astype(bf16)
    for_each_block(rbf_block)

    v = v0_ref[...]                    # (N, Hp) f32 node features

    for l in range(num_layers):        # static unroll; each iter MXU/EUP heavy
        # Per-layer weights loaded once and reused by every edge block.
        w_lin = lin_w_ref[l]
        w_m1, b_m1 = m1w_ref[l], m1b_ref[l]
        w_m2, b_m2 = m2w_ref[l], m2b_ref[l]

        # update_e.lin on nodes (tiny; latency-bound by design).
        vlin_scr[...] = jnp.dot(v.astype(bf16), w_lin, preferred_element_type=f32)
        agg_scr[...] = jnp.zeros_like(agg_scr)

        # -- edge work tiled over source-node blocks: filter MLP + cutoff mask
        #    + continuous-filter conv + scatter-sum, accumulated in VMEM.
        def edge_block(b):
            r0 = _aligned(b * ROWS, 8)
            j0 = _aligned(b * BS, 8)
            rbf_blk = rbf_scr[pl.ds(r0, ROWS), :]               # (ROWS, Gp) bf16
            h = _softplus(jnp.dot(rbf_blk, w_m1,
                                  preferred_element_type=f32) + b_m1)
            W = jnp.dot(h.astype(bf16), w_m2,
                        preferred_element_type=f32) + b_m2      # (ROWS, Fp)
            cm = cmask_ref[pl.ds(r0, ROWS), :]                  # (ROWS, 1)
            vl = vlin_scr[pl.ds(j0, BS), :]                     # (BS, Fp)
            # fused: mask * filter * source-feature, reduce over block sources.
            contrib = jnp.sum(
                (W * cm).reshape(BS, N, Fp) * vl[:, None, :], axis=0)  # (N, Fp)
            agg_scr[...] += contrib
        for_each_block(edge_block)

        # -- update_v: node MLP + residual (softplus shift folded into u2b).
        h2 = _softplus(jnp.dot(agg_scr[...].astype(bf16), u1w_ref[l],
                               preferred_element_type=f32) + u1b_ref[l])
        v = v + jnp.dot(h2.astype(bf16), u2w_ref[l],
                        preferred_element_type=f32) + u2b_ref[l]

    # ---- update_u: per-node MLP, then per-graph sum via one-hot matmul
    #      (OUT padded to 128 lanes -> unmasked lane-dense store).
    hr = _softplus(jnp.dot(v.astype(bf16), r1w_ref[...],
                           preferred_element_type=f32) + r1b_ref[...])
    o = jnp.dot(hr.astype(bf16), r2w_ref[...],
                preferred_element_type=f32) + r2b_ref[...]
    u_ref[...] = jnp.dot(onehot_ref[...], o.astype(bf16),
                         preferred_element_type=f32)


# --------------------------------------------------------------------------
# Parameters (synthetic init matching the torch module's shapes, zero-padded
# to lane-dense 128-wide layouts, stacked over layers, ssp shift pre-folded).
# --------------------------------------------------------------------------
def xavier(key, fan_in, fan_out):
    bound = (6.0 / (fan_in + fan_out)) ** 0.5
    return jax.random.uniform(key, (fan_in, fan_out), jnp.float32, -bound, bound)


def _pad2(w, rows, cols):
    out = jnp.zeros((rows, cols), w.dtype)
    return out.at[:w.shape[0], :w.shape[1]].set(w)


def _fold_shift(bias_padded, w_padded):
    # softplus(x) - log2 followed by Linear(W, b) == softplus(x) followed by
    # Linear(W, b - log2*colsum(W)).  Use the bf16-rounded weights (the matmul
    # operand) for the column sums; padded rows are zero so pad lanes stay 0.
    w_rounded = w_padded.astype(jnp.bfloat16).astype(jnp.float32)
    return bias_padded - LOG2 * jnp.sum(w_rounded, axis=0, keepdims=True)


def init_params(key, *, H, F, G, OUT, num_layers, cutoff):
    Hp, Fp, Gp = _round_up(H, 128), _round_up(F, 128), _round_up(G, 128)
    H2 = H // 2
    H2p, OUTp = _round_up(H2, 128), _round_up(OUT, 128)

    keys = iter(jax.random.split(key, 6 * num_layers + 3))
    bf16 = jnp.bfloat16
    p = {}

    emb_w = jax.random.normal(next(keys), (100, H), jnp.float32)
    p["embedding"] = _pad2(emb_w, 100, Hp)

    offset = jnp.linspace(0.0, cutoff, G).astype(jnp.float32)
    p["coeff"] = float(-0.5 / float(offset[1] - offset[0]) ** 2)
    # Pad unused gaussian slots with a huge offset -> exp(coeff*diff^2) == 0.
    p["offset"] = jnp.full((1, Gp), 1e6, jnp.float32).at[0, :G].set(offset)

    lin_w, m1w, m1b, m2w, m2b, u1w, u1b, u2w, u2b = ([] for _ in range(9))
    for _ in range(num_layers):
        lin_w.append(_pad2(xavier(next(keys), H, F), Hp, Fp))   # update_e.lin (no bias)
        m1w.append(_pad2(xavier(next(keys), G, F), Gp, Fp))
        m1b.append(jnp.zeros((1, Fp), jnp.float32))
        w2 = _pad2(xavier(next(keys), F, F), Fp, Fp)
        b2 = _pad2(jax.random.uniform(next(keys), (1, F), jnp.float32,
                                      -1.0 / F ** 0.5, 1.0 / F ** 0.5), 1, Fp)
        m2w.append(w2)
        m2b.append(_fold_shift(b2, w2))                          # bake -log2 shift
        wu1 = _pad2(xavier(next(keys), F, H), Fp, Hp)
        u1w.append(wu1)
        u1b.append(jnp.zeros((1, Hp), jnp.float32))
        wu2 = _pad2(xavier(next(keys), H, H), Hp, Hp)
        u2w.append(wu2)
        u2b.append(_fold_shift(jnp.zeros((1, Hp), jnp.float32), wu2))

    # Stacked (L, ...) MXU operands in bf16; biases stay f32.
    p["lin_w"] = jnp.stack(lin_w).astype(bf16)
    p["m1w"] = jnp.stack(m1w).astype(bf16)
    p["m1b"] = jnp.stack(m1b)
    p["m2w"] = jnp.stack(m2w).astype(bf16)
    p["m2b"] = jnp.stack(m2b)
    p["u1w"] = jnp.stack(u1w).astype(bf16)
    p["u1b"] = jnp.stack(u1b)
    p["u2w"] = jnp.stack(u2w).astype(bf16)
    p["u2b"] = jnp.stack(u2b)

    wr1 = _pad2(xavier(next(keys), H, H2), Hp, H2p)
    wr2 = _pad2(xavier(next(keys), H2, OUT), H2p, OUTp)
    p["r1w"] = wr1.astype(bf16)
    p["r1b"] = jnp.zeros((1, H2p), jnp.float32)
    p["r2w"] = wr2.astype(bf16)
    p["r2b"] = _fold_shift(jnp.zeros((1, OUTp), jnp.float32), wr2)

    p["num_layers"] = num_layers
    p["out_channels"] = OUT
    return p


# --------------------------------------------------------------------------
# Forward pass (JAX glue: dense masked radius graph, embedding gather, then
# one fused Pallas kernel for everything else).
# --------------------------------------------------------------------------
def schnet_forward(z, pos, batch, params, *, cutoff, n_graphs,
                   max_edge_rows=2048, vmem_limit_mb=48):
    # max_edge_rows ~2048 for v5e/v6e; use ~1024 on v7x (64 MiB VMEM).
    N = z.shape[0]
    Np = _round_up(max(N, 8), 8)
    if Np != N:  # pad with isolated dummy atoms (unique batch ids -> no edges)
        pad = Np - N
        pos = jnp.concatenate([pos, jnp.zeros((pad, 3), pos.dtype)], axis=0)
        z = jnp.concatenate([z, jnp.zeros((pad,), z.dtype)], axis=0)
        batch = jnp.concatenate(
            [batch, n_graphs + jnp.arange(pad, dtype=batch.dtype)], axis=0)
    N = Np

    # Dense masked radius graph (same-graph, non-self, within cutoff); summing
    # masked dense edges equals the sparse scatter-sum.  sqrt(0) diagonal OK
    # forward-only.
    diff = pos[:, None, :] - pos[None, :, :]                     # (N, N, 3)
    dist = jnp.sqrt(jnp.sum(diff * diff, axis=-1))               # (N, N)
    adj = (batch[:, None] == batch[None, :]) & (~jnp.eye(N, dtype=bool)) \
        & (dist <= cutoff)
    C = 0.5 * (jnp.cos(dist * (PI / cutoff)) + 1.0)              # cosine cutoff
    cmask = (C * adj.astype(jnp.float32)).reshape(N * N, 1)
    dist_flat = dist.reshape(N * N, 1)

    v0 = params["embedding"][z]                                  # init_v gather (glue)

    Bp = _round_up(max(n_graphs, 1), 8)
    onehot = (jnp.arange(Bp)[:, None] == batch[None, :]).astype(jnp.bfloat16)

    blk_src = _pick_blk_src(N, max_edge_rows)

    args = (dist_flat, cmask, onehot, params["offset"], v0,
            params["lin_w"], params["m1w"], params["m1b"], params["m2w"], params["m2b"],
            params["u1w"], params["u1b"], params["u2w"], params["u2b"],
            params["r1w"], params["r1b"], params["r2w"], params["r2b"])

    Gp = params["offset"].shape[1]
    Fp = params["m2w"].shape[2]
    OUTp = params["r2w"].shape[1]

    u_full = pl.pallas_call(
        functools.partial(schnet_kernel, coeff=params["coeff"], n_nodes=N,
                          num_layers=params["num_layers"], blk_src=blk_src),
        out_shape=jax.ShapeDtypeStruct((Bp, OUTp), jnp.float32),
        grid=(1,),
        in_specs=[_full_spec(a.shape) for a in args],
        out_specs=_full_spec((Bp, OUTp)),
        scratch_shapes=[
            pltpu.VMEM((N * N, Gp), jnp.bfloat16),   # layer-invariant RBF
            pltpu.VMEM((N, Fp), jnp.float32),        # vlin (per layer)
            pltpu.VMEM((N, Fp), jnp.float32),        # conv accumulator
        ],
        compiler_params=pltpu.CompilerParams(
            dimension_semantics=("arbitrary",),
            vmem_limit_bytes=vmem_limit_mb * 1024 * 1024),
    )(*args)

    return u_full[:n_graphs, :params["out_channels"]]


if __name__ == "__main__":
    # Small, deterministic example: 2 molecules x 8 atoms each.
    N, B = 16, 2
    H, F, G, OUT = 128, 128, 50, 1          # module defaults for channel sizes
    NUM_LAYERS = 3
    CUTOFF = 10.0

    key = jax.random.PRNGKey(0)
    k_z, k_pos, k_params = jax.random.split(key, 3)

    z = jax.random.randint(k_z, (N,), 1, 10)                     # atomic numbers
    pos = jax.random.normal(k_pos, (N, 3), jnp.float32) * 2.0    # 3D coordinates
    batch = jnp.repeat(jnp.arange(B, dtype=jnp.int32), N // B)   # graph assignment

    params = init_params(k_params, H=H, F=F, G=G, OUT=OUT,
                         num_layers=NUM_LAYERS, cutoff=CUTOFF)

    u = schnet_forward(z, pos, batch, params, cutoff=CUTOFF, n_graphs=B)
    u = jax.block_until_ready(u)
    assert u.shape == (B, OUT) and u.dtype == jnp.float32
    assert bool(jnp.all(jnp.isfinite(u)))
    print("KERNEL_OK")
</pallas_src>

<mosaic_0001>
module attributes {stable_mosaic.version = 11 : i64} {
  func.func @schnet_kernel(%arg0: i32, %arg1: memref<256x1xf32, #tpu.memory_space<vmem>>, %arg2: memref<256x1xf32, #tpu.memory_space<vmem>>, %arg3: memref<8x16xbf16, #tpu.memory_space<vmem>>, %arg4: memref<1x128xf32, #tpu.memory_space<vmem>>, %arg5: memref<16x128xf32, #tpu.memory_space<vmem>>, %arg6: memref<3x128x128xbf16, #tpu.memory_space<vmem>>, %arg7: memref<3x128x128xbf16, #tpu.memory_space<vmem>>, %arg8: memref<3x1x128xf32, #tpu.memory_space<vmem>>, %arg9: memref<3x128x128xbf16, #tpu.memory_space<vmem>>, %arg10: memref<3x1x128xf32, #tpu.memory_space<vmem>>, %arg11: memref<3x128x128xbf16, #tpu.memory_space<vmem>>, %arg12: memref<3x1x128xf32, #tpu.memory_space<vmem>>, %arg13: memref<3x128x128xbf16, #tpu.memory_space<vmem>>, %arg14: memref<3x1x128xf32, #tpu.memory_space<vmem>>, %arg15: memref<128x128xbf16, #tpu.memory_space<vmem>>, %arg16: memref<1x128xf32, #tpu.memory_space<vmem>>, %arg17: memref<128x128xbf16, #tpu.memory_space<vmem>>, %arg18: memref<1x128xf32, #tpu.memory_space<vmem>>, %arg19: memref<8x128xf32, #tpu.memory_space<vmem>>, %arg20: memref<256x128xbf16, #tpu.memory_space<vmem>>, %arg21: memref<16x128xf32, #tpu.memory_space<vmem>>, %arg22: memref<16x128xf32, #tpu.memory_space<vmem>>) attributes {dimension_semantics = [#tpu.dimension_semantics<arbitrary>], iteration_bounds = array<i64: 1>, scalar_prefetch = 0 : i64, scratch_operands = 3 : i64, tpu.core_type = #tpu.core_type<tc>, window_params = [{pipeline_mode = #tpu.pipeline_mode<synchronous>, transform_indices = @transform_0, window_bounds = array<i64: 256, 1>}, {pipeline_mode = #tpu.pipeline_mode<synchronous>, transform_indices = @transform_1, window_bounds = array<i64: 256, 1>}, {pipeline_mode = #tpu.pipeline_mode<synchronous>, transform_indices = @transform_2, window_bounds = array<i64: 8, 16>}, {pipeline_mode = #tpu.pipeline_mode<synchronous>, transform_indices = @transform_3, window_bounds = array<i64: 1, 128>}, {pipeline_mode = #tpu.pipeline_mode<synchronous>, transform_indices = @transform_4, window_bounds = array<i64: 16, 128>}, {pipeline_mode = #tpu.pipeline_mode<synchronous>, transform_indices = @transform_5, window_bounds = array<i64: 3, 128, 128>}, {pipeline_mode = #tpu.pipeline_mode<synchronous>, transform_indices = @transform_6, window_bounds = array<i64: 3, 128, 128>}, {pipeline_mode = #tpu.pipeline_mode<synchronous>, transform_indices = @transform_7, window_bounds = array<i64: 3, 1, 128>}, {pipeline_mode = #tpu.pipeline_mode<synchronous>, transform_indices = @transform_8, window_bounds = array<i64: 3, 128, 128>}, {pipeline_mode = #tpu.pipeline_mode<synchronous>, transform_indices = @transform_9, window_bounds = array<i64: 3, 1, 128>}, {pipeline_mode = #tpu.pipeline_mode<synchronous>, transform_indices = @transform_10, window_bounds = array<i64: 3, 128, 128>}, {pipeline_mode = #tpu.pipeline_mode<synchronous>, transform_indices = @transform_11, window_bounds = array<i64: 3, 1, 128>}, {pipeline_mode = #tpu.pipeline_mode<synchronous>, transform_indices = @transform_12, window_bounds = array<i64: 3, 128, 128>}, {pipeline_mode = #tpu.pipeline_mode<synchronous>, transform_indices = @transform_13, window_bounds = array<i64: 3, 1, 128>}, {pipeline_mode = #tpu.pipeline_mode<synchronous>, transform_indices = @transform_14, window_bounds = array<i64: 128, 128>}, {pipeline_mode = #tpu.pipeline_mode<synchronous>, transform_indices = @transform_15, window_bounds = array<i64: 1, 128>}, {pipeline_mode = #tpu.pipeline_mode<synchronous>, transform_indices = @transform_16, window_bounds = array<i64: 128, 128>}, {pipeline_mode = #tpu.pipeline_mode<synchronous>, transform_indices = @transform_17, window_bounds = array<i64: 1, 128>}, {pipeline_mode = #tpu.pipeline_mode<synchronous>, transform_indices = @transform_18, window_bounds = array<i64: 8, 128>}]} {
    %c0 = arith.constant 0 : index
    %c0_0 = arith.constant 0 : index
    %0 = vector.load %arg4[%c0, %c0_0] : memref<1x128xf32, #tpu.memory_space<vmem>>, vector<1x128xf32>
    %c0_1 = arith.constant 0 : index
    %c0_2 = arith.constant 0 : index
    %1 = vector.load %arg1[%c0_1, %c0_2] : memref<256x1xf32, #tpu.memory_space<vmem>>, vector<256x1xf32>
    %2 = vector.broadcast %1 : vector<256x1xf32> to vector<256x128xf32>
    %3 = vector.broadcast %0 : vector<1x128xf32> to vector<256x128xf32>
    %4 = arith.subf %2, %3 : vector<256x128xf32>
    %5 = arith.mulf %4, %4 : vector<256x128xf32>
    %cst = arith.constant -12.0050011 : f32
    %6 = vector.broadcast %cst : f32 to vector<256x128xf32>
    %7 = arith.mulf %6, %5 : vector<256x128xf32>
    %8 = math.exp %7 : vector<256x128xf32>
    %9 = arith.truncf %8 : vector<256x128xf32> to vector<256x128xbf16>
    %c0_3 = arith.constant 0 : index
    %c0_4 = arith.constant 0 : index
    %10 = vector.load %arg20[%c0_3, %c0_4] : memref<256x128xbf16, #tpu.memory_space<vmem>>, vector<256x128xbf16>
    tpu.vector_store %arg20[%c0_3, %c0_4], %9 {strides = array<i32>} : memref<256x128xbf16, #tpu.memory_space<vmem>>, vector<256x128xbf16>,
    %c0_5 = arith.constant 0 : index
    %c0_6 = arith.constant 0 : index
    %11 = vector.load %arg5[%c0_5, %c0_6] : memref<16x128xf32, #tpu.memory_space<vmem>>, vector<16x128xf32>
    %c0_7 = arith.constant 0 : index
    %c0_8 = arith.constant 0 : index
    %c0_9 = arith.constant 0 : index
    %12 = vector.load %arg6[%c0_7, %c0_8, %c0_9] : memref<3x128x128xbf16, #tpu.memory_space<vmem>>, vector<1x128x128xbf16>
    %13 = vector.shape_cast %12 : vector<1x128x128xbf16> to vector<128x128xbf16>
    %c0_10 = arith.constant 0 : index
    %c0_11 = arith.constant 0 : index
    %c0_12 = arith.constant 0 : index
    %14 = vector.load %arg7[%c0_10, %c0_11, %c0_12] : memref<3x128x128xbf16, #tpu.memory_space<vmem>>, vector<1x128x128xbf16>
    %15 = vector.shape_cast %14 : vector<1x128x128xbf16> to vector<128x128xbf16>
    %c0_13 = arith.constant 0 : index
    %c0_14 = arith.constant 0 : index
    %c0_15 = arith.constant 0 : index
    %16 = vector.load %arg8[%c0_13, %c0_14, %c0_15] : memref<3x1x128xf32, #tpu.memory_space<vmem>>, vector<1x1x128xf32>
    %17 = vector.shape_cast %16 : vector<1x1x128xf32> to vector<1x128xf32>
    %c0_16 = arith.constant 0 : index
    %c0_17 = arith.constant 0 : index
    %c0_18 = arith.constant 0 : index
    %18 = vector.load %arg9[%c0_16, %c0_17, %c0_18] : memref<3x128x128xbf16, #tpu.memory_space<vmem>>, vector<1x128x128xbf16>
    %19 = vector.shape_cast %18 : vector<1x128x128xbf16> to vector<128x128xbf16>
    %c0_19 = arith.constant 0 : index
    %c0_20 = arith.constant 0 : index
    %c0_21 = arith.constant 0 : index
    %20 = vector.load %arg10[%c0_19, %c0_20, %c0_21] : memref<3x1x128xf32, #tpu.memory_space<vmem>>, vector<1x1x128xf32>
    %21 = vector.shape_cast %20 : vector<1x1x128xf32> to vector<1x128xf32>
    %22 = arith.truncf %11 : vector<16x128xf32> to vector<16x128xbf16>
    %cst_22 = arith.constant dense<0.000000e+00> : vector<16x128xf32>
    %23 = tpu.matmul %22, %13, %cst_22 {dimension_numbers = #tpu.dot_dimension_numbers<[1], [0], [0], [1], [0, 0, 1, 1], [], []>} : vector<16x128xbf16>, vector<128x128xbf16>, vector<16x128xf32> -> vector<16x128xf32>
    %c0_23 = arith.constant 0 : index
    %c0_24 = arith.constant 0 : index
    %24 = vector.load %arg21[%c0_23, %c0_24] : memref<16x128xf32, #tpu.memory_space<vmem>>, vector<16x128xf32>
    tpu.vector_store %arg21[%c0_23, %c0_24], %23 {strides = array<i32>} : memref<16x128xf32, #tpu.memory_space<vmem>>, vector<16x128xf32>,
    %cst_25 = arith.constant 0.000000e+00 : f32
    %25 = vector.broadcast %cst_25 : f32 to vector<16x128xf32>
    %c0_26 = arith.constant 0 : index
    %c0_27 = arith.constant 0 : index
    %26 = vector.load %arg22[%c0_26, %c0_27] : memref<16x128xf32, #tpu.memory_space<vmem>>, vector<16x128xf32>
    tpu.vector_store %arg22[%c0_26, %c0_27], %25 {strides = array<i32>} : memref<16x128xf32, #tpu.memory_space<vmem>>, vector<16x128xf32>,
    %c0_28 = arith.constant 0 : index
    %c0_29 = arith.constant 0 : index
    %27 = vector.load %arg20[%c0_28, %c0_29] : memref<256x128xbf16, #tpu.memory_space<vmem>>, vector<256x128xbf16>
    %cst_30 = arith.constant dense<0.000000e+00> : vector<256x128xf32>
    %28 = tpu.matmul %27, %15, %cst_30 {dimension_numbers = #tpu.dot_dimension_numbers<[1], [0], [0], [1], [0, 0, 1, 1], [], []>} : vector<256x128xbf16>, vector<128x128xbf16>, vector<256x128xf32> -> vector<256x128xf32>
    %29 = vector.broadcast %17 : vector<1x128xf32> to vector<256x128xf32>
    %30 = arith.addf %28, %29 : vector<256x128xf32>
    %cst_31 = arith.constant 0.000000e+00 : f32
    %31 = vector.broadcast %cst_31 : f32 to vector<256x128xf32>
    %32 = arith.maximumf %30, %31 : vector<256x128xf32>
    %33 = math.absf %30 : vector<256x128xf32>
    %cst_32 = arith.constant 0.000000e+00 : f32
    %34 = vector.broadcast %cst_32 : f32 to vector<256x128xf32>
    %35 = arith.subf %34, %33 : vector<256x128xf32>
    %36 = math.exp %35 : vector<256x128xf32>
    %37 = math.log1p %36 : vector<256x128xf32>
    %38 = arith.addf %32, %37 : vector<256x128xf32>
    %39 = arith.truncf %38 : vector<256x128xf32> to vector<256x128xbf16>
    %cst_33 = arith.constant dense<0.000000e+00> : vector<256x128xf32>
    %40 = tpu.matmul %39, %19, %cst_33 {dimension_numbers = #tpu.dot_dimension_numbers<[1], [0], [0], [1], [0, 0, 1, 1], [], []>} : vector<256x128xbf16>, vector<128x128xbf16>, vector<256x128xf32> -> vector<256x128xf32>
    %41 = vector.broadcast %21 : vector<1x128xf32> to vector<256x128xf32>
    %42 = arith.addf %40, %41 : vector<256x128xf32>
    %c0_34 = arith.constant 0 : index
    %c0_35 = arith.constant 0 : index
    %43 = vector.load %arg2[%c0_34, %c0_35] : memref<256x1xf32, #tpu.memory_space<vmem>>, vector<256x1xf32>
    %c0_36 = arith.constant 0 : index
    %c0_37 = arith.constant 0 : index
    %44 = vector.load %arg21[%c0_36, %c0_37] : memref<16x128xf32, #tpu.memory_space<vmem>>, vector<16x128xf32>
    %45 = vector.broadcast %43 : vector<256x1xf32> to vector<256x128xf32>
    %46 = arith.mulf %42, %45 : vector<256x128xf32>
    %47 = vector.shape_cast %46 : vector<256x128xf32> to vector<16x16x128xf32>
    %48 = vector.shape_cast %44 : vector<16x128xf32> to vector<16x1x128xf32>
    %49 = vector.broadcast %48 : vector<16x1x128xf32> to vector<16x16x128xf32>
    %50 = arith.mulf %47, %49 : vector<16x16x128xf32>
    %cst_38 = arith.constant dense<0.000000e+00> : vector<16x128xf32>
    %51 = vector.multi_reduction <add>, %50, %cst_38 [0] : vector<16x16x128xf32> to vector<16x128xf32>
    %c0_39 = arith.constant 0 : index
    %c0_40 = arith.constant 0 : index
    %52 = vector.load %arg22[%c0_39, %c0_40] : memref<16x128xf32, #tpu.memory_space<vmem>>, vector<16x128xf32>
    %53 = arith.addf %52, %51 : vector<16x128xf32>
    %c0_41 = arith.constant 0 : index
    %c0_42 = arith.constant 0 : index
    %54 = vector.load %arg22[%c0_41, %c0_42] : memref<16x128xf32, #tpu.memory_space<vmem>>, vector<16x128xf32>
    tpu.vector_store %arg22[%c0_41, %c0_42], %53 {strides = array<i32>} : memref<16x128xf32, #tpu.memory_space<vmem>>, vector<16x128xf32>,
    %c0_43 = arith.constant 0 : index
    %c0_44 = arith.constant 0 : index
    %55 = vector.load %arg22[%c0_43, %c0_44] : memref<16x128xf32, #tpu.memory_space<vmem>>, vector<16x128xf32>
    %56 = arith.truncf %55 : vector<16x128xf32> to vector<16x128xbf16>
    %c0_45 = arith.constant 0 : index
    %c0_46 = arith.constant 0 : index
    %c0_47 = arith.constant 0 : index
    %57 = vector.load %arg11[%c0_45, %c0_46, %c0_47] : memref<3x128x128xbf16, #tpu.memory_space<vmem>>, vector<1x128x128xbf16>
    %58 = vector.shape_cast %57 : vector<1x128x128xbf16> to vector<128x128xbf16>
    %cst_48 = arith.constant dense<0.000000e+00> : vector<16x128xf32>
    %59 = tpu.matmul %56, %58, %cst_48 {dimension_numbers = #tpu.dot_dimension_numbers<[1], [0], [0], [1], [0, 0, 1, 1], [], []>} : vector<16x128xbf16>, vector<128x128xbf16>, vector<16x128xf32> -> vector<16x128xf32>
    %c0_49 = arith.constant 0 : index
    %c0_50 = arith.constant 0 : index
    %c0_51 = arith.constant 0 : index
    %60 = vector.load %arg12[%c0_49, %c0_50, %c0_51] : memref<3x1x128xf32, #tpu.memory_space<vmem>>, vector<1x1x128xf32>
    %61 = vector.shape_cast %60 : vector<1x1x128xf32> to vector<1x128xf32>
    %62 = vector.broadcast %61 : vector<1x128xf32> to vector<16x128xf32>
    %63 = arith.addf %59, %62 : vector<16x128xf32>
    %cst_52 = arith.constant 0.000000e+00 : f32
    %64 = vector.broadcast %cst_52 : f32 to vector<16x128xf32>
    %65 = arith.maximumf %63, %64 : vector<16x128xf32>
    %66 = math.absf %63 : vector<16x128xf32>
    %cst_53 = arith.constant 0.000000e+00 : f32
    %67 = vector.broadcast %cst_53 : f32 to vector<16x128xf32>
    %68 = arith.subf %67, %66 : vector<16x128xf32>
    %69 = math.exp %68 : vector<16x128xf32>
    %70 = math.log1p %69 : vector<16x128xf32>
    %71 = arith.addf %65, %70 : vector<16x128xf32>
    %72 = arith.truncf %71 : vector<16x128xf32> to vector<16x128xbf16>
    %c0_54 = arith.constant 0 : index
    %c0_55 = arith.constant 0 : index
    %c0_56 = arith.constant 0 : index
    %73 = vector.load %arg13[%c0_54, %c0_55, %c0_56] : memref<3x128x128xbf16, #tpu.memory_space<vmem>>, vector<1x128x128xbf16>
    %74 = vector.shape_cast %73 : vector<1x128x128xbf16> to vector<128x128xbf16>
    %cst_57 = arith.constant dense<0.000000e+00> : vector<16x128xf32>
    %75 = tpu.matmul %72, %74, %cst_57 {dimension_numbers = #tpu.dot_dimension_numbers<[1], [0], [0], [1], [0, 0, 1, 1], [], []>} : vector<16x128xbf16>, vector<128x128xbf16>, vector<16x128xf32> -> vector<16x128xf32>
    %76 = arith.addf %11, %75 : vector<16x128xf32>
    %c0_58 = arith.constant 0 : index
    %c0_59 = arith.constant 0 : index
    %c0_60 = arith.constant 0 : index
    %77 = vector.load %arg14[%c0_58, %c0_59, %c0_60] : memref<3x1x128xf32, #tpu.memory_space<vmem>>, vector<1x1x128xf32>
    %78 = vector.shape_cast %77 : vector<1x1x128xf32> to vector<1x128xf32>
    %79 = vector.broadcast %78 : vector<1x128xf32> to vector<16x128xf32>
    %80 = arith.addf %76, %79 : vector<16x128xf32>
    %c1 = arith.constant 1 : index
    %c0_61 = arith.constant 0 : index
    %c0_62 = arith.constant 0 : index
    %81 = vector.load %arg6[%c1, %c0_61, %c0_62] : memref<3x128x128xbf16, #tpu.memory_space<vmem>>, vector<1x128x128xbf16>
    %82 = vector.shape_cast %81 : vector<1x128x128xbf16> to vector<128x128xbf16>
    %c1_63 = arith.constant 1 : index
    %c0_64 = arith.constant 0 : index
    %c0_65 = arith.constant 0 : index
    %83 = vector.load %arg7[%c1_63, %c0_64, %c0_65] : memref<3x128x128xbf16, #tpu.memory_space<vmem>>, vector<1x128x128xbf16>
    %84 = vector.shape_cast %83 : vector<1x128x128xbf16> to vector<128x128xbf16>
    %c1_66 = arith.constant 1 : index
    %c0_67 = arith.constant 0 : index
    %c0_68 = arith.constant 0 : index
    %85 = vector.load %arg8[%c1_66, %c0_67, %c0_68] : memref<3x1x128xf32, #tpu.memory_space<vmem>>, vector<1x1x128xf32>
    %86 = vector.shape_cast %85 : vector<1x1x128xf32> to vector<1x128xf32>
    %c1_69 = arith.constant 1 : index
    %c0_70 = arith.constant 0 : index
    %c0_71 = arith.constant 0 : index
    %87 = vector.load %arg9[%c1_69, %c0_70, %c0_71] : memref<3x128x128xbf16, #tpu.memory_space<vmem>>, vector<1x128x128xbf16>
    %88 = vector.shape_cast %87 : vector<1x128x128xbf16> to vector<128x128xbf16>
    %c1_72 = arith.constant 1 : index
    %c0_73 = arith.constant 0 : index
    %c0_74 = arith.constant 0 : index
    %89 = vector.load %arg10[%c1_72, %c0_73, %c0_74] : memref<3x1x128xf32, #tpu.memory_space<vmem>>, vector<1x1x128xf32>
    %90 = vector.shape_cast %89 : vector<1x1x128xf32> to vector<1x128xf32>
    %91 = arith.truncf %80 : vector<16x128xf32> to vector<16x128xbf16>
    %cst_75 = arith.constant dense<0.000000e+00> : vector<16x128xf32>
    %92 = tpu.matmul %91, %82, %cst_75 {dimension_numbers = #tpu.dot_dimension_numbers<[1], [0], [0], [1], [0, 0, 1, 1], [], []>} : vector<16x128xbf16>, vector<128x128xbf16>, vector<16x128xf32> -> vector<16x128xf32>
    %c0_76 = arith.constant 0 : index
    %c0_77 = arith.constant 0 : index
    %93 = vector.load %arg21[%c0_76, %c0_77] : memref<16x128xf32, #tpu.memory_space<vmem>>, vector<16x128xf32>
    tpu.vector_store %arg21[%c0_76, %c0_77], %92 {strides = array<i32>} : memref<16x128xf32, #tpu.memory_space<vmem>>, vector<16x128xf32>,
    %cst_78 = arith.constant 0.000000e+00 : f32
    %94 = vector.broadcast %cst_78 : f32 to vector<16x128xf32>
    %c0_79 = arith.constant 0 : index
    %c0_80 = arith.constant 0 : index
    %95 = vector.load %arg22[%c0_79, %c0_80] : memref<16x128xf32, #tpu.memory_space<vmem>>, vector<16x128xf32>
    tpu.vector_store %arg22[%c0_79, %c0_80], %94 {strides = array<i32>} : memref<16x128xf32, #tpu.memory_space<vmem>>, vector<16x128xf32>,
    %c0_81 = arith.constant 0 : index
    %c0_82 = arith.constant 0 : index
    %96 = vector.load %arg20[%c0_81, %c0_82] : memref<256x128xbf16, #tpu.memory_space<vmem>>, vector<256x128xbf16>
    %cst_83 = arith.constant dense<0.000000e+00> : vector<256x128xf32>
    %97 = tpu.matmul %96, %84, %cst_83 {dimension_numbers = #tpu.dot_dimension_numbers<[1], [0], [0], [1], [0, 0, 1, 1], [], []>} : vector<256x128xbf16>, vector<128x128xbf16>, vector<256x128xf32> -> vector<256x128xf32>
    %98 = vector.broadcast %86 : vector<1x128xf32> to vector<256x128xf32>
    %99 = arith.addf %97, %98 : vector<256x128xf32>
    %cst_84 = arith.constant 0.000000e+00 : f32
    %100 = vector.broadcast %cst_84 : f32 to vector<256x128xf32>
    %101 = arith.maximumf %99, %100 : vector<256x128xf32>
    %102 = math.absf %99 : vector<256x128xf32>
    %cst_85 = arith.constant 0.000000e+00 : f32
    %103 = vector.broadcast %cst_85 : f32 to vector<256x128xf32>
    %104 = arith.subf %103, %102 : vector<256x128xf32>
    %105 = math.exp %104 : vector<256x128xf32>
    %106 = math.log1p %105 : vector<256x128xf32>
    %107 = arith.addf %101, %106 : vector<256x128xf32>
    %108 = arith.truncf %107 : vector<256x128xf32> to vector<256x128xbf16>
    %cst_86 = arith.constant dense<0.000000e+00> : vector<256x128xf32>
    %109 = tpu.matmul %108, %88, %cst_86 {dimension_numbers = #tpu.dot_dimension_numbers<[1], [0], [0], [1], [0, 0, 1, 1], [], []>} : vector<256x128xbf16>, vector<128x128xbf16>, vector<256x128xf32> -> vector<256x128xf32>
    %110 = vector.broadcast %90 : vector<1x128xf32> to vector<256x128xf32>
    %111 = arith.addf %109, %110 : vector<256x128xf32>
    %c0_87 = arith.constant 0 : index
    %c0_88 = arith.constant 0 : index
    %112 = vector.load %arg2[%c0_87, %c0_88] : memref<256x1xf32, #tpu.memory_space<vmem>>, vector<256x1xf32>
    %c0_89 = arith.constant 0 : index
    %c0_90 = arith.constant 0 : index
    %113 = vector.load %arg21[%c0_89, %c0_90] : memref<16x128xf32, #tpu.memory_space<vmem>>, vector<16x128xf32>
    %114 = vector.broadcast %112 : vector<256x1xf32> to vector<256x128xf32>
    %115 = arith.mulf %111, %114 : vector<256x128xf32>
    %116 = vector.shape_cast %115 : vector<256x128xf32> to vector<16x16x128xf32>
    %117 = vector.shape_cast %113 : vector<16x128xf32> to vector<16x1x128xf32>
    %118 = vector.broadcast %117 : vector<16x1x128xf32> to vector<16x16x128xf32>
    %119 = arith.mulf %116, %118 : vector<16x16x128xf32>
    %cst_91 = arith.constant dense<0.000000e+00> : vector<16x128xf32>
    %120 = vector.multi_reduction <add>, %119, %cst_91 [0] : vector<16x16x128xf32> to vector<16x128xf32>
    %c0_92 = arith.constant 0 : index
    %c0_93 = arith.constant 0 : index
    %121 = vector.load %arg22[%c0_92, %c0_93] : memref<16x128xf32, #tpu.memory_space<vmem>>, vector<16x128xf32>
    %122 = arith.addf %121, %120 : vector<16x128xf32>
    %c0_94 = arith.constant 0 : index
    %c0_95 = arith.constant 0 : index
    %123 = vector.load %arg22[%c0_94, %c0_95] : memref<16x128xf32, #tpu.memory_space<vmem>>, vector<16x128xf32>
    tpu.vector_store %arg22[%c0_94, %c0_95], %122 {strides = array<i32>} : memref<16x128xf32, #tpu.memory_space<vmem>>, vector<16x128xf32>,
    %c0_96 = arith.constant 0 : index
    %c0_97 = arith.constant 0 : index
    %124 = vector.load %arg22[%c0_96, %c0_97] : memref<16x128xf32, #tpu.memory_space<vmem>>, vector<16x128xf32>
    %125 = arith.truncf %124 : vector<16x128xf32> to vector<16x128xbf16>
    %c1_98 = arith.constant 1 : index
    %c0_99 = arith.constant 0 : index
    %c0_100 = arith.constant 0 : index
    %126 = vector.load %arg11[%c1_98, %c0_99, %c0_100] : memref<3x128x128xbf16, #tpu.memory_space<vmem>>, vector<1x128x128xbf16>
    %127 = vector.shape_cast %126 : vector<1x128x128xbf16> to vector<128x128xbf16>
    %cst_101 = arith.constant dense<0.000000e+00> : vector<16x128xf32>
    %128 = tpu.matmul %125, %127, %cst_101 {dimension_numbers = #tpu.dot_dimension_numbers<[1], [0], [0], [1], [0, 0, 1, 1], [], []>} : vector<16x128xbf16>, vector<128x128xbf16>, vector<16x128xf32> -> vector<16x128xf32>
    %c1_102 = arith.constant 1 : index
    %c0_103 = arith.constant 0 : index
    %c0_104 = arith.constant 0 : index
    %129 = vector.load %arg12[%c1_102, %c0_103, %c0_104] : memref<3x1x128xf32, #tpu.memory_space<vmem>>, vector<1x1x128xf32>
    %130 = vector.shape_cast %129 : vector<1x1x128xf32> to vector<1x128xf32>
    %131 = vector.broadcast %130 : vector<1x128xf32> to vector<16x128xf32>
    %132 = arith.addf %128, %131 : vector<16x128xf32>
    %cst_105 = arith.constant 0.000000e+00 : f32
    %133 = vector.broadcast %cst_105 : f32 to vector<16x128xf32>
    %134 = arith.maximumf %132, %133 : vector<16x128xf32>
    %135 = math.absf %132 : vector<16x128xf32>
    %cst_106 = arith.constant 0.000000e+00 : f32
    %136 = vector.broadcast %cst_106 : f32 to vector<16x128xf32>
    %137 = arith.subf %136, %135 : vector<16x128xf32>
    %138 = math.exp %137 : vector<16x128xf32>
    %139 = math.log1p %138 : vector<16x128xf32>
    %140 = arith.addf %134, %139 : vector<16x128xf32>
    %141 = arith.truncf %140 : vector<16x128xf32> to vector<16x128xbf16>
    %c1_107 = arith.constant 1 : index
    %c0_108 = arith.constant 0 : index
    %c0_109 = arith.constant 0 : index
    %142 = vector.load %arg13[%c1_107, %c0_108, %c0_109] : memref<3x128x128xbf16, #tpu.memory_space<vmem>>, vector<1x128x128xbf16>
    %143 = vector.shape_cast %142 : vector<1x128x128xbf16> to vector<128x128xbf16>
    %cst_110 = arith.constant dense<0.000000e+00> : vector<16x128xf32>
    %144 = tpu.matmul %141, %143, %cst_110 {dimension_numbers = #tpu.dot_dimension_numbers<[1], [0], [0], [1], [0, 0, 1, 1], [], []>} : vector<16x128xbf16>, vector<128x128xbf16>, vector<16x128xf32> -> vector<16x128xf32>
    %145 = arith.addf %80, %144 : vector<16x128xf32>
    %c1_111 = arith.constant 1 : index
    %c0_112 = arith.constant 0 : index
    %c0_113 = arith.constant 0 : index
    %146 = vector.load %arg14[%c1_111, %c0_112, %c0_113] : memref<3x1x128xf32, #tpu.memory_space<vmem>>, vector<1x1x128xf32>
    %147 = vector.shape_cast %146 : vector<1x1x128xf32> to vector<1x128xf32>
    %148 = vector.broadcast %147 : vector<1x128xf32> to vector<16x128xf32>
    %149 = arith.addf %145, %148 : vector<16x128xf32>
    %c2 = arith.constant 2 : index
    %c0_114 = arith.constant 0 : index
    %c0_115 = arith.constant 0 : index
    %150 = vector.load %arg6[%c2, %c0_114, %c0_115] : memref<3x128x128xbf16, #tpu.memory_space<vmem>>, vector<1x128x128xbf16>
    %151 = vector.shape_cast %150 : vector<1x128x128xbf16> to vector<128x128xbf16>
    %c2_116 = arith.constant 2 : index
    %c0_117 = arith.constant 0 : index
    %c0_118 = arith.constant 0 : index
    %152 = vector.load %arg7[%c2_116, %c0_117, %c0_118] : memref<3x128x128xbf16, #tpu.memory_space<vmem>>, vector<1x128x128xbf16>
    %153 = vector.shape_cast %152 : vector<1x128x128xbf16> to vector<128x128xbf16>
    %c2_119 = arith.constant 2 : index
    %c0_120 = arith.constant 0 : index
    %c0_121 = arith.constant 0 : index
    %154 = vector.load %arg8[%c2_119, %c0_120, %c0_121] : memref<3x1x128xf32, #tpu.memory_space<vmem>>, vector<1x1x128xf32>
    %155 = vector.shape_cast %154 : vector<1x1x128xf32> to vector<1x128xf32>
    %c2_122 = arith.constant 2 : index
    %c0_123 = arith.constant 0 : index
    %c0_124 = arith.constant 0 : index
    %156 = vector.load %arg9[%c2_122, %c0_123, %c0_124] : memref<3x128x128xbf16, #tpu.memory_space<vmem>>, vector<1x128x128xbf16>
    %157 = vector.shape_cast %156 : vector<1x128x128xbf16> to vector<128x128xbf16>
    %c2_125 = arith.constant 2 : index
    %c0_126 = arith.constant 0 : index
    %c0_127 = arith.constant 0 : index
    %158 = vector.load %arg10[%c2_125, %c0_126, %c0_127] : memref<3x1x128xf32, #tpu.memory_space<vmem>>, vector<1x1x128xf32>
    %159 = vector.shape_cast %158 : vector<1x1x128xf32> to vector<1x128xf32>
    %160 = arith.truncf %149 : vector<16x128xf32> to vector<16x128xbf16>
    %cst_128 = arith.constant dense<0.000000e+00> : vector<16x128xf32>
    %161 = tpu.matmul %160, %151, %cst_128 {dimension_numbers = #tpu.dot_dimension_numbers<[1], [0], [0], [1], [0, 0, 1, 1], [], []>} : vector<16x128xbf16>, vector<128x128xbf16>, vector<16x128xf32> -> vector<16x128xf32>
    %c0_129 = arith.constant 0 : index
    %c0_130 = arith.constant 0 : index
    %162 = vector.load %arg21[%c0_129, %c0_130] : memref<16x128xf32, #tpu.memory_space<vmem>>, vector<16x128xf32>
    tpu.vector_store %arg21[%c0_129, %c0_130], %161 {strides = array<i32>} : memref<16x128xf32, #tpu.memory_space<vmem>>, vector<16x128xf32>,
    %cst_131 = arith.constant 0.000000e+00 : f32
    %163 = vector.broadcast %cst_131 : f32 to vector<16x128xf32>
    %c0_132 = arith.constant 0 : index
    %c0_133 = arith.constant 0 : index
    %164 = vector.load %arg22[%c0_132, %c0_133] : memref<16x128xf32, #tpu.memory_space<vmem>>, vector<16x128xf32>
    tpu.vector_store %arg22[%c0_132, %c0_133], %163 {strides = array<i32>} : memref<16x128xf32, #tpu.memory_space<vmem>>, vector<16x128xf32>,
    %c0_134 = arith.constant 0 : index
    %c0_135 = arith.constant 0 : index
    %165 = vector.load %arg20[%c0_134, %c0_135] : memref<256x128xbf16, #tpu.memory_space<vmem>>, vector<256x128xbf16>
    %cst_136 = arith.constant dense<0.000000e+00> : vector<256x128xf32>
    %166 = tpu.matmul %165, %153, %cst_136 {dimension_numbers = #tpu.dot_dimension_numbers<[1], [0], [0], [1], [0, 0, 1, 1], [], []>} : vector<256x128xbf16>, vector<128x128xbf16>, vector<256x128xf32> -> vector<256x128xf32>
    %167 = vector.broadcast %155 : vector<1x128xf32> to vector<256x128xf32>
    %168 = arith.addf %166, %167 : vector<256x128xf32>
    %cst_137 = arith.constant 0.000000e+00 : f32
    %169 = vector.broadcast %cst_137 : f32 to vector<256x128xf32>
    %170 = arith.maximumf %168, %169 : vector<256x128xf32>
    %171 = math.absf %168 : vector<256x128xf32>
    %cst_138 = arith.constant 0.000000e+00 : f32
    %172 = vector.broadcast %cst_138 : f32 to vector<256x128xf32>
    %173 = arith.subf %172, %171 : vector<256x128xf32>
    %174 = math.exp %173 : vector<256x128xf32>
    %175 = math.log1p %174 : vector<256x128xf32>
    %176 = arith.addf %170, %175 : vector<256x128xf32>
    %177 = arith.truncf %176 : vector<256x128xf32> to vector<256x128xbf16>
    %cst_139 = arith.constant dense<0.000000e+00> : vector<256x128xf32>
    %178 = tpu.matmul %177, %157, %cst_139 {dimension_numbers = #tpu.dot_dimension_numbers<[1], [0], [0], [1], [0, 0, 1, 1], [], []>} : vector<256x128xbf16>, vector<128x128xbf16>, vector<256x128xf32> -> vector<256x128xf32>
    %179 = vector.broadcast %159 : vector<1x128xf32> to vector<256x128xf32>
    %180 = arith.addf %178, %179 : vector<256x128xf32>
    %c0_140 = arith.constant 0 : index
    %c0_141 = arith.constant 0 : index
    %181 = vector.load %arg2[%c0_140, %c0_141] : memref<256x1xf32, #tpu.memory_space<vmem>>, vector<256x1xf32>
    %c0_142 = arith.constant 0 : index
    %c0_143 = arith.constant 0 : index
    %182 = vector.load %arg21[%c0_142, %c0_143] : memref<16x128xf32, #tpu.memory_space<vmem>>, vector<16x128xf32>
    %183 = vector.broadcast %181 : vector<256x1xf32> to vector<256x128xf32>
    %184 = arith.mulf %180, %183 : vector<256x128xf32>
    %185 = vector.shape_cast %184 : vector<256x128xf32> to vector<16x16x128xf32>
    %186 = vector.shape_cast %182 : vector<16x128xf32> to vector<16x1x128xf32>
    %187 = vector.broadcast %186 : vector<16x1x128xf32> to vector<16x16x128xf32>
    %188 = arith.mulf %185, %187 : vector<16x16x128xf32>
    %cst_144 = arith.constant dense<0.000000e+00> : vector<16x128xf32>
    %189 = vector.multi_reduction <add>, %188, %cst_144 [0] : vector<16x16x128xf32> to vector<16x128xf32>
    %c0_145 = arith.constant 0 : index
    %c0_146 = arith.constant 0 : index
    %190 = vector.load %arg22[%c0_145, %c0_146] : memref<16x128xf32, #tpu.memory_space<vmem>>, vector<16x128xf32>
    %191 = arith.addf %190, %189 : vector<16x128xf32>
    %c0_147 = arith.constant 0 : index
    %c0_148 = arith.constant 0 : index
    %192 = vector.load %arg22[%c0_147, %c0_148] : memref<16x128xf32, #tpu.memory_space<vmem>>, vector<16x128xf32>
    tpu.vector_store %arg22[%c0_147, %c0_148], %191 {strides = array<i32>} : memref<16x128xf32, #tpu.memory_space<vmem>>, vector<16x128xf32>,
    %c0_149 = arith.constant 0 : index
    %c0_150 = arith.constant 0 : index
    %193 = vector.load %arg22[%c0_149, %c0_150] : memref<16x128xf32, #tpu.memory_space<vmem>>, vector<16x128xf32>
    %194 = arith.truncf %193 : vector<16x128xf32> to vector<16x128xbf16>
    %c2_151 = arith.constant 2 : index
    %c0_152 = arith.constant 0 : index
    %c0_153 = arith.constant 0 : index
    %195 = vector.load %arg11[%c2_151, %c0_152, %c0_153] : memref<3x128x128xbf16, #tpu.memory_space<vmem>>, vector<1x128x128xbf16>
    %196 = vector.shape_cast %195 : vector<1x128x128xbf16> to vector<128x128xbf16>
    %cst_154 = arith.constant dense<0.000000e+00> : vector<16x128xf32>
    %197 = tpu.matmul %194, %196, %cst_154 {dimension_numbers = #tpu.dot_dimension_numbers<[1], [0], [0], [1], [0, 0, 1, 1], [], []>} : vector<16x128xbf16>, vector<128x128xbf16>, vector<16x128xf32> -> vector<16x128xf32>
    %c2_155 = arith.constant 2 : index
    %c0_156 = arith.constant 0 : index
    %c0_157 = arith.constant 0 : index
    %198 = vector.load %arg12[%c2_155, %c0_156, %c0_157] : memref<3x1x128xf32, #tpu.memory_space<vmem>>, vector<1x1x128xf32>
    %199 = vector.shape_cast %198 : vector<1x1x128xf32> to vector<1x128xf32>
    %200 = vector.broadcast %199 : vector<1x128xf32> to vector<16x128xf32>
    %201 = arith.addf %197, %200 : vector<16x128xf32>
    %cst_158 = arith.constant 0.000000e+00 : f32
    %202 = vector.broadcast %cst_158 : f32 to vector<16x128xf32>
    %203 = arith.maximumf %201, %202 : vector<16x128xf32>
    %204 = math.absf %201 : vector<16x128xf32>
    %cst_159 = arith.constant 0.000000e+00 : f32
    %205 = vector.broadcast %cst_159 : f32 to vector<16x128xf32>
    %206 = arith.subf %205, %204 : vector<16x128xf32>
    %207 = math.exp %206 : vector<16x128xf32>
    %208 = math.log1p %207 : vector<16x128xf32>
    %209 = arith.addf %203, %208 : vector<16x128xf32>
    %210 = arith.truncf %209 : vector<16x128xf32> to vector<16x128xbf16>
    %c2_160 = arith.constant 2 : index
    %c0_161 = arith.constant 0 : index
    %c0_162 = arith.constant 0 : index
    %211 = vector.load %arg13[%c2_160, %c0_161, %c0_162] : memref<3x128x128xbf16, #tpu.memory_space<vmem>>, vector<1x128x128xbf16>
    %212 = vector.shape_cast %211 : vector<1x128x128xbf16> to vector<128x128xbf16>
    %cst_163 = arith.constant dense<0.000000e+00> : vector<16x128xf32>
    %213 = tpu.matmul %210, %212, %cst_163 {dimension_numbers = #tpu.dot_dimension_numbers<[1], [0], [0], [1], [0, 0, 1, 1], [], []>} : vector<16x128xbf16>, vector<128x128xbf16>, vector<16x128xf32> -> vector<16x128xf32>
    %214 = arith.addf %149, %213 : vector<16x128xf32>
    %c2_164 = arith.constant 2 : index
    %c0_165 = arith.constant 0 : index
    %c0_166 = arith.constant 0 : index
    %215 = vector.load %arg14[%c2_164, %c0_165, %c0_166] : memref<3x1x128xf32, #tpu.memory_space<vmem>>, vector<1x1x128xf32>
    %216 = vector.shape_cast %215 : vector<1x1x128xf32> to vector<1x128xf32>
    %217 = vector.broadcast %216 : vector<1x128xf32> to vector<16x128xf32>
    %218 = arith.addf %214, %217 : vector<16x128xf32>
    %219 = arith.truncf %218 : vector<16x128xf32> to vector<16x128xbf16>
    %c0_167 = arith.constant 0 : index
    %c0_168 = arith.constant 0 : index
    %220 = vector.load %arg15[%c0_167, %c0_168] : memref<128x128xbf16, #tpu.memory_space<vmem>>, vector<128x128xbf16>
    %cst_169 = arith.constant dense<0.000000e+00> : vector<16x128xf32>
    %221 = tpu.matmul %219, %220, %cst_169 {dimension_numbers = #tpu.dot_dimension_numbers<[1], [0], [0], [1], [0, 0, 1, 1], [], []>} : vector<16x128xbf16>, vector<128x128xbf16>, vector<16x128xf32> -> vector<16x128xf32>
    %c0_170 = arith.constant 0 : index
    %c0_171 = arith.constant 0 : index
    %222 = vector.load %arg16[%c0_170, %c0_171] : memref<1x128xf32, #tpu.memory_space<vmem>>, vector<1x128xf32>
    %223 = vector.broadcast %222 : vector<1x128xf32> to vector<16x128xf32>
    %224 = arith.addf %221, %223 : vector<16x128xf32>
    %cst_172 = arith.constant 0.000000e+00 : f32
    %225 = vector.broadcast %cst_172 : f32 to vector<16x128xf32>
    %226 = arith.maximumf %224, %225 : vector<16x128xf32>
    %227 = math.absf %224 : vector<16x128xf32>
    %cst_173 = arith.constant 0.000000e+00 : f32
    %228 = vector.broadcast %cst_173 : f32 to vector<16x128xf32>
    %229 = arith.subf %228, %227 : vector<16x128xf32>
    %230 = math.exp %229 : vector<16x128xf32>
    %231 = math.log1p %230 : vector<16x128xf32>
    %232 = arith.addf %226, %231 : vector<16x128xf32>
    %233 = arith.truncf %232 : vector<16x128xf32> to vector<16x128xbf16>
    %c0_174 = arith.constant 0 : index
    %c0_175 = arith.constant 0 : index
    %234 = vector.load %arg17[%c0_174, %c0_175] : memref<128x128xbf16, #tpu.memory_space<vmem>>, vector<128x128xbf16>
    %cst_176 = arith.constant dense<0.000000e+00> : vector<16x128xf32>
    %235 = tpu.matmul %233, %234, %cst_176 {dimension_numbers = #tpu.dot_dimension_numbers<[1], [0], [0], [1], [0, 0, 1, 1], [], []>} : vector<16x128xbf16>, vector<128x128xbf16>, vector<16x128xf32> -> vector<16x128xf32>
    %c0_177 = arith.constant 0 : index
    %c0_178 = arith.constant 0 : index
    %236 = vector.load %arg18[%c0_177, %c0_178] : memref<1x128xf32, #tpu.memory_space<vmem>>, vector<1x128xf32>
    %237 = vector.broadcast %236 : vector<1x128xf32> to vector<16x128xf32>
    %238 = arith.addf %235, %237 : vector<16x128xf32>
    %c0_179 = arith.constant 0 : index
    %c0_180 = arith.constant 0 : index
    %239 = vector.load %arg3[%c0_179, %c0_180] : memref<8x16xbf16, #tpu.memory_space<vmem>>, vector<8x16xbf16>
    %240 = arith.truncf %238 : vector<16x128xf32> to vector<16x128xbf16>
    %cst_181 = arith.constant dense<0.000000e+00> : vector<8x128xf32>
    %241 = tpu.matmul %239, %240, %cst_181 {dimension_numbers = #tpu.dot_dimension_numbers<[1], [0], [0], [1], [0, 0, 1, 1], [], []>} : vector<8x16xbf16>, vector<16x128xbf16>, vector<8x128xf32> -> vector<8x128xf32>
    %c0_182 = arith.constant 0 : index
    %c0_183 = arith.constant 0 : index
    %242 = vector.load %arg19[%c0_182, %c0_183] : memref<8x128xf32, #tpu.memory_space<vmem>>, vector<8x128xf32>
    tpu.vector_store %arg19[%c0_182, %c0_183], %241 {strides = array<i32>} : memref<8x128xf32, #tpu.memory_space<vmem>>, vector<8x128xf32>,
    return
  }
  func.func @transform_0(%arg0: i32) -> (i32, i32) {
    %c0_i32 = arith.constant 0 : i32
    %c0_i32_0 = arith.constant 0 : i32
    %c0_i32_1 = arith.constant 0 : i32
    return %c0_i32, %c0_i32_0 : i32, i32
  }
  func.func @transform_1(%arg0: i32) -> (i32, i32) {
    %c0_i32 = arith.constant 0 : i32
    %c0_i32_0 = arith.constant 0 : i32
    %c0_i32_1 = arith.constant 0 : i32
    return %c0_i32, %c0_i32_0 : i32, i32
  }
  func.func @transform_2(%arg0: i32) -> (i32, i32) {
    %c0_i32 = arith.constant 0 : i32
    %c0_i32_0 = arith.constant 0 : i32
    %c0_i32_1 = arith.constant 0 : i32
    return %c0_i32, %c0_i32_0 : i32, i32
  }
  func.func @transform_3(%arg0: i32) -> (i32, i32) {
    %c0_i32 = arith.constant 0 : i32
    %c0_i32_0 = arith.constant 0 : i32
    %c0_i32_1 = arith.constant 0 : i32
    return %c0_i32, %c0_i32_0 : i32, i32
  }
  func.func @transform_4(%arg0: i32) -> (i32, i32) {
    %c0_i32 = arith.constant 0 : i32
    %c0_i32_0 = arith.constant 0 : i32
    %c0_i32_1 = arith.constant 0 : i32
    return %c0_i32, %c0_i32_0 : i32, i32
  }
  func.func @transform_5(%arg0: i32) -> (i32, i32, i32) {
    %c0_i32 = arith.constant 0 : i32
    %c0_i32_0 = arith.constant 0 : i32
    %c0_i32_1 = arith.constant 0 : i32
    %c0_i32_2 = arith.constant 0 : i32
    return %c0_i32, %c0_i32_0, %c0_i32_1 : i32, i32, i32
  }
  func.func @transform_6(%arg0: i32) -> (i32, i32, i32) {
    %c0_i32 = arith.constant 0 : i32
    %c0_i32_0 = arith.constant 0 : i32
    %c0_i32_1 = arith.constant 0 : i32
    %c0_i32_2 = arith.constant 0 : i32
    return %c0_i32, %c0_i32_0, %c0_i32_1 : i32, i32, i32
  }
  func.func @transform_7(%arg0: i32) -> (i32, i32, i32) {
    %c0_i32 = arith.constant 0 : i32
    %c0_i32_0 = arith.constant 0 : i32
    %c0_i32_1 = arith.constant 0 : i32
    %c0_i32_2 = arith.constant 0 : i32
    return %c0_i32, %c0_i32_0, %c0_i32_1 : i32, i32, i32
  }
  func.func @transform_8(%arg0: i32) -> (i32, i32, i32) {
    %c0_i32 = arith.constant 0 : i32
    %c0_i32_0 = arith.constant 0 : i32
    %c0_i32_1 = arith.constant 0 : i32
    %c0_i32_2 = arith.constant 0 : i32
    return %c0_i32, %c0_i32_0, %c0_i32_1 : i32, i32, i32
  }
  func.func @transform_9(%arg0: i32) -> (i32, i32, i32) {
    %c0_i32 = arith.constant 0 : i32
    %c0_i32_0 = arith.constant 0 : i32
    %c0_i32_1 = arith.constant 0 : i32
    %c0_i32_2 = arith.constant 0 : i32
    return %c0_i32, %c0_i32_0, %c0_i32_1 : i32, i32, i32
  }
  func.func @transform_10(%arg0: i32) -> (i32, i32, i32) {
    %c0_i32 = arith.constant 0 : i32
    %c0_i32_0 = arith.constant 0 : i32
    %c0_i32_1 = arith.constant 0 : i32
    %c0_i32_2 = arith.constant 0 : i32
    return %c0_i32, %c0_i32_0, %c0_i32_1 : i32, i32, i32
  }
  func.func @transform_11(%arg0: i32) -> (i32, i32, i32) {
    %c0_i32 = arith.constant 0 : i32
    %c0_i32_0 = arith.constant 0 : i32
    %c0_i32_1 = arith.constant 0 : i32
    %c0_i32_2 = arith.constant 0 : i32
    return %c0_i32, %c0_i32_0, %c0_i32_1 : i32, i32, i32
  }
  func.func @transform_12(%arg0: i32) -> (i32, i32, i32) {
    %c0_i32 = arith.constant 0 : i32
    %c0_i32_0 = arith.constant 0 : i32
    %c0_i32_1 = arith.constant 0 : i32
    %c0_i32_2 = arith.constant 0 : i32
    return %c0_i32, %c0_i32_0, %c0_i32_1 : i32, i32, i32
  }
  func.func @transform_13(%arg0: i32) -> (i32, i32, i32) {
    %c0_i32 = arith.constant 0 : i32
    %c0_i32_0 = arith.constant 0 : i32
    %c0_i32_1 = arith.constant 0 : i32
    %c0_i32_2 = arith.constant 0 : i32
    return %c0_i32, %c0_i32_0, %c0_i32_1 : i32, i32, i32
  }
  func.func @transform_14(%arg0: i32) -> (i32, i32) {
    %c0_i32 = arith.constant 0 : i32
    %c0_i32_0 = arith.constant 0 : i32
    %c0_i32_1 = arith.constant 0 : i32
    return %c0_i32, %c0_i32_0 : i32, i32
  }
  func.func @transform_15(%arg0: i32) -> (i32, i32) {
    %c0_i32 = arith.constant 0 : i32
    %c0_i32_0 = arith.constant 0 : i32
    %c0_i32_1 = arith.constant 0 : i32
    return %c0_i32, %c0_i32_0 : i32, i32
  }
  func.func @transform_16(%arg0: i32) -> (i32, i32) {
    %c0_i32 = arith.constant 0 : i32
    %c0_i32_0 = arith.constant 0 : i32
    %c0_i32_1 = arith.constant 0 : i32
    return %c0_i32, %c0_i32_0 : i32, i32
  }
  func.func @transform_17(%arg0: i32) -> (i32, i32) {
    %c0_i32 = arith.constant 0 : i32
    %c0_i32_0 = arith.constant 0 : i32
    %c0_i32_1 = arith.constant 0 : i32
    return %c0_i32, %c0_i32_0 : i32, i32
  }
  func.func @transform_18(%arg0: i32) -> (i32, i32) {
    %c0_i32 = arith.constant 0 : i32
    %c0_i32_0 = arith.constant 0 : i32
    %c0_i32_1 = arith.constant 0 : i32
    return %c0_i32, %c0_i32_0 : i32, i32
  }
}

</mosaic_0001>

<llo_original>
// kernel: tpu_custom_call.1
$region0: #{tpu_custom_call.1}
  #allocation0 [shape = 'u32[]', space=smem, size = 0x4, offset = 0x4, fixed_abs, tag = 'smem constant byte address 0x4 - core index']
  #allocation1 [shape = 'u32[72,128]{1,0:T(1,128)}', space=vmem, size = 0x9000, scoped, tag = 'internal scratch']
  #allocation2 [shape = 'bf16[256,128]{1,0:T(8,128)(2,1)}', space=vmem, size = 0x10000, scoped, tag = 'scratch operand']
  #allocation3 [shape = 'f32[16,128]{1,0:T(8,128)}', space=vmem, size = 0x2000, scoped, tag = 'scratch operand']
  #allocation4 [shape = 'f32[16,128]{1,0:T(8,128)}', space=vmem, size = 0x2000, scoped, tag = 'scratch operand']
  %s0 = inlined_call_operand.vmem [shape: f32[256,1], index: 0, kind: input, shape index: {}]
  %s1 = inlined_call_operand.vmem [shape: f32[256,1], index: 1, kind: input, shape index: {}]
  %s2 = inlined_call_operand.hbm [shape: bf16[8,16], index: 2, kind: input, shape index: {}]
  %s3 = inlined_call_operand.vmem [shape: f32[1,128], index: 3, kind: input, shape index: {}]
  %s4 = inlined_call_operand.hbm [shape: f32[16,128], index: 4, kind: input, shape index: {}]
  %s5 = inlined_call_operand.vmem [shape: bf16[3,128,128], index: 5, kind: input, shape index: {}]
  %s6 = inlined_call_operand.vmem [shape: bf16[3,128,128], index: 6, kind: input, shape index: {}]
  %s7 = inlined_call_operand.vmem [shape: f32[3,1,128], index: 7, kind: input, shape index: {}]
  %s8 = inlined_call_operand.hbm [shape: bf16[3,128,128], index: 8, kind: input, shape index: {}]
  %s9 = inlined_call_operand.vmem [shape: f32[3,1,128], index: 9, kind: input, shape index: {}]
  %s10 = inlined_call_operand.hbm [shape: bf16[3,128,128], index: 10, kind: input, shape index: {}]
  %s11 = inlined_call_operand.hbm [shape: f32[3,1,128], index: 11, kind: input, shape index: {}]
  %s12 = inlined_call_operand.hbm [shape: bf16[3,128,128], index: 12, kind: input, shape index: {}]
  %s13 = inlined_call_operand.vmem [shape: f32[3,1,128], index: 13, kind: input, shape index: {}]
  %s14 = inlined_call_operand.vmem [shape: bf16[128,128], index: 14, kind: input, shape index: {}]
  %s15 = inlined_call_operand.vmem [shape: f32[1,128], index: 15, kind: input, shape index: {}]
  %s16 = inlined_call_operand.vmem [shape: bf16[128,128], index: 16, kind: input, shape index: {}]
  %s17 = inlined_call_operand.vmem [shape: f32[1,128], index: 17, kind: input, shape index: {}]
  %s18 = inlined_call_operand.hbm [shape: f32[8,128], index: 18, kind: output, shape index: {}]
  %s19 = sld [smem:[#allocation0]]
  $region106: #{tpu_custom_call.1} parent=0
    _
  %s21 = ssub.s32 1, %s19
  %s22 = scalar_select 0, %s21, %s19
  $region1: #{tpu_custom_call.1} parent=0
    #allocation5 [shape = 'u8[2048]{0}', space=vmem, size = 0x800, scoped, tag = 'input window, operand 2, single buffered']
    #allocation6 [shape = 's32[1]{0}', space=sflag, size = 0x4, scoped, tag = 'scoped memory for tpu_custom_call.1']
    #allocation7 [shape = 's32[1]{0}', space=sflag, size = 0x4, scoped, tag = 'scoped memory for tpu_custom_call.1']
    #allocation8 [shape = 'u8[8192]{0}', space=vmem, size = 0x2000, scoped, tag = 'input window, operand 4, single buffered']
    #allocation9 [shape = 's32[1]{0}', space=sflag, size = 0x4, scoped, tag = 'scoped memory for tpu_custom_call.1']
    #allocation10 [shape = 'u8[98304]{0}', space=vmem, size = 0x18000, scoped, tag = 'input window, operand 8, single buffered']
    #allocation11 [shape = 'u8[98304]{0}', space=vmem, size = 0x18000, scoped, tag = 'input window, operand 10, single buffered']
    #allocation12 [shape = 's32[1]{0}', space=sflag, size = 0x4, scoped, tag = 'scoped memory for tpu_custom_call.1']
    #allocation13 [shape = 'u8[1536]{0}', space=vmem, size = 0x800, scoped, tag = 'input window, operand 11, single buffered']
    #allocation14 [shape = 'u8[98304]{0}', space=vmem, size = 0x18000, scoped, tag = 'input window, operand 12, single buffered']
    #allocation15 [shape = 's32[1]{0}', space=sflag, size = 0x4, scoped, tag = 'scoped memory for tpu_custom_call.1']
    #allocation16 [shape = 'u8[4096]{0}', space=vmem, size = 0x1000, scoped, tag = 'output window, operand 0, single buffered']
    %23 = vsyncpa [#allocation6], 0
    %24 = vsyncpa [#allocation9], 0
    %25 = vsyncpa [#allocation12], 0
    %26 = vsyncpa [#allocation15], 0
    %27 = vsyncpa [#allocation7], 0
    // Predicated region
    $region2: #{tpu_custom_call.1} parent=1 // pred_check
      _
    $region3: #{tpu_custom_call.1} parent=1 // pred_check_branch
      %29 = sbr.rel (0) target = $region5
    $region4: #{tpu_custom_call.1} parent=1 // pred_region
      _
    $region5: #{tpu_custom_call.1} parent=1 // pred_fallthru
      _
    // Predicated region
    $region6: #{tpu_custom_call.1} parent=1 // pred_check
      _
    $region7: #{tpu_custom_call.1} parent=1 // pred_check_branch
      %31 = sbr.rel (0) target = $region9
    $region8: #{tpu_custom_call.1} parent=1 // pred_region
      _
    $region9: #{tpu_custom_call.1} parent=1 // pred_fallthru
      _
    // Predicated region
    $region10: #{tpu_custom_call.1} parent=1 // pred_check
      _
    $region11: #{tpu_custom_call.1} parent=1 // pred_check_branch
      %33 = sbr.rel (0) target = $region13
    $region12: #{tpu_custom_call.1} parent=1 // pred_region
      %35 = vsyncadd [#allocation6], 0
      %s37 = sshll.u32 %s2, 4
      %s38 = int_to_ptr.hbm [resolvable:$true] %s37
      %s39 = sshll.u32 [#allocation5], 4
      %s40 = int_to_ptr.vmem [resolvable:$true] %s39
      %42 = dma.hbm_to_vmem [thread:$0]  %s38, 64, %s40, [#allocation6]
    $region13: #{tpu_custom_call.1} parent=1 // pred_fallthru
      _
    // Predicated region
    $region14: #{tpu_custom_call.1} parent=1 // pred_check
      _
    $region15: #{tpu_custom_call.1} parent=1 // pred_check_branch
      %44 = sbr.rel (0) target = $region17
    $region16: #{tpu_custom_call.1} parent=1 // pred_region
      _
    $region17: #{tpu_custom_call.1} parent=1 // pred_fallthru
      _
    // Predicated region
    $region18: #{tpu_custom_call.1} parent=1 // pred_check
      _
    $region19: #{tpu_custom_call.1} parent=1 // pred_check_branch
      %46 = sbr.rel (0) target = $region21
    $region20: #{tpu_custom_call.1} parent=1 // pred_region
      %48 = vsyncadd [#allocation9], 0
      %s49 = sshll.u32 %s4, 4
      %s50 = int_to_ptr.hbm [resolvable:$true] %s49
      %s51 = sshll.u32 [#allocation8], 4
      %s52 = int_to_ptr.vmem [resolvable:$true] %s51
      %57 = dma.hbm_to_vmem [thread:$0]  %s50, 256, %s52, [#allocation9], 128, 128, 8
    $region21: #{tpu_custom_call.1} parent=1 // pred_fallthru
      _
    // Predicated region
    $region22: #{tpu_custom_call.1} parent=1 // pred_check
      _
    $region23: #{tpu_custom_call.1} parent=1 // pred_check_branch
      %59 = sbr.rel (0) target = $region25
    $region24: #{tpu_custom_call.1} parent=1 // pred_region
      _
    $region25: #{tpu_custom_call.1} parent=1 // pred_fallthru
      _
    // Predicated region
    $region26: #{tpu_custom_call.1} parent=1 // pred_check
      _
    $region27: #{tpu_custom_call.1} parent=1 // pred_check_branch
      %61 = sbr.rel (0) target = $region29
    $region28: #{tpu_custom_call.1} parent=1 // pred_region
      _
    $region29: #{tpu_custom_call.1} parent=1 // pred_fallthru
      _
    // Predicated region
    $region30: #{tpu_custom_call.1} parent=1 // pred_check
      _
    $region31: #{tpu_custom_call.1} parent=1 // pred_check_branch
      %63 = sbr.rel (0) target = $region33
    $region32: #{tpu_custom_call.1} parent=1 // pred_region
      _
    $region33: #{tpu_custom_call.1} parent=1 // pred_fallthru
      _
    // Predicated region
    $region34: #{tpu_custom_call.1} parent=1 // pred_check
      _
    $region35: #{tpu_custom_call.1} parent=1 // pred_check_branch
      %65 = sbr.rel (0) target = $region37
    $region36: #{tpu_custom_call.1} parent=1 // pred_region
      %67 = vsyncadd [#allocation9], 0
      %s68 = sshll.u32 %s8, 4
      %s69 = int_to_ptr.hbm [resolvable:$true] %s68
      %s70 = sshll.u32 [#allocation10], 4
      %s71 = int_to_ptr.vmem [resolvable:$true] %s70
      %76 = dma.hbm_to_vmem [thread:$0]  %s69, 3072, %s71, [#allocation9], 64, 64, 4
    $region37: #{tpu_custom_call.1} parent=1 // pred_fallthru
      _
    // Predicated region
    $region38: #{tpu_custom_call.1} parent=1 // pred_check
      _
    $region39: #{tpu_custom_call.1} parent=1 // pred_check_branch
      %78 = sbr.rel (0) target = $region41
    $region40: #{tpu_custom_call.1} parent=1 // pred_region
      _
    $region41: #{tpu_custom_call.1} parent=1 // pred_fallthru
      _
    // Predicated region
    $region42: #{tpu_custom_call.1} parent=1 // pred_check
      _
    $region43: #{tpu_custom_call.1} parent=1 // pred_check_branch
      %80 = sbr.rel (0) target = $region45
    $region44: #{tpu_custom_call.1} parent=1 // pred_region
      %82 = vsyncadd [#allocation12], 0
      %s83 = sshll.u32 %s10, 4
      %s84 = int_to_ptr.hbm [resolvable:$true] %s83
      %s85 = sshll.u32 [#allocation11], 4
      %s86 = int_to_ptr.vmem [resolvable:$true] %s85
      %91 = dma.hbm_to_vmem [thread:$0]  %s84, 3072, %s86, [#allocation12], 64, 64, 4
    $region45: #{tpu_custom_call.1} parent=1 // pred_fallthru
      _
    // Predicated region
    $region46: #{tpu_custom_call.1} parent=1 // pred_check
      _
    $region47: #{tpu_custom_call.1} parent=1 // pred_check_branch
      %93 = sbr.rel (0) target = $region49
    $region48: #{tpu_custom_call.1} parent=1 // pred_region
      %95 = vsyncadd [#allocation12], 0
      %s96 = sshll.u32 %s11, 4
      %s97 = int_to_ptr.hbm [resolvable:$true] %s96
      %s98 = sshll.u32 [#allocation13], 4
      %s99 = int_to_ptr.vmem [resolvable:$true] %s98
      %104 = dma.hbm_to_vmem [thread:$0]  %s97, 48, %s99, [#allocation12], 16, 16, 1
    $region49: #{tpu_custom_call.1} parent=1 // pred_fallthru
      _
    // Predicated region
    $region50: #{tpu_custom_call.1} parent=1 // pred_check
      _
    $region51: #{tpu_custom_call.1} parent=1 // pred_check_branch
      %106 = sbr.rel (0) target = $region53
    $region52: #{tpu_custom_call.1} parent=1 // pred_region
      %108 = vsyncadd [#allocation15], 0
      %s109 = sshll.u32 %s12, 4
      %s110 = int_to_ptr.hbm [resolvable:$true] %s109
      %s111 = sshll.u32 [#allocation14], 4
      %s112 = int_to_ptr.vmem [resolvable:$true] %s111
      %117 = dma.hbm_to_vmem [thread:$0]  %s110, 3072, %s112, [#allocation15], 64, 64, 4
    $region53: #{tpu_custom_call.1} parent=1 // pred_fallthru
      _
    // Predicated region
    $region54: #{tpu_custom_call.1} parent=1 // pred_check
      _
    $region55: #{tpu_custom_call.1} parent=1 // pred_check_branch
      %119 = sbr.rel (0) target = $region57
    $region56: #{tpu_custom_call.1} parent=1 // pred_region
      _
    $region57: #{tpu_custom_call.1} parent=1 // pred_fallthru
      _
    // Predicated region
    $region58: #{tpu_custom_call.1} parent=1 // pred_check
      _
    $region59: #{tpu_custom_call.1} parent=1 // pred_check_branch
      %121 = sbr.rel (0) target = $region61
    $region60: #{tpu_custom_call.1} parent=1 // pred_region
      _
    $region61: #{tpu_custom_call.1} parent=1 // pred_fallthru
      _
    // Predicated region
    $region62: #{tpu_custom_call.1} parent=1 // pred_check
      _
    $region63: #{tpu_custom_call.1} parent=1 // pred_check_branch
      %123 = sbr.rel (0) target = $region65
    $region64: #{tpu_custom_call.1} parent=1 // pred_region
      _
    $region65: #{tpu_custom_call.1} parent=1 // pred_fallthru
      _
    // Predicated region
    $region66: #{tpu_custom_call.1} parent=1 // pred_check
      _
    $region67: #{tpu_custom_call.1} parent=1 // pred_check_branch
      %125 = sbr.rel (0) target = $region69
    $region68: #{tpu_custom_call.1} parent=1 // pred_region
      _
    $region69: #{tpu_custom_call.1} parent=1 // pred_fallthru
      _
    // Predicated region
    $region70: #{tpu_custom_call.1} parent=1 // pred_check
      _
    $region71: #{tpu_custom_call.1} parent=1 // pred_check_branch
      %127 = sbr.rel (0) target = $region73
    $region72: #{tpu_custom_call.1} parent=1 // pred_region
      _
    $region73: #{tpu_custom_call.1} parent=1 // pred_fallthru
      _
    // Predicated region
    $region74: #{tpu_custom_call.1} parent=1 // pred_check
      _
    $region75: #{tpu_custom_call.1} parent=1 // pred_check_branch
      %129 = sbr.rel (0) target = $region77
    $region76: #{tpu_custom_call.1} parent=1 // pred_region
      %131 = dma.done [#allocation6], 64
    $region77: #{tpu_custom_call.1} parent=1 // pred_fallthru
      _
    // Predicated region
    $region78: #{tpu_custom_call.1} parent=1 // pred_check
      _
    $region79: #{tpu_custom_call.1} parent=1 // pred_check_branch
      %133 = sbr.rel (0) target = $region81
    $region80: #{tpu_custom_call.1} parent=1 // pred_region
      %135 = dma.done [#allocation9], 256
    $region81: #{tpu_custom_call.1} parent=1 // pred_fallthru
      _
    // Predicated region
    $region82: #{tpu_custom_call.1} parent=1 // pred_check
      _
    $region83: #{tpu_custom_call.1} parent=1 // pred_check_branch
      %137 = sbr.rel (0) target = $region85
    $region84: #{tpu_custom_call.1} parent=1 // pred_region
      %139 = dma.done [#allocation9], 3072
    $region85: #{tpu_custom_call.1} parent=1 // pred_fallthru
      _
    // Predicated region
    $region86: #{tpu_custom_call.1} parent=1 // pred_check
      _
    $region87: #{tpu_custom_call.1} parent=1 // pred_check_branch
      %141 = sbr.rel (0) target = $region89
    $region88: #{tpu_custom_call.1} parent=1 // pred_region
      %143 = dma.done [#allocation12], 3072
    $region89: #{tpu_custom_call.1} parent=1 // pred_fallthru
      _
    // Predicated region
    $region90: #{tpu_custom_call.1} parent=1 // pred_check
      _
    $region91: #{tpu_custom_call.1} parent=1 // pred_check_branch
      %145 = sbr.rel (0) target = $region93
    $region92: #{tpu_custom_call.1} parent=1 // pred_region
      %147 = dma.done [#allocation12], 48
    $region93: #{tpu_custom_call.1} parent=1 // pred_fallthru
      _
    // Predicated region
    $region94: #{tpu_custom_call.1} parent=1 // pred_check
      _
    $region95: #{tpu_custom_call.1} parent=1 // pred_check_branch
      %149 = sbr.rel (0) target = $region97
    $region96: #{tpu_custom_call.1} parent=1 // pred_region
      %151 = dma.done [#allocation15], 3072
    $region97: #{tpu_custom_call.1} parent=1 // pred_fallthru
      _
    %v153 = vld [vmem:[%s3] sm:$0x1]
    %v154 = vld [vmem:[%s0] sm:$0xff]
    %v155 = vld [vmem:[%s0 + $0x8] sm:$0xff]
    %v156 = vld [vmem:[%s0 + $0x10] sm:$0xff]
    %v157 = vld [vmem:[%s0 + $0x18] sm:$0xff]
    %v158 = vld [vmem:[%s0 + $0x20] sm:$0xff]
    %v159 = vld [vmem:[%s0 + $0x28] sm:$0xff]
    %v160 = vld [vmem:[%s0 + $0x30] sm:$0xff]
    %v161 = vld [vmem:[%s0 + $0x38] sm:$0xff]
    %v162 = vld [vmem:[%s0 + $0x40] sm:$0xff]
    %v163 = vld [vmem:[%s0 + $0x48] sm:$0xff]
    %v164 = vld [vmem:[%s0 + $0x50] sm:$0xff]
    %v165 = vld [vmem:[%s0 + $0x58] sm:$0xff]
    %v166 = vld [vmem:[%s0 + $0x60] sm:$0xff]
    %v167 = vld [vmem:[%s0 + $0x68] sm:$0xff]
    %v168 = vld [vmem:[%s0 + $0x70] sm:$0xff]
    %v169 = vld [vmem:[%s0 + $0x78] sm:$0xff]
    %v170 = vld [vmem:[%s0 + $0x80] sm:$0xff]
    %v171 = vld [vmem:[%s0 + $0x88] sm:$0xff]
    %v172 = vld [vmem:[%s0 + $0x90] sm:$0xff]
    %v173 = vld [vmem:[%s0 + $0x98] sm:$0xff]
    %v174 = vld [vmem:[%s0 + $0xa0] sm:$0xff]
    %v175 = vld [vmem:[%s0 + $0xa8] sm:$0xff]
    %v176 = vld [vmem:[%s0 + $0xb0] sm:$0xff]
    %v177 = vld [vmem:[%s0 + $0xb8] sm:$0xff]
    %v178 = vld [vmem:[%s0 + $0xc0] sm:$0xff]
    %v179 = vld [vmem:[%s0 + $0xc8] sm:$0xff]
    %v180 = vld [vmem:[%s0 + $0xd0] sm:$0xff]
    %v181 = vld [vmem:[%s0 + $0xd8] sm:$0xff]
    %v182 = vld [vmem:[%s0 + $0xe0] sm:$0xff]
    %v183 = vld [vmem:[%s0 + $0xe8] sm:$0xff]
    %v184 = vld [vmem:[%s0 + $0xf0] sm:$0xff]
    %v185 = vld [vmem:[%s0 + $0xf8] sm:$0xff]
    %187 = vset.pattern.permute.xlu0 0
    %188 = vperm.xlu0 %187, %v154
    %v189 = vpop.permute.xlu0 %188
    %192 = vset.pattern.permute.xlu0 0
    %193 = vperm.xlu0 %192, %v155
    %v194 = vpop.permute.xlu0 %193
    %197 = vset.pattern.permute.xlu0 0
    %198 = vperm.xlu0 %197, %v156
    %v199 = vpop.permute.xlu0 %198
    %202 = vset.pattern.permute.xlu0 0
    %203 = vperm.xlu0 %202, %v157
    %v204 = vpop.permute.xlu0 %203
    %207 = vset.pattern.permute.xlu0 0
    %208 = vperm.xlu0 %207, %v158
    %v209 = vpop.permute.xlu0 %208
    %212 = vset.pattern.permute.xlu0 0
    %213 = vperm.xlu0 %212, %v159
    %v214 = vpop.permute.xlu0 %213
    %217 = vset.pattern.permute.xlu0 0
    %218 = vperm.xlu0 %217, %v160
    %v219 = vpop.permute.xlu0 %218
    %222 = vset.pattern.permute.xlu0 0
    %223 = vperm.xlu0 %222, %v161
    %v224 = vpop.permute.xlu0 %223
    %227 = vset.pattern.permute.xlu0 0
    %228 = vperm.xlu0 %227, %v162
    %v229 = vpop.permute.xlu0 %228
    %232 = vset.pattern.permute.xlu0 0
    %233 = vperm.xlu0 %232, %v163
    %v234 = vpop.permute.xlu0 %233
    %237 = vset.pattern.permute.xlu0 0
    %238 = vperm.xlu0 %237, %v164
    %v239 = vpop.permute.xlu0 %238
    %242 = vset.pattern.permute.xlu0 0
    %243 = vperm.xlu0 %242, %v165
    %v244 = vpop.permute.xlu0 %243
    %247 = vset.pattern.permute.xlu0 0
    %248 = vperm.xlu0 %247, %v166
    %v249 = vpop.permute.xlu0 %248
    %252 = vset.pattern.permute.xlu0 0
    %253 = vperm.xlu0 %252, %v167
    %v254 = vpop.permute.xlu0 %253
    %257 = vset.pattern.permute.xlu0 0
    %258 = vperm.xlu0 %257, %v168
    %v259 = vpop.permute.xlu0 %258
    %262 = vset.pattern.permute.xlu0 0
    %263 = vperm.xlu0 %262, %v169
    %v264 = vpop.permute.xlu0 %263
    %267 = vset.pattern.permute.xlu0 0
    %268 = vperm.xlu0 %267, %v170
    %v269 = vpop.permute.xlu0 %268
    %272 = vset.pattern.permute.xlu0 0
    %273 = vperm.xlu0 %272, %v171
    %v274 = vpop.permute.xlu0 %273
    %277 = vset.pattern.permute.xlu0 0
    %278 = vperm.xlu0 %277, %v172
    %v279 = vpop.permute.xlu0 %278
    %282 = vset.pattern.permute.xlu0 0
    %283 = vperm.xlu0 %282, %v173
    %v284 = vpop.permute.xlu0 %283
    %287 = vset.pattern.permute.xlu0 0
    %288 = vperm.xlu0 %287, %v174
    %v289 = vpop.permute.xlu0 %288
    %292 = vset.pattern.permute.xlu0 0
    %293 = vperm.xlu0 %292, %v175
    %v294 = vpop.permute.xlu0 %293
    %297 = vset.pattern.permute.xlu0 0
    %298 = vperm.xlu0 %297, %v176
    %v299 = vpop.permute.xlu0 %298
    %302 = vset.pattern.permute.xlu0 0
    %303 = vperm.xlu0 %302, %v177
    %v304 = vpop.permute.xlu0 %303
    %307 = vset.pattern.permute.xlu0 0
    %308 = vperm.xlu0 %307, %v178
    %v309 = vpop.permute.xlu0 %308
    %312 = vset.pattern.permute.xlu0 0
    %313 = vperm.xlu0 %312, %v179
    %v314 = vpop.permute.xlu0 %313
    %317 = vset.pattern.permute.xlu0 0
    %318 = vperm.xlu0 %317, %v180
    %v319 = vpop.permute.xlu0 %318
    %322 = vset.pattern.permute.xlu0 0
    %323 = vperm.xlu0 %322, %v181
    %v324 = vpop.permute.xlu0 %323
    %327 = vset.pattern.permute.xlu0 0
    %328 = vperm.xlu0 %327, %v182
    %v329 = vpop.permute.xlu0 %328
    %332 = vset.pattern.permute.xlu0 0
    %333 = vperm.xlu0 %332, %v183
    %v334 = vpop.permute.xlu0 %333
    %337 = vset.pattern.permute.xlu0 0
    %338 = vperm.xlu0 %337, %v184
    %v339 = vpop.permute.xlu0 %338
    %342 = vset.pattern.permute.xlu0 0
    %343 = vperm.xlu0 %342, %v185
    %v344 = vpop.permute.xlu0 %343
    %v347 = vperm.slane %v153, 0
    %v349 = vsub.f32 %v189, %v347
    %v350 = vsub.f32 %v194, %v347
    %v351 = vsub.f32 %v199, %v347
    %v352 = vsub.f32 %v204, %v347
    %v353 = vsub.f32 %v209, %v347
    %v354 = vsub.f32 %v214, %v347
    %v355 = vsub.f32 %v219, %v347
    %v356 = vsub.f32 %v224, %v347
    %v357 = vsub.f32 %v229, %v347
    %v358 = vsub.f32 %v234, %v347
    %v359 = vsub.f32 %v239, %v347
    %v360 = vsub.f32 %v244, %v347
    %v361 = vsub.f32 %v249, %v347
    %v362 = vsub.f32 %v254, %v347
    %v363 = vsub.f32 %v259, %v347
    %v364 = vsub.f32 %v264, %v347
    %v365 = vsub.f32 %v269, %v347
    %v366 = vsub.f32 %v274, %v347
    %v367 = vsub.f32 %v279, %v347
    %v368 = vsub.f32 %v284, %v347
    %v369 = vsub.f32 %v289, %v347
    %v370 = vsub.f32 %v294, %v347
    %v371 = vsub.f32 %v299, %v347
    %v372 = vsub.f32 %v304, %v347
    %v373 = vsub.f32 %v309, %v347
    %v374 = vsub.f32 %v314, %v347
    %v375 = vsub.f32 %v319, %v347
    %v376 = vsub.f32 %v324, %v347
    %v377 = vsub.f32 %v329, %v347
    %v378 = vsub.f32 %v334, %v347
    %v379 = vsub.f32 %v339, %v347
    %v380 = vsub.f32 %v344, %v347
    %v381 = vmul.f32 %v349, %v349
    %v382 = vmul.f32 %v350, %v350
    %v383 = vmul.f32 %v351, %v351
    %v384 = vmul.f32 %v352, %v352
    %v385 = vmul.f32 %v353, %v353
    %v386 = vmul.f32 %v354, %v354
    %v387 = vmul.f32 %v355, %v355
    %v388 = vmul.f32 %v356, %v356
    %v389 = vmul.f32 %v357, %v357
    %v390 = vmul.f32 %v358, %v358
    %v391 = vmul.f32 %v359, %v359
    %v392 = vmul.f32 %v360, %v360
    %v393 = vmul.f32 %v361, %v361
    %v394 = vmul.f32 %v362, %v362
    %v395 = vmul.f32 %v363, %v363
    %v396 = vmul.f32 %v364, %v364
    %v397 = vmul.f32 %v365, %v365
    %v398 = vmul.f32 %v366, %v366
    %v399 = vmul.f32 %v367, %v367
    %v400 = vmul.f32 %v368, %v368
    %v401 = vmul.f32 %v369, %v369
    %v402 = vmul.f32 %v370, %v370
    %v403 = vmul.f32 %v371, %v371
    %v404 = vmul.f32 %v372, %v372
    %v405 = vmul.f32 %v373, %v373
    %v406 = vmul.f32 %v374, %v374
    %v407 = vmul.f32 %v375, %v375
    %v408 = vmul.f32 %v376, %v376
    %v409 = vmul.f32 %v377, %v377
    %v410 = vmul.f32 %v378, %v378
    %v411 = vmul.f32 %v379, %v379
    %v412 = vmul.f32 %v380, %v380
    %v413 = vmul.f32 %v381, -12.005001
    %v414 = vmul.f32 %v382, -12.005001
    %v415 = vmul.f32 %v383, -12.005001
    %v416 = vmul.f32 %v384, -12.005001
    %v417 = vmul.f32 %v385, -12.005001
    %v418 = vmul.f32 %v386, -12.005001
    %v419 = vmul.f32 %v387, -12.005001
    %v420 = vmul.f32 %v388, -12.005001
    %v421 = vmul.f32 %v389, -12.005001
    %v422 = vmul.f32 %v390, -12.005001
    %v423 = vmul.f32 %v391, -12.005001
    %v424 = vmul.f32 %v392, -12.005001
    %v425 = vmul.f32 %v393, -12.005001
    %v426 = vmul.f32 %v394, -12.005001
    %v427 = vmul.f32 %v395, -12.005001
    %v428 = vmul.f32 %v396, -12.005001
    %v429 = vmul.f32 %v397, -12.005001
    %v430 = vmul.f32 %v398, -12.005001
    %v431 = vmul.f32 %v399, -12.005001
    %v432 = vmul.f32 %v400, -12.005001
    %v433 = vmul.f32 %v401, -12.005001
    %v434 = vmul.f32 %v402, -12.005001
    %v435 = vmul.f32 %v403, -12.005001
    %v436 = vmul.f32 %v404, -12.005001
    %v437 = vmul.f32 %v405, -12.005001
    %v438 = vmul.f32 %v406, -12.005001
    %v439 = vmul.f32 %v407, -12.005001
    %v440 = vmul.f32 %v408, -12.005001
    %v441 = vmul.f32 %v409, -12.005001
    %v442 = vmul.f32 %v410, -12.005001
    %v443 = vmul.f32 %v411, -12.005001
    %v444 = vmul.f32 %v412, -12.005001
    %v445 = vmul.f32 %v413, 1.442695
    %v446 = vpow.pop %v445
    %v447 = vmul.f32 %v414, 1.442695
    %v448 = vpow.pop %v447
    %v449 = vmul.f32 %v415, 1.442695
    %v450 = vpow.pop %v449
    %v451 = vmul.f32 %v416, 1.442695
    %v452 = vpow.pop %v451
    %v453 = vmul.f32 %v417, 1.442695
    %v454 = vpow.pop %v453
    %v455 = vmul.f32 %v418, 1.442695
    %v456 = vpow.pop %v455
    %v457 = vmul.f32 %v419, 1.442695
    %v458 = vpow.pop %v457
    %v459 = vmul.f32 %v420, 1.442695
    %v460 = vpow.pop %v459
    %v461 = vmul.f32 %v421, 1.442695
    %v462 = vpow.pop %v461
    %v463 = vmul.f32 %v422, 1.442695
    %v464 = vpow.pop %v463
    %v465 = vmul.f32 %v423, 1.442695
    %v466 = vpow.pop %v465
    %v467 = vmul.f32 %v424, 1.442695
    %v468 = vpow.pop %v467
    %v469 = vmul.f32 %v425, 1.442695
    %v470 = vpow.pop %v469
    %v471 = vmul.f32 %v426, 1.442695
    %v472 = vpow.pop %v471
    %v473 = vmul.f32 %v427, 1.442695
    %v474 = vpow.pop %v473
    %v475 = vmul.f32 %v428, 1.442695
    %v476 = vpow.pop %v475
    %v477 = vmul.f32 %v429, 1.442695
    %v478 = vpow.pop %v477
    %v479 = vmul.f32 %v430, 1.442695
    %v480 = vpow.pop %v479
    %v481 = vmul.f32 %v431, 1.442695
    %v482 = vpow.pop %v481
    %v483 = vmul.f32 %v432, 1.442695
    %v484 = vpow.pop %v483
    %v485 = vmul.f32 %v433, 1.442695
    %v486 = vpow.pop %v485
    %v487 = vmul.f32 %v434, 1.442695
    %v488 = vpow.pop %v487
    %v489 = vmul.f32 %v435, 1.442695
    %v490 = vpow.pop %v489
    %v491 = vmul.f32 %v436, 1.442695
    %v492 = vpow.pop %v491
    %v493 = vmul.f32 %v437, 1.442695
    %v494 = vpow.pop %v493
    %v495 = vmul.f32 %v438, 1.442695
    %v496 = vpow.pop %v495
    %v497 = vmul.f32 %v439, 1.442695
    %v498 = vpow.pop %v497
    %v499 = vmul.f32 %v440, 1.442695
    %v500 = vpow.pop %v499
    %v501 = vmul.f32 %v441, 1.442695
    %v502 = vpow.pop %v501
    %v503 = vmul.f32 %v442, 1.442695
    %v504 = vpow.pop %v503
    %v505 = vmul.f32 %v443, 1.442695
    %v506 = vpow.pop %v505
    %v507 = vmul.f32 %v444, 1.442695
    %v508 = vpow.pop %v507
    %v509 = vpack.c.bf16 %v446, %v446
    %v510 = vpack.c.bf16 %v448, %v448
    %v511 = vpack.c.bf16 %v450, %v450
    %v512 = vpack.c.bf16 %v452, %v452
    %v513 = vpack.c.bf16 %v454, %v454
    %v514 = vpack.c.bf16 %v456, %v456
    %v515 = vpack.c.bf16 %v458, %v458
    %v516 = vpack.c.bf16 %v460, %v460
    %v517 = vpack.c.bf16 %v462, %v462
    %v518 = vpack.c.bf16 %v464, %v464
    %v519 = vpack.c.bf16 %v466, %v466
    %v520 = vpack.c.bf16 %v468, %v468
    %v521 = vpack.c.bf16 %v470, %v470
    %v522 = vpack.c.bf16 %v472, %v472
    %v523 = vpack.c.bf16 %v474, %v474
    %v524 = vpack.c.bf16 %v476, %v476
    %v525 = vpack.c.bf16 %v478, %v478
    %v526 = vpack.c.bf16 %v480, %v480
    %v527 = vpack.c.bf16 %v482, %v482
    %v528 = vpack.c.bf16 %v484, %v484
    %v529 = vpack.c.bf16 %v486, %v486
    %v530 = vpack.c.bf16 %v488, %v488
    %v531 = vpack.c.bf16 %v490, %v490
    %v532 = vpack.c.bf16 %v492, %v492
    %v533 = vpack.c.bf16 %v494, %v494
    %v534 = vpack.c.bf16 %v496, %v496
    %v535 = vpack.c.bf16 %v498, %v498
    %v536 = vpack.c.bf16 %v500, %v500
    %v537 = vpack.c.bf16 %v502, %v502
    %v538 = vpack.c.bf16 %v504, %v504
    %v539 = vpack.c.bf16 %v506, %v506
    %v540 = vpack.c.bf16 %v508, %v508
    %541 = vst [vmem:[#allocation2] sm:$0xf] %v509
    %542 = vst [vmem:[#allocation2 + $0x4] sm:$0xf] %v510
    %543 = vst [vmem:[#allocation2 + $0x8] sm:$0xf] %v511
    %544 = vst [vmem:[#allocation2 + $0xc] sm:$0xf] %v512
    %545 = vst [vmem:[#allocation2 + $0x10] sm:$0xf] %v513
    %546 = vst [vmem:[#allocation2 + $0x14] sm:$0xf] %v514
    %547 = vst [vmem:[#allocation2 + $0x18] sm:$0xf] %v515
    %548 = vst [vmem:[#allocation2 + $0x1c] sm:$0xf] %v516
    %549 = vst [vmem:[#allocation2 + $0x20] sm:$0xf] %v517
    %550 = vst [vmem:[#allocation2 + $0x24] sm:$0xf] %v518
    %551 = vst [vmem:[#allocation2 + $0x28] sm:$0xf] %v519
    %552 = vst [vmem:[#allocation2 + $0x2c] sm:$0xf] %v520
    %553 = vst [vmem:[#allocation2 + $0x30] sm:$0xf] %v521
    %554 = vst [vmem:[#allocation2 + $0x34] sm:$0xf] %v522
    %555 = vst [vmem:[#allocation2 + $0x38] sm:$0xf] %v523
    %556 = vst [vmem:[#allocation2 + $0x3c] sm:$0xf] %v524
    %557 = vst [vmem:[#allocation2 + $0x40] sm:$0xf] %v525
    %558 = vst [vmem:[#allocation2 + $0x44] sm:$0xf] %v526
    %559 = vst [vmem:[#allocation2 + $0x48] sm:$0xf] %v527
    %560 = vst [vmem:[#allocation2 + $0x4c] sm:$0xf] %v528
    %561 = vst [vmem:[#allocation2 + $0x50] sm:$0xf] %v529
    %562 = vst [vmem:[#allocation2 + $0x54] sm:$0xf] %v530
    %563 = vst [vmem:[#allocation2 + $0x58] sm:$0xf] %v531
    %564 = vst [vmem:[#allocation2 + $0x5c] sm:$0xf] %v532
    %565 = vst [vmem:[#allocation2 + $0x60] sm:$0xf] %v533
    %566 = vst [vmem:[#allocation2 + $0x64] sm:$0xf] %v534
    %567 = vst [vmem:[#allocation2 + $0x68] sm:$0xf] %v535
    %568 = vst [vmem:[#allocation2 + $0x6c] sm:$0xf] %v536
    %569 = vst [vmem:[#allocation2 + $0x70] sm:$0xf] %v537
    %570 = vst [vmem:[#allocation2 + $0x74] sm:$0xf] %v538
    %571 = vst [vmem:[#allocation2 + $0x78] sm:$0xf] %v539
    %572 = vst [vmem:[#allocation2 + $0x7c] sm:$0xf] %v540
    %v573 = vld [vmem:[#allocation8] sm:$0xff]
    %v574 = vld [vmem:[#allocation8 + $0x8] sm:$0xff]
    %v575 = vld [vmem:[%s5] sm:$0xf]
    %v576 = vld [vmem:[%s5 + $0x4] sm:$0xf]
    %v577 = vld [vmem:[%s5 + $0x8] sm:$0xf]
    %v578 = vld [vmem:[%s5 + $0xc] sm:$0xf]
    %v579 = vld [vmem:[%s5 + $0x10] sm:$0xf]
    %v580 = vld [vmem:[%s5 + $0x14] sm:$0xf]
    %v581 = vld [vmem:[%s5 + $0x18] sm:$0xf]
    %v582 = vld [vmem:[%s5 + $0x1c] sm:$0xf]
    %v583 = vld [vmem:[%s5 + $0x20] sm:$0xf]
    %v584 = vld [vmem:[%s5 + $0x24] sm:$0xf]
    %v585 = vld [vmem:[%s5 + $0x28] sm:$0xf]
    %v586 = vld [vmem:[%s5 + $0x2c] sm:$0xf]
    %v587 = vld [vmem:[%s5 + $0x30] sm:$0xf]
    %v588 = vld [vmem:[%s5 + $0x34] sm:$0xf]
    %v589 = vld [vmem:[%s5 + $0x38] sm:$0xf]
    %v590 = vld [vmem:[%s5 + $0x3c] sm:$0xf]
    %v591 = vld [vmem:[%s6] sm:$0xf]
    %v592 = vld [vmem:[%s6 + $0x4] sm:$0xf]
    %v593 = vld [vmem:[%s6 + $0x8] sm:$0xf]
    %v594 = vld [vmem:[%s6 + $0xc] sm:$0xf]
    %v595 = vld [vmem:[%s6 + $0x10] sm:$0xf]
    %v596 = vld [vmem:[%s6 + $0x14] sm:$0xf]
    %v597 = vld [vmem:[%s6 + $0x18] sm:$0xf]
    %v598 = vld [vmem:[%s6 + $0x1c] sm:$0xf]
    %v599 = vld [vmem:[%s6 + $0x20] sm:$0xf]
    %v600 = vld [vmem:[%s6 + $0x24] sm:$0xf]
    %v601 = vld [vmem:[%s6 + $0x28] sm:$0xf]
    %v602 = vld [vmem:[%s6 + $0x2c] sm:$0xf]
    %v603 = vld [vmem:[%s6 + $0x30] sm:$0xf]
    %v604 = vld [vmem:[%s6 + $0x34] sm:$0xf]
    %v605 = vld [vmem:[%s6 + $0x38] sm:$0xf]
    %v606 = vld [vmem:[%s6 + $0x3c] sm:$0xf]
    %v607 = vld [vmem:[%s7] sm:$0x1]
    %v608 = vld [vmem:[#allocation10] sm:$0xf]
    %v609 = vld [vmem:[#allocation10 + $0x4] sm:$0xf]
    %v610 = vld [vmem:[#allocation10 + $0x8] sm:$0xf]
    %v611 = vld [vmem:[#allocation10 + $0xc] sm:$0xf]
    %v612 = vld [vmem:[#allocation10 + $0x10] sm:$0xf]
    %v613 = vld [vmem:[#allocation10 + $0x14] sm:$0xf]
    %v614 = vld [vmem:[#allocation10 + $0x18] sm:$0xf]
    %v615 = vld [vmem:[#allocation10 + $0x1c] sm:$0xf]
    %v616 = vld [vmem:[#allocation10 + $0x20] sm:$0xf]
    %v617 = vld [vmem:[#allocation10 + $0x24] sm:$0xf]
    %v618 = vld [vmem:[#allocation10 + $0x28] sm:$0xf]
    %v619 = vld [vmem:[#allocation10 + $0x2c] sm:$0xf]
    %v620 = vld [vmem:[#allocation10 + $0x30] sm:$0xf]
    %v621 = vld [vmem:[#allocation10 + $0x34] sm:$0xf]
    %v622 = vld [vmem:[#allocation10 + $0x38] sm:$0xf]
    %v623 = vld [vmem:[#allocation10 + $0x3c] sm:$0xf]
    %v624 = vld [vmem:[%s9] sm:$0x1]
    %v625 = vpack.c.bf16 %v574, %v573
    %v642 = vunpack.c.l.b16 %v575
    %v643 = vunpack.c.l.b16 %v576
    %v644 = vunpack.c.l.b16 %v577
    %v645 = vunpack.c.l.b16 %v578
    %v646 = vunpack.c.l.b16 %v579
    %v647 = vunpack.c.l.b16 %v580
    %v648 = vunpack.c.l.b16 %v581
    %v649 = vunpack.c.l.b16 %v582
    %v650 = vunpack.c.l.b16 %v583
    %v651 = vunpack.c.l.b16 %v584
    %v652 = vunpack.c.l.b16 %v585
    %v653 = vunpack.c.l.b16 %v586
    %v654 = vunpack.c.l.b16 %v587
    %v655 = vunpack.c.l.b16 %v588
    %v656 = vunpack.c.l.b16 %v589
    %v657 = vunpack.c.l.b16 %v590
    %v658 = vpack.c.b16 %v643, %v642
    %v659 = vpack.c.b16 %v645, %v644
    %v660 = vpack.c.b16 %v647, %v646
    %v661 = vpack.c.b16 %v649, %v648
    %v662 = vpack.c.b16 %v651, %v650
    %v663 = vpack.c.b16 %v653, %v652
    %v664 = vpack.c.b16 %v655, %v654
    %v665 = vpack.c.b16 %v657, %v656
    %674 = vmatpush.bf16.msra.mxu0 %v665
    %675 = vmatpush.bf16.msra.mxu0 %v664
    %676 = vmatpush.bf16.msra.mxu0 %v663
    %677 = vmatpush.bf16.msra.mxu0 %v662
    %678 = vmatpush.bf16.msra.mxu0 %v661
    %679 = vmatpush.bf16.msra.mxu0 %v660
    %680 = vmatpush.bf16.msra.mxu0 %v659
    %681 = vmatpush.bf16.msra.mxu0 %v658
    %682 = vmatmul.bf16.gmra.mxu0 %v625
    %v683 = vpop.f32.mrf.mxu0
    %v684 = vadd.f32 0.0, %v683
    %v685 = vpop.f32.mrf.mxu0
    %v686 = vadd.f32 0.0, %v685
    %687 = vdwg.mxu0
    %688 = vst [vmem:[#allocation3] sm:$0xff] %v684
    %689 = vst [vmem:[#allocation3 + $0x8] sm:$0xff] %v686
    %690 = vst [vmem:[#allocation4] sm:$0xff] 0.0
    %691 = vst [vmem:[#allocation4 + $0x8] sm:$0xff] 0.0
    %v692 = vld [vmem:[#allocation2] sm:$0xf]
    %v693 = vld [vmem:[#allocation2 + $0x4] sm:$0xf]
    %v694 = vld [vmem:[#allocation2 + $0x8] sm:$0xf]
    %v695 = vld [vmem:[#allocation2 + $0xc] sm:$0xf]
    %v696 = vld [vmem:[#allocation2 + $0x10] sm:$0xf]
    %v697 = vld [vmem:[#allocation2 + $0x14] sm:$0xf]
    %v698 = vld [vmem:[#allocation2 + $0x18] sm:$0xf]
    %v699 = vld [vmem:[#allocation2 + $0x1c] sm:$0xf]
    %v700 = vld [vmem:[#allocation2 + $0x20] sm:$0xf]
    %v701 = vld [vmem:[#allocation2 + $0x24] sm:$0xf]
    %v702 = vld [vmem:[#allocation2 + $0x28] sm:$0xf]
    %v703 = vld [vmem:[#allocation2 + $0x2c] sm:$0xf]
    %v704 = vld [vmem:[#allocation2 + $0x30] sm:$0xf]
    %v705 = vld [vmem:[#allocation2 + $0x34] sm:$0xf]
    %v706 = vld [vmem:[#allocation2 + $0x38] sm:$0xf]
    %v707 = vld [vmem:[#allocation2 + $0x3c] sm:$0xf]
    %v708 = vld [vmem:[#allocation2 + $0x40] sm:$0xf]
    %v709 = vld [vmem:[#allocation2 + $0x44] sm:$0xf]
    %v710 = vld [vmem:[#allocation2 + $0x48] sm:$0xf]
    %v711 = vld [vmem:[#allocation2 + $0x4c] sm:$0xf]
    %v712 = vld [vmem:[#allocation2 + $0x50] sm:$0xf]
    %v713 = vld [vmem:[#allocation2 + $0x54] sm:$0xf]
    %v714 = vld [vmem:[#allocation2 + $0x58] sm:$0xf]
    %v715 = vld [vmem:[#allocation2 + $0x5c] sm:$0xf]
    %v716 = vld [vmem:[#allocation2 + $0x60] sm:$0xf]
    %v717 = vld [vmem:[#allocation2 + $0x64] sm:$0xf]
    %v718 = vld [vmem:[#allocation2 + $0x68] sm:$0xf]
    %v719 = vld [vmem:[#allocation2 + $0x6c] sm:$0xf]
    %v720 = vld [vmem:[#allocation2 + $0x70] sm:$0xf]
    %v721 = vld [vmem:[#allocation2 + $0x74] sm:$0xf]
    %v722 = vld [vmem:[#allocation2 + $0x78] sm:$0xf]
    %v723 = vld [vmem:[#allocation2 + $0x7c] sm:$0xf]
    %v725 = vperm.slane %v607, 0
    %v759 = vunpack.c.l.b16 %v692
    %v760 = vunpack.c.l.b16 %v693
    %v761 = vunpack.c.l.b16 %v694
    %v762 = vunpack.c.l.b16 %v695
    %v763 = vunpack.c.l.b16 %v696
    %v764 = vunpack.c.l.b16 %v697
    %v765 = vunpack.c.l.b16 %v698
    %v766 = vunpack.c.l.b16 %v699
    %v767 = vunpack.c.l.b16 %v700
    %v768 = vunpack.c.l.b16 %v701
    %v769 = vunpack.c.l.b16 %v702
    %v770 = vunpack.c.l.b16 %v703
    %v771 = vunpack.c.l.b16 %v704
    %v772 = vunpack.c.l.b16 %v705
    %v773 = vunpack.c.l.b16 %v706
    %v774 = vunpack.c.l.b16 %v707
    %v775 = vunpack.c.l.b16 %v708
    %v776 = vunpack.c.l.b16 %v709
    %v777 = vunpack.c.l.b16 %v710
    %v778 = vunpack.c.l.b16 %v711
    %v779 = vunpack.c.l.b16 %v712
    %v780 = vunpack.c.l.b16 %v713
    %v781 = vunpack.c.l.b16 %v714
    %v782 = vunpack.c.l.b16 %v715
    %v783 = vunpack.c.l.b16 %v716
    %v784 = vunpack.c.l.b16 %v717
    %v785 = vunpack.c.l.b16 %v718
    %v786 = vunpack.c.l.b16 %v719
    %v787 = vunpack.c.l.b16 %v720
    %v788 = vunpack.c.l.b16 %v721
    %v789 = vunpack.c.l.b16 %v722
    %v790 = vunpack.c.l.b16 %v723
    %v791 = vpack.c.b16 %v760, %v759
    %v792 = vpack.c.b16 %v762, %v761
    %v793 = vpack.c.b16 %v764, %v763
    %v794 = vpack.c.b16 %v766, %v765
    %v795 = vpack.c.b16 %v768, %v767
    %v796 = vpack.c.b16 %v770, %v769
    %v797 = vpack.c.b16 %v772, %v771
    %v798 = vpack.c.b16 %v774, %v773
    %v799 = vpack.c.b16 %v776, %v775
    %v800 = vpack.c.b16 %v778, %v777
    %v801 = vpack.c.b16 %v780, %v779
    %v802 = vpack.c.b16 %v782, %v781
    %v803 = vpack.c.b16 %v784, %v783
    %v804 = vpack.c.b16 %v786, %v785
    %v805 = vpack.c.b16 %v788, %v787
    %v806 = vpack.c.b16 %v790, %v789
    %v839 = vunpack.c.l.b16 %v591
    %v840 = vunpack.c.l.b16 %v592
    %v841 = vunpack.c.l.b16 %v593
    %v842 = vunpack.c.l.b16 %v594
    %v843 = vunpack.c.l.b16 %v595
    %v844 = vunpack.c.l.b16 %v596
    %v845 = vunpack.c.l.b16 %v597
    %v846 = vunpack.c.l.b16 %v598
    %v847 = vunpack.c.l.b16 %v599
    %v848 = vunpack.c.l.b16 %v600
    %v849 = vunpack.c.l.b16 %v601
    %v850 = vunpack.c.l.b16 %v602
    %v851 = vunpack.c.l.b16 %v603
    %v852 = vunpack.c.l.b16 %v604
    %v853 = vunpack.c.l.b16 %v605
    %v854 = vunpack.c.l.b16 %v606
    %v855 = vpack.c.b16 %v840, %v839
    %v856 = vpack.c.b16 %v842, %v841
    %v857 = vpack.c.b16 %v844, %v843
    %v858 = vpack.c.b16 %v846, %v845
    %v859 = vpack.c.b16 %v848, %v847
    %v860 = vpack.c.b16 %v850, %v849
    %v861 = vpack.c.b16 %v852, %v851
    %v862 = vpack.c.b16 %v854, %v853
    %871 = vmatpush.bf16.msra.mxu0 %v862
    %872 = vmatpush.bf16.msra.mxu0 %v861
    %873 = vmatpush.bf16.msra.mxu0 %v860
    %874 = vmatpush.bf16.msra.mxu0 %v859
    %875 = vmatpush.bf16.msra.mxu0 %v858
    %876 = vmatpush.bf16.msra.mxu0 %v857
    %877 = vmatpush.bf16.msra.mxu0 %v856
    %878 = vmatpush.bf16.msra.mxu0 %v855
    %879 = vmatmul.bf16.gmra.mxu0 %v791
    %v880 = vpop.f32.mrf.mxu0
    %v881 = vadd.f32 %v725, %v880
    %v882 = vpop.f32.mrf.mxu0
    %v883 = vadd.f32 %v725, %v882
    %884 = vmatmul.bf16.gmra.mxu0 %v792
    %v885 = vpop.f32.mrf.mxu0
    %v886 = vadd.f32 %v725, %v885
    %v887 = vpop.f32.mrf.mxu0
    %v888 = vadd.f32 %v725, %v887
    %889 = vmatmul.bf16.gmra.mxu0 %v793
    %v890 = vpop.f32.mrf.mxu0
    %v891 = vadd.f32 %v725, %v890
    %v892 = vpop.f32.mrf.mxu0
    %v893 = vadd.f32 %v725, %v892
    %894 = vmatmul.bf16.gmra.mxu0 %v794
    %v895 = vpop.f32.mrf.mxu0
    %v896 = vadd.f32 %v725, %v895
    %v897 = vpop.f32.mrf.mxu0
    %v898 = vadd.f32 %v725, %v897
    %899 = vmatmul.bf16.gmra.mxu0 %v795
    %v900 = vpop.f32.mrf.mxu0
    %v901 = vadd.f32 %v725, %v900
    %v902 = vpop.f32.mrf.mxu0
    %v903 = vadd.f32 %v725, %v902
    %904 = vmatmul.bf16.gmra.mxu0 %v796
    %v905 = vpop.f32.mrf.mxu0
    %v906 = vadd.f32 %v725, %v905
    %v907 = vpop.f32.mrf.mxu0
    %v908 = vadd.f32 %v725, %v907
    %909 = vmatmul.bf16.gmra.mxu0 %v797
    %v910 = vpop.f32.mrf.mxu0
    %v911 = vadd.f32 %v725, %v910
    %v912 = vpop.f32.mrf.mxu0
    %v913 = vadd.f32 %v725, %v912
    %914 = vmatmul.bf16.gmra.mxu0 %v798
    %v915 = vpop.f32.mrf.mxu0
    %v916 = vadd.f32 %v725, %v915
    %v917 = vpop.f32.mrf.mxu0
    %v918 = vadd.f32 %v725, %v917
    %919 = vmatmul.bf16.gmra.mxu0 %v799
    %v920 = vpop.f32.mrf.mxu0
    %v921 = vadd.f32 %v725, %v920
    %v922 = vpop.f32.mrf.mxu0
    %v923 = vadd.f32 %v725, %v922
    %924 = vmatmul.bf16.gmra.mxu0 %v800
    %v925 = vpop.f32.mrf.mxu0
    %v926 = vadd.f32 %v725, %v925
    %v927 = vpop.f32.mrf.mxu0
    %v928 = vadd.f32 %v725, %v927
    %929 = vmatmul.bf16.gmra.mxu0 %v801
    %v930 = vpop.f32.mrf.mxu0
    %v931 = vadd.f32 %v725, %v930
    %v932 = vpop.f32.mrf.mxu0
    %v933 = vadd.f32 %v725, %v932
    %934 = vmatmul.bf16.gmra.mxu0 %v802
    %v935 = vpop.f32.mrf.mxu0
    %v936 = vadd.f32 %v725, %v935
    %v937 = vpop.f32.mrf.mxu0
    %v938 = vadd.f32 %v725, %v937
    %939 = vmatmul.bf16.gmra.mxu0 %v803
    %v940 = vpop.f32.mrf.mxu0
    %v941 = vadd.f32 %v725, %v940
    %v942 = vpop.f32.mrf.mxu0
    %v943 = vadd.f32 %v725, %v942
    %944 = vmatmul.bf16.gmra.mxu0 %v804
    %v945 = vpop.f32.mrf.mxu0
    %v946 = vadd.f32 %v725, %v945
    %v947 = vpop.f32.mrf.mxu0
    %v948 = vadd.f32 %v725, %v947
    %949 = vmatmul.bf16.gmra.mxu0 %v805
    %v950 = vpop.f32.mrf.mxu0
    %v951 = vadd.f32 %v725, %v950
    %v952 = vpop.f32.mrf.mxu0
    %v953 = vadd.f32 %v725, %v952
    %954 = vmatmul.bf16.gmra.mxu0 %v806
    %v955 = vpop.f32.mrf.mxu0
    %v956 = vadd.f32 %v725, %v955
    %v957 = vpop.f32.mrf.mxu0
    %v958 = vadd.f32 %v725, %v957
    %959 = vdwg.mxu0
    %v960 = vmax.f32 %v881, 0.0
    %v961 = vmax.f32 %v883, 0.0
    %v962 = vmax.f32 %v886, 0.0
    %v963 = vmax.f32 %v888, 0.0
    %v964 = vmax.f32 %v891, 0.0
    %v965 = vmax.f32 %v893, 0.0
    %v966 = vmax.f32 %v896, 0.0
    %v967 = vmax.f32 %v898, 0.0
    %v968 = vmax.f32 %v901, 0.0
    %v969 = vmax.f32 %v903, 0.0
    %v970 = vmax.f32 %v906, 0.0
    %v971 = vmax.f32 %v908, 0.0
    %v972 = vmax.f32 %v911, 0.0
    %v973 = vmax.f32 %v913, 0.0
    %v974 = vmax.f32 %v916, 0.0
    %v975 = vmax.f32 %v918, 0.0
    %v976 = vmax.f32 %v921, 0.0
    %v977 = vmax.f32 %v923, 0.0
    %v978 = vmax.f32 %v926, 0.0
    %v979 = vmax.f32 %v928, 0.0
    %v980 = vmax.f32 %v931, 0.0
    %v981 = vmax.f32 %v933, 0.0
    %v982 = vmax.f32 %v936, 0.0
    %v983 = vmax.f32 %v938, 0.0
    %v984 = vmax.f32 %v941, 0.0
    %v985 = vmax.f32 %v943, 0.0
    %v986 = vmax.f32 %v946, 0.0
    %v987 = vmax.f32 %v948, 0.0
    %v988 = vmax.f32 %v951, 0.0
    %v989 = vmax.f32 %v953, 0.0
    %v990 = vmax.f32 %v956, 0.0
    %v991 = vmax.f32 %v958, 0.0
    %v992 = vand.u32 2147483647, %v881
    %v993 = vand.u32 2147483647, %v883
    %v994 = vand.u32 2147483647, %v886
    %v995 = vand.u32 2147483647, %v888
    %v996 = vand.u32 2147483647, %v891
    %v997 = vand.u32 2147483647, %v893
    %v998 = vand.u32 2147483647, %v896
    %v999 = vand.u32 2147483647, %v898
    %v1000 = vand.u32 2147483647, %v901
    %v1001 = vand.u32 2147483647, %v903
    %v1002 = vand.u32 2147483647, %v906
    %v1003 = vand.u32 2147483647, %v908
    %v1004 = vand.u32 2147483647, %v911
    %v1005 = vand.u32 2147483647, %v913
    %v1006 = vand.u32 2147483647, %v916
    %v1007 = vand.u32 2147483647, %v918
    %v1008 = vand.u32 2147483647, %v921
    %v1009 = vand.u32 2147483647, %v923
    %v1010 = vand.u32 2147483647, %v926
    %v1011 = vand.u32 2147483647, %v928
    %v1012 = vand.u32 2147483647, %v931
    %v1013 = vand.u32 2147483647, %v933
    %v1014 = vand.u32 2147483647, %v936
    %v1015 = vand.u32 2147483647, %v938
    %v1016 = vand.u32 2147483647, %v941
    %v1017 = vand.u32 2147483647, %v943
    %v1018 = vand.u32 2147483647, %v946
    %v1019 = vand.u32 2147483647, %v948
    %v1020 = vand.u32 2147483647, %v951
    %v1021 = vand.u32 2147483647, %v953
    %v1022 = vand.u32 2147483647, %v956
    %v1023 = vand.u32 2147483647, %v958
    %v1024 = vsub.f32 0.0, %v992
    %v1025 = vsub.f32 0.0, %v993
    %v1026 = vsub.f32 0.0, %v994
    %v1027 = vsub.f32 0.0, %v995
    %v1028 = vsub.f32 0.0, %v996
    %v1029 = vsub.f32 0.0, %v997
    %v1030 = vsub.f32 0.0, %v998
    %v1031 = vsub.f32 0.0, %v999
    %v1032 = vsub.f32 0.0, %v1000
    %v1033 = vsub.f32 0.0, %v1001
    %v1034 = vsub.f32 0.0, %v1002
    %v1035 = vsub.f32 0.0, %v1003
    %v1036 = vsub.f32 0.0, %v1004
    %v1037 = vsub.f32 0.0, %v1005
    %v1038 = vsub.f32 0.0, %v1006
    %v1039 = vsub.f32 0.0, %v1007
    %v1040 = vsub.f32 0.0, %v1008
    %v1041 = vsub.f32 0.0, %v1009
    %v1042 = vsub.f32 0.0, %v1010
    %v1043 = vsub.f32 0.0, %v1011
    %v1044 = vsub.f32 0.0, %v1012
    %v1045 = vsub.f32 0.0, %v1013
    %v1046 = vsub.f32 0.0, %v1014
    %v1047 = vsub.f32 0.0, %v1015
    %v1048 = vsub.f32 0.0, %v1016
    %v1049 = vsub.f32 0.0, %v1017
    %v1050 = vsub.f32 0.0, %v1018
    %v1051 = vsub.f32 0.0, %v1019
    %v1052 = vsub.f32 0.0, %v1020
    %v1053 = vsub.f32 0.0, %v1021
    %v1054 = vsub.f32 0.0, %v1022
    %v1055 = vsub.f32 0.0, %v1023
    %v1056 = vmul.f32 %v1024, 1.442695
    %v1057 = vpow.pop %v1056
    %v1058 = vmul.f32 %v1025, 1.442695
    %v1059 = vpow.pop %v1058
    %v1060 = vmul.f32 %v1026, 1.442695
    %v1061 = vpow.pop %v1060
    %v1062 = vmul.f32 %v1027, 1.442695
    %v1063 = vpow.pop %v1062
    %v1064 = vmul.f32 %v1028, 1.442695
    %v1065 = vpow.pop %v1064
    %v1066 = vmul.f32 %v1029, 1.442695
    %v1067 = vpow.pop %v1066
    %v1068 = vmul.f32 %v1030, 1.442695
    %v1069 = vpow.pop %v1068
    %v1070 = vmul.f32 %v1031, 1.442695
    %v1071 = vpow.pop %v1070
    %v1072 = vmul.f32 %v1032, 1.442695
    %v1073 = vpow.pop %v1072
    %v1074 = vmul.f32 %v1033, 1.442695
    %v1075 = vpow.pop %v1074
    %v1076 = vmul.f32 %v1034, 1.442695
    %v1077 = vpow.pop %v1076
    %v1078 = vmul.f32 %v1035, 1.442695
    %v1079 = vpow.pop %v1078
    %v1080 = vmul.f32 %v1036, 1.442695
    %v1081 = vpow.pop %v1080
    %v1082 = vmul.f32 %v1037, 1.442695
    %v1083 = vpow.pop %v1082
    %v1084 = vmul.f32 %v1038, 1.442695
    %v1085 = vpow.pop %v1084
    %v1086 = vmul.f32 %v1039, 1.442695
    %v1087 = vpow.pop %v1086
    %v1088 = vmul.f32 %v1040, 1.442695
    %v1089 = vpow.pop %v1088
    %v1090 = vmul.f32 %v1041, 1.442695
    %v1091 = vpow.pop %v1090
    %v1092 = vmul.f32 %v1042, 1.442695
    %v1093 = vpow.pop %v1092
    %v1094 = vmul.f32 %v1043, 1.442695
    %v1095 = vpow.pop %v1094
    %v1096 = vmul.f32 %v1044, 1.442695
    %v1097 = vpow.pop %v1096
    %v1098 = vmul.f32 %v1045, 1.442695
    %v1099 = vpow.pop %v1098
    %v1100 = vmul.f32 %v1046, 1.442695
    %v1101 = vpow.pop %v1100
    %v1102 = vmul.f32 %v1047, 1.442695
    %v1103 = vpow.pop %v1102
    %v1104 = vmul.f32 %v1048, 1.442695
    %v1105 = vpow.pop %v1104
    %v1106 = vmul.f32 %v1049, 1.442695
    %v1107 = vpow.pop %v1106
    %v1108 = vmul.f32 %v1050, 1.442695
    %v1109 = vpow.pop %v1108
    %v1110 = vmul.f32 %v1051, 1.442695
    %v1111 = vpow.pop %v1110
    %v1112 = vmul.f32 %v1052, 1.442695
    %v1113 = vpow.pop %v1112
    %v1114 = vmul.f32 %v1053, 1.442695
    %v1115 = vpow.pop %v1114
    %v1116 = vmul.f32 %v1054, 1.442695
    %v1117 = vpow.pop %v1116
    %v1118 = vmul.f32 %v1055, 1.442695
    %v1119 = vpow.pop %v1118
    %v1120 = vadd.f32 %v1057, 1.0
    %v1121 = vlog2.pop %v1120
    %v1122 = vmul.f32 %v1121, 0.6931472
    %v1123 = vmul.f32 -0.5, %v1057
    %v1124 = vadd.f32 %v1123, 1.0
    %v1125 = vmul.f32 %v1124, %v1057
    %v1126 = vand.u32 2147483647, %v1057
    %vm1127 = vcmp.lt.f32.partialorder %v1126, 0.0004427343
    %v1128 = vsel %vm1127, %v1125, %v1122
    %v1129 = vadd.f32 %v1059, 1.0
    %v1130 = vlog2.pop %v1129
    %v1131 = vmul.f32 %v1130, 0.6931472
    %v1132 = vmul.f32 -0.5, %v1059
    %v1133 = vadd.f32 %v1132, 1.0
    %v1134 = vmul.f32 %v1133, %v1059
    %v1135 = vand.u32 2147483647, %v1059
    %vm1136 = vcmp.lt.f32.partialorder %v1135, 0.0004427343
    %v1137 = vsel %vm1136, %v1134, %v1131
    %v1138 = vadd.f32 %v1061, 1.0
    %v1139 = vlog2.pop %v1138
    %v1140 = vmul.f32 %v1139, 0.6931472
    %v1141 = vmul.f32 -0.5, %v1061
    %v1142 = vadd.f32 %v1141, 1.0
    %v1143 = vmul.f32 %v1142, %v1061
    %v1144 = vand.u32 2147483647, %v1061
    %vm1145 = vcmp.lt.f32.partialorder %v1144, 0.0004427343
    %v1146 = vsel %vm1145, %v1143, %v1140
    %v1147 = vadd.f32 %v1063, 1.0
    %v1148 = vlog2.pop %v1147
    %v1149 = vmul.f32 %v1148, 0.6931472
    %v1150 = vmul.f32 -0.5, %v1063
    %v1151 = vadd.f32 %v1150, 1.0
    %v1152 = vmul.f32 %v1151, %v1063
    %v1153 = vand.u32 2147483647, %v1063
    %vm1154 = vcmp.lt.f32.partialorder %v1153, 0.0004427343
    %v1155 = vsel %vm1154, %v1152, %v1149
    %v1156 = vadd.f32 %v1065, 1.0
    %v1157 = vlog2.pop %v1156
    %v1158 = vmul.f32 %v1157, 0.6931472
    %v1159 = vmul.f32 -0.5, %v1065
    %v1160 = vadd.f32 %v1159, 1.0
    %v1161 = vmul.f32 %v1160, %v1065
    %v1162 = vand.u32 2147483647, %v1065
    %vm1163 = vcmp.lt.f32.partialorder %v1162, 0.0004427343
    %v1164 = vsel %vm1163, %v1161, %v1158
    %v1165 = vadd.f32 %v1067, 1.0
    %v1166 = vlog2.pop %v1165
    %v1167 = vmul.f32 %v1166, 0.6931472
    %v1168 = vmul.f32 -0.5, %v1067
    %v1169 = vadd.f32 %v1168, 1.0
    %v1170 = vmul.f32 %v1169, %v1067
    %v1171 = vand.u32 2147483647, %v1067
    %vm1172 = vcmp.lt.f32.partialorder %v1171, 0.0004427343
    %v1173 = vsel %vm1172, %v1170, %v1167
    %v1174 = vadd.f32 %v1069, 1.0
    %v1175 = vlog2.pop %v1174
    %v1176 = vmul.f32 %v1175, 0.6931472
    %v1177 = vmul.f32 -0.5, %v1069
    %v1178 = vadd.f32 %v1177, 1.0
    %v1179 = vmul.f32 %v1178, %v1069
    %v1180 = vand.u32 2147483647, %v1069
    %vm1181 = vcmp.lt.f32.partialorder %v1180, 0.0004427343
    %v1182 = vsel %vm1181, %v1179, %v1176
    %v1183 = vadd.f32 %v1071, 1.0
    %v1184 = vlog2.pop %v1183
    %v1185 = vmul.f32 %v1184, 0.6931472
    %v1186 = vmul.f32 -0.5, %v1071
    %v1187 = vadd.f32 %v1186, 1.0
    %v1188 = vmul.f32 %v1187, %v1071
    %v1189 = vand.u32 2147483647, %v1071
    %vm1190 = vcmp.lt.f32.partialorder %v1189, 0.0004427343
    %v1191 = vsel %vm1190, %v1188, %v1185
    %v1192 = vadd.f32 %v1073, 1.0
    %v1193 = vlog2.pop %v1192
    %v1194 = vmul.f32 %v1193, 0.6931472
    %v1195 = vmul.f32 -0.5, %v1073
    %v1196 = vadd.f32 %v1195, 1.0
    %v1197 = vmul.f32 %v1196, %v1073
    %v1198 = vand.u32 2147483647, %v1073
    %vm1199 = vcmp.lt.f32.partialorder %v1198, 0.0004427343
    %v1200 = vsel %vm1199, %v1197, %v1194
    %v1201 = vadd.f32 %v1075, 1.0
    %v1202 = vlog2.pop %v1201
    %v1203 = vmul.f32 %v1202, 0.6931472
    %v1204 = vmul.f32 -0.5, %v1075
    %v1205 = vadd.f32 %v1204, 1.0
    %v1206 = vmul.f32 %v1205, %v1075
    %v1207 = vand.u32 2147483647, %v1075
    %vm1208 = vcmp.lt.f32.partialorder %v1207, 0.0004427343
    %v1209 = vsel %vm1208, %v1206, %v1203
    %v1210 = vadd.f32 %v1077, 1.0
    %v1211 = vlog2.pop %v1210
    %v1212 = vmul.f32 %v1211, 0.6931472
    %v1213 = vmul.f32 -0.5, %v1077
    %v1214 = vadd.f32 %v1213, 1.0
    %v1215 = vmul.f32 %v1214, %v1077
    %v1216 = vand.u32 2147483647, %v1077
    %vm1217 = vcmp.lt.f32.partialorder %v1216, 0.0004427343
    %v1218 = vsel %vm1217, %v1215, %v1212
    %v1219 = vadd.f32 %v1079, 1.0
    %v1220 = vlog2.pop %v1219
    %v1221 = vmul.f32 %v1220, 0.6931472
    %v1222 = vmul.f32 -0.5, %v1079
    %v1223 = vadd.f32 %v1222, 1.0
    %v1224 = vmul.f32 %v1223, %v1079
    %v1225 = vand.u32 2147483647, %v1079
    %vm1226 = vcmp.lt.f32.partialorder %v1225, 0.0004427343
    %v1227 = vsel %vm1226, %v1224, %v1221
    %v1228 = vadd.f32 %v1081, 1.0
    %v1229 = vlog2.pop %v1228
    %v1230 = vmul.f32 %v1229, 0.6931472
    %v1231 = vmul.f32 -0.5, %v1081
    %v1232 = vadd.f32 %v1231, 1.0
    %v1233 = vmul.f32 %v1232, %v1081
    %v1234 = vand.u32 2147483647, %v1081
    %vm1235 = vcmp.lt.f32.partialorder %v1234, 0.0004427343
    %v1236 = vsel %vm1235, %v1233, %v1230
    %v1237 = vadd.f32 %v1083, 1.0
    %v1238 = vlog2.pop %v1237
    %v1239 = vmul.f32 %v1238, 0.6931472
    %v1240 = vmul.f32 -0.5, %v1083
    %v1241 = vadd.f32 %v1240, 1.0
    %v1242 = vmul.f32 %v1241, %v1083
    %v1243 = vand.u32 2147483647, %v1083
    %vm1244 = vcmp.lt.f32.partialorder %v1243, 0.0004427343
    %v1245 = vsel %vm1244, %v1242, %v1239
    %v1246 = vadd.f32 %v1085, 1.0
    %v1247 = vlog2.pop %v1246
    %v1248 = vmul.f32 %v1247, 0.6931472
    %v1249 = vmul.f32 -0.5, %v1085
    %v1250 = vadd.f32 %v1249, 1.0
    %v1251 = vmul.f32 %v1250, %v1085
    %v1252 = vand.u32 2147483647, %v1085
    %vm1253 = vcmp.lt.f32.partialorder %v1252, 0.0004427343
    %v1254 = vsel %vm1253, %v1251, %v1248
    %v1255 = vadd.f32 %v1087, 1.0
    %v1256 = vlog2.pop %v1255
    %v1257 = vmul.f32 %v1256, 0.6931472
    %v1258 = vmul.f32 -0.5, %v1087
    %v1259 = vadd.f32 %v1258, 1.0
    %v1260 = vmul.f32 %v1259, %v1087
    %v1261 = vand.u32 2147483647, %v1087
    %vm1262 = vcmp.lt.f32.partialorder %v1261, 0.0004427343
    %v1263 = vsel %vm1262, %v1260, %v1257
    %v1264 = vadd.f32 %v1089, 1.0
    %v1265 = vlog2.pop %v1264
    %v1266 = vmul.f32 %v1265, 0.6931472
    %v1267 = vmul.f32 -0.5, %v1089
    %v1268 = vadd.f32 %v1267, 1.0
    %v1269 = vmul.f32 %v1268, %v1089
    %v1270 = vand.u32 2147483647, %v1089
    %vm1271 = vcmp.lt.f32.partialorder %v1270, 0.0004427343
    %v1272 = vsel %vm1271, %v1269, %v1266
    %v1273 = vadd.f32 %v1091, 1.0
    %v1274 = vlog2.pop %v1273
    %v1275 = vmul.f32 %v1274, 0.6931472
    %v1276 = vmul.f32 -0.5, %v1091
    %v1277 = vadd.f32 %v1276, 1.0
    %v1278 = vmul.f32 %v1277, %v1091
    %v1279 = vand.u32 2147483647, %v1091
    %vm1280 = vcmp.lt.f32.partialorder %v1279, 0.0004427343
    %v1281 = vsel %vm1280, %v1278, %v1275
    %v1282 = vadd.f32 %v1093, 1.0
    %v1283 = vlog2.pop %v1282
    %v1284 = vmul.f32 %v1283, 0.6931472
    %v1285 = vmul.f32 -0.5, %v1093
    %v1286 = vadd.f32 %v1285, 1.0
    %v1287 = vmul.f32 %v1286, %v1093
    %v1288 = vand.u32 2147483647, %v1093
    %vm1289 = vcmp.lt.f32.partialorder %v1288, 0.0004427343
    %v1290 = vsel %vm1289, %v1287, %v1284
    %v1291 = vadd.f32 %v1095, 1.0
    %v1292 = vlog2.pop %v1291
    %v1293 = vmul.f32 %v1292, 0.6931472
    %v1294 = vmul.f32 -0.5, %v1095
    %v1295 = vadd.f32 %v1294, 1.0
    %v1296 = vmul.f32 %v1295, %v1095
    %v1297 = vand.u32 2147483647, %v1095
    %vm1298 = vcmp.lt.f32.partialorder %v1297, 0.0004427343
    %v1299 = vsel %vm1298, %v1296, %v1293
    %v1300 = vadd.f32 %v1097, 1.0
    %v1301 = vlog2.pop %v1300
    %v1302 = vmul.f32 %v1301, 0.6931472
    %v1303 = vmul.f32 -0.5, %v1097
    %v1304 = vadd.f32 %v1303, 1.0
    %v1305 = vmul.f32 %v1304, %v1097
    %v1306 = vand.u32 2147483647, %v1097
    %vm1307 = vcmp.lt.f32.partialorder %v1306, 0.0004427343
    %v1308 = vsel %vm1307, %v1305, %v1302
    %v1309 = vadd.f32 %v1099, 1.0
    %v1310 = vlog2.pop %v1309
    %v1311 = vmul.f32 %v1310, 0.6931472
    %v1312 = vmul.f32 -0.5, %v1099
    %v1313 = vadd.f32 %v1312, 1.0
    %v1314 = vmul.f32 %v1313, %v1099
    %v1315 = vand.u32 2147483647, %v1099
    %vm1316 = vcmp.lt.f32.partialorder %v1315, 0.0004427343
    %v1317 = vsel %vm1316, %v1314, %v1311
    %v1318 = vadd.f32 %v1101, 1.0
    %v1319 = vlog2.pop %v1318
    %v1320 = vmul.f32 %v1319, 0.6931472
    %v1321 = vmul.f32 -0.5, %v1101
    %v1322 = vadd.f32 %v1321, 1.0
    %v1323 = vmul.f32 %v1322, %v1101
    %v1324 = vand.u32 2147483647, %v1101
    %vm1325 = vcmp.lt.f32.partialorder %v1324, 0.0004427343
    %v1326 = vsel %vm1325, %v1323, %v1320
    %v1327 = vadd.f32 %v1103, 1.0
    %v1328 = vlog2.pop %v1327
    %v1329 = vmul.f32 %v1328, 0.6931472
    %v1330 = vmul.f32 -0.5, %v1103
    %v1331 = vadd.f32 %v1330, 1.0
    %v1332 = vmul.f32 %v1331, %v1103
    %v1333 = vand.u32 2147483647, %v1103
    %vm1334 = vcmp.lt.f32.partialorder %v1333, 0.0004427343
    %v1335 = vsel %vm1334, %v1332, %v1329
    %v1336 = vadd.f32 %v1105, 1.0
    %v1337 = vlog2.pop %v1336
    %v1338 = vmul.f32 %v1337, 0.6931472
    %v1339 = vmul.f32 -0.5, %v1105
    %v1340 = vadd.f32 %v1339, 1.0
    %v1341 = vmul.f32 %v1340, %v1105
    %v1342 = vand.u32 2147483647, %v1105
    %vm1343 = vcmp.lt.f32.partialorder %v1342, 0.0004427343
    %v1344 = vsel %vm1343, %v1341, %v1338
    %v1345 = vadd.f32 %v1107, 1.0
    %v1346 = vlog2.pop %v1345
    %v1347 = vmul.f32 %v1346, 0.6931472
    %v1348 = vmul.f32 -0.5, %v1107
    %v1349 = vadd.f32 %v1348, 1.0
    %v1350 = vmul.f32 %v1349, %v1107
    %v1351 = vand.u32 2147483647, %v1107
    %vm1352 = vcmp.lt.f32.partialorder %v1351, 0.0004427343
    %v1353 = vsel %vm1352, %v1350, %v1347
    %v1354 = vadd.f32 %v1109, 1.0
    %v1355 = vlog2.pop %v1354
    %v1356 = vmul.f32 %v1355, 0.6931472
    %v1357 = vmul.f32 -0.5, %v1109
    %v1358 = vadd.f32 %v1357, 1.0
    %v1359 = vmul.f32 %v1358, %v1109
    %v1360 = vand.u32 2147483647, %v1109
    %vm1361 = vcmp.lt.f32.partialorder %v1360, 0.0004427343
    %v1362 = vsel %vm1361, %v1359, %v1356
    %v1363 = vadd.f32 %v1111, 1.0
    %v1364 = vlog2.pop %v1363
    %v1365 = vmul.f32 %v1364, 0.6931472
    %v1366 = vmul.f32 -0.5, %v1111
    %v1367 = vadd.f32 %v1366, 1.0
    %v1368 = vmul.f32 %v1367, %v1111
    %v1369 = vand.u32 2147483647, %v1111
    %vm1370 = vcmp.lt.f32.partialorder %v1369, 0.0004427343
    %v1371 = vsel %vm1370, %v1368, %v1365
    %v1372 = vadd.f32 %v1113, 1.0
    %v1373 = vlog2.pop %v1372
    %v1374 = vmul.f32 %v1373, 0.6931472
    %v1375 = vmul.f32 -0.5, %v1113
    %v1376 = vadd.f32 %v1375, 1.0
    %v1377 = vmul.f32 %v1376, %v1113
    %v1378 = vand.u32 2147483647, %v1113
    %vm1379 = vcmp.lt.f32.partialorder %v1378, 0.0004427343
    %v1380 = vsel %vm1379, %v1377, %v1374
    %v1381 = vadd.f32 %v1115, 1.0
    %v1382 = vlog2.pop %v1381
    %v1383 = vmul.f32 %v1382, 0.6931472
    %v1384 = vmul.f32 -0.5, %v1115
    %v1385 = vadd.f32 %v1384, 1.0
    %v1386 = vmul.f32 %v1385, %v1115
    %v1387 = vand.u32 2147483647, %v1115
    %vm1388 = vcmp.lt.f32.partialorder %v1387, 0.0004427343
    %v1389 = vsel %vm1388, %v1386, %v1383
    %v1390 = vadd.f32 %v1117, 1.0
    %v1391 = vlog2.pop %v1390
    %v1392 = vmul.f32 %v1391, 0.6931472
    %v1393 = vmul.f32 -0.5, %v1117
    %v1394 = vadd.f32 %v1393, 1.0
    %v1395 = vmul.f32 %v1394, %v1117
    %v1396 = vand.u32 2147483647, %v1117
    %vm1397 = vcmp.lt.f32.partialorder %v1396, 0.0004427343
    %v1398 = vsel %vm1397, %v1395, %v1392
    %v1399 = vadd.f32 %v1119, 1.0
    %v1400 = vlog2.pop %v1399
    %v1401 = vmul.f32 %v1400, 0.6931472
    %v1402 = vmul.f32 -0.5, %v1119
    %v1403 = vadd.f32 %v1402, 1.0
    %v1404 = vmul.f32 %v1403, %v1119
    %v1405 = vand.u32 2147483647, %v1119
    %vm1406 = vcmp.lt.f32.partialorder %v1405, 0.0004427343
    %v1407 = vsel %vm1406, %v1404, %v1401
    %v1408 = vadd.f32 %v960, %v1128
    %v1409 = vadd.f32 %v961, %v1137
    %v1410 = vadd.f32 %v962, %v1146
    %v1411 = vadd.f32 %v963, %v1155
    %v1412 = vadd.f32 %v964, %v1164
    %v1413 = vadd.f32 %v965, %v1173
    %v1414 = vadd.f32 %v966, %v1182
    %v1415 = vadd.f32 %v967, %v1191
    %v1416 = vadd.f32 %v968, %v1200
    %v1417 = vadd.f32 %v969, %v1209
    %v1418 = vadd.f32 %v970, %v1218
    %v1419 = vadd.f32 %v971, %v1227
    %v1420 = vadd.f32 %v972, %v1236
    %v1421 = vadd.f32 %v973, %v1245
    %v1422 = vadd.f32 %v974, %v1254
    %v1423 = vadd.f32 %v975, %v1263
    %v1424 = vadd.f32 %v976, %v1272
    %v1425 = vadd.f32 %v977, %v1281
    %v1426 = vadd.f32 %v978, %v1290
    %v1427 = vadd.f32 %v979, %v1299
    %v1428 = vadd.f32 %v980, %v1308
    %v1429 = vadd.f32 %v981, %v1317
    %v1430 = vadd.f32 %v982, %v1326
    %v1431 = vadd.f32 %v983, %v1335
    %v1432 = vadd.f32 %v984, %v1344
    %v1433 = vadd.f32 %v985, %v1353
    %v1434 = vadd.f32 %v986, %v1362
    %v1435 = vadd.f32 %v987, %v1371
    %v1436 = vadd.f32 %v988, %v1380
    %v1437 = vadd.f32 %v989, %v1389
    %v1438 = vadd.f32 %v990, %v1398
    %v1439 = vadd.f32 %v991, %v1407
    %v1440 = vpack.c.bf16 %v1409, %v1408
    %v1441 = vpack.c.bf16 %v1411, %v1410
    %v1442 = vpack.c.bf16 %v1413, %v1412
    %v1443 = vpack.c.bf16 %v1415, %v1414
    %v1444 = vpack.c.bf16 %v1417, %v1416
    %v1445 = vpack.c.bf16 %v1419, %v1418
    %v1446 = vpack.c.bf16 %v1421, %v1420
    %v1447 = vpack.c.bf16 %v1423, %v1422
    %v1448 = vpack.c.bf16 %v1425, %v1424
    %v1449 = vpack.c.bf16 %v1427, %v1426
    %v1450 = vpack.c.bf16 %v1429, %v1428
    %v1451 = vpack.c.bf16 %v1431, %v1430
    %v1452 = vpack.c.bf16 %v1433, %v1432
    %v1453 = vpack.c.bf16 %v1435, %v1434
    %v1454 = vpack.c.bf16 %v1437, %v1436
    %v1455 = vpack.c.bf16 %v1439, %v1438
    %v1457 = vperm.slane %v624, 0
    %v1475 = vunpack.c.l.b16 %v608
    %v1476 = vunpack.c.l.b16 %v609
    %v1477 = vunpack.c.l.b16 %v610
    %v1478 = vunpack.c.l.b16 %v611
    %v1479 = vunpack.c.l.b16 %v612
    %v1480 = vunpack.c.l.b16 %v613
    %v1481 = vunpack.c.l.b16 %v614
    %v1482 = vunpack.c.l.b16 %v615
    %v1483 = vunpack.c.l.b16 %v616
    %v1484 = vunpack.c.l.b16 %v617
    %v1485 = vunpack.c.l.b16 %v618
    %v1486 = vunpack.c.l.b16 %v619
    %v1487 = vunpack.c.l.b16 %v620
    %v1488 = vunpack.c.l.b16 %v621
    %v1489 = vunpack.c.l.b16 %v622
    %v1490 = vunpack.c.l.b16 %v623
    %v1491 = vpack.c.b16 %v1476, %v1475
    %v1492 = vpack.c.b16 %v1478, %v1477
    %v1493 = vpack.c.b16 %v1480, %v1479
    %v1494 = vpack.c.b16 %v1482, %v1481
    %v1495 = vpack.c.b16 %v1484, %v1483
    %v1496 = vpack.c.b16 %v1486, %v1485
    %v1497 = vpack.c.b16 %v1488, %v1487
    %v1498 = vpack.c.b16 %v1490, %v1489
    %1507 = vmatpush.bf16.msra.mxu0 %v1498
    %1508 = vmatpush.bf16.msra.mxu0 %v1497
    %1509 = vmatpush.bf16.msra.mxu0 %v1496
    %1510 = vmatpush.bf16.msra.mxu0 %v1495
    %1511 = vmatpush.bf16.msra.mxu0 %v1494
    %1512 = vmatpush.bf16.msra.mxu0 %v1493
    %1513 = vmatpush.bf16.msra.mxu0 %v1492
    %1514 = vmatpush.bf16.msra.mxu0 %v1491
    %1515 = vmatmul.bf16.gmra.mxu0 %v1440
    %v1516 = vpop.f32.mrf.mxu0
    %v1517 = vadd.f32 %v1457, %v1516
    %v1518 = vpop.f32.mrf.mxu0
    %v1519 = vadd.f32 %v1457, %v1518
    %1520 = vmatmul.bf16.gmra.mxu0 %v1441
    %v1521 = vpop.f32.mrf.mxu0
    %v1522 = vadd.f32 %v1457, %v1521
    %v1523 = vpop.f32.mrf.mxu0
    %v1524 = vadd.f32 %v1457, %v1523
    %1525 = vmatmul.bf16.gmra.mxu0 %v1442
    %v1526 = vpop.f32.mrf.mxu0
    %v1527 = vadd.f32 %v1457, %v1526
    %v1528 = vpop.f32.mrf.mxu0
    %v1529 = vadd.f32 %v1457, %v1528
    %1530 = vmatmul.bf16.gmra.mxu0 %v1443
    %v1531 = vpop.f32.mrf.mxu0
    %v1532 = vadd.f32 %v1457, %v1531
    %v1533 = vpop.f32.mrf.mxu0
    %v1534 = vadd.f32 %v1457, %v1533
    %1535 = vmatmul.bf16.gmra.mxu0 %v1444
    %v1536 = vpop.f32.mrf.mxu0
    %v1537 = vadd.f32 %v1457, %v1536
    %v1538 = vpop.f32.mrf.mxu0
    %v1539 = vadd.f32 %v1457, %v1538
    %1540 = vmatmul.bf16.gmra.mxu0 %v1445
    %v1541 = vpop.f32.mrf.mxu0
    %v1542 = vadd.f32 %v1457, %v1541
    %v1543 = vpop.f32.mrf.mxu0
    %v1544 = vadd.f32 %v1457, %v1543
    %1545 = vmatmul.bf16.gmra.mxu0 %v1446
    %v1546 = vpop.f32.mrf.mxu0
    %v1547 = vadd.f32 %v1457, %v1546
    %v1548 = vpop.f32.mrf.mxu0
    %v1549 = vadd.f32 %v1457, %v1548
    %1550 = vmatmul.bf16.gmra.mxu0 %v1447
    %v1551 = vpop.f32.mrf.mxu0
    %v1552 = vadd.f32 %v1457, %v1551
    %v1553 = vpop.f32.mrf.mxu0
    %v1554 = vadd.f32 %v1457, %v1553
    %1555 = vmatmul.bf16.gmra.mxu0 %v1448
    %v1556 = vpop.f32.mrf.mxu0
    %v1557 = vadd.f32 %v1457, %v1556
    %v1558 = vpop.f32.mrf.mxu0
    %v1559 = vadd.f32 %v1457, %v1558
    %1560 = vmatmul.bf16.gmra.mxu0 %v1449
    %v1561 = vpop.f32.mrf.mxu0
    %v1562 = vadd.f32 %v1457, %v1561
    %v1563 = vpop.f32.mrf.mxu0
    %v1564 = vadd.f32 %v1457, %v1563
    %1565 = vmatmul.bf16.gmra.mxu0 %v1450
    %v1566 = vpop.f32.mrf.mxu0
    %v1567 = vadd.f32 %v1457, %v1566
    %v1568 = vpop.f32.mrf.mxu0
    %v1569 = vadd.f32 %v1457, %v1568
    %1570 = vmatmul.bf16.gmra.mxu0 %v1451
    %v1571 = vpop.f32.mrf.mxu0
    %v1572 = vadd.f32 %v1457, %v1571
    %v1573 = vpop.f32.mrf.mxu0
    %v1574 = vadd.f32 %v1457, %v1573
    %1575 = vmatmul.bf16.gmra.mxu0 %v1452
    %v1576 = vpop.f32.mrf.mxu0
    %v1577 = vadd.f32 %v1457, %v1576
    %v1578 = vpop.f32.mrf.mxu0
    %v1579 = vadd.f32 %v1457, %v1578
    %1580 = vmatmul.bf16.gmra.mxu0 %v1453
    %v1581 = vpop.f32.mrf.mxu0
    %v1582 = vadd.f32 %v1457, %v1581
    %v1583 = vpop.f32.mrf.mxu0
    %v1584 = vadd.f32 %v1457, %v1583
    %1585 = vmatmul.bf16.gmra.mxu0 %v1454
    %v1586 = vpop.f32.mrf.mxu0
    %v1587 = vadd.f32 %v1457, %v1586
    %v1588 = vpop.f32.mrf.mxu0
    %v1589 = vadd.f32 %v1457, %v1588
    %1590 = vmatmul.bf16.gmra.mxu0 %v1455
    %v1591 = vpop.f32.mrf.mxu0
    %v1592 = vadd.f32 %v1457, %v1591
    %v1593 = vpop.f32.mrf.mxu0
    %v1594 = vadd.f32 %v1457, %v1593
    %1595 = vdwg.mxu0
    %v1596 = vld [vmem:[%s1] sm:$0xff]
    %v1597 = vld [vmem:[%s1 + $0x8] sm:$0xff]
    %v1598 = vld [vmem:[%s1 + $0x10] sm:$0xff]
    %v1599 = vld [vmem:[%s1 + $0x18] sm:$0xff]
    %v1600 = vld [vmem:[%s1 + $0x20] sm:$0xff]
    %v1601 = vld [vmem:[%s1 + $0x28] sm:$0xff]
    %v1602 = vld [vmem:[%s1 + $0x30] sm:$0xff]
    %v1603 = vld [vmem:[%s1 + $0x38] sm:$0xff]
    %v1604 = vld [vmem:[%s1 + $0x40] sm:$0xff]
    %v1605 = vld [vmem:[%s1 + $0x48] sm:$0xff]
    %v1606 = vld [vmem:[%s1 + $0x50] sm:$0xff]
    %v1607 = vld [vmem:[%s1 + $0x58] sm:$0xff]
    %v1608 = vld [vmem:[%s1 + $0x60] sm:$0xff]
    %v1609 = vld [vmem:[%s1 + $0x68] sm:$0xff]
    %v1610 = vld [vmem:[%s1 + $0x70] sm:$0xff]
    %v1611 = vld [vmem:[%s1 + $0x78] sm:$0xff]
    %v1612 = vld [vmem:[%s1 + $0x80] sm:$0xff]
    %v1613 = vld [vmem:[%s1 + $0x88] sm:$0xff]
    %v1614 = vld [vmem:[%s1 + $0x90] sm:$0xff]
    %v1615 = vld [vmem:[%s1 + $0x98] sm:$0xff]
    %v1616 = vld [vmem:[%s1 + $0xa0] sm:$0xff]
    %v1617 = vld [vmem:[%s1 + $0xa8] sm:$0xff]
    %v1618 = vld [vmem:[%s1 + $0xb0] sm:$0xff]
    %v1619 = vld [vmem:[%s1 + $0xb8] sm:$0xff]
    %v1620 = vld [vmem:[%s1 + $0xc0] sm:$0xff]
    %v1621 = vld [vmem:[%s1 + $0xc8] sm:$0xff]
    %v1622 = vld [vmem:[%s1 + $0xd0] sm:$0xff]
    %v1623 = vld [vmem:[%s1 + $0xd8] sm:$0xff]
    %v1624 = vld [vmem:[%s1 + $0xe0] sm:$0xff]
    %v1625 = vld [vmem:[%s1 + $0xe8] sm:$0xff]
    %v1626 = vld [vmem:[%s1 + $0xf0] sm:$0xff]
    %v1627 = vld [vmem:[%s1 + $0xf8] sm:$0xff]
    %v1628 = vld [vmem:[#allocation3] sm:$0xff]
    %v1629 = vld [vmem:[#allocation3 + $0x8] sm:$0xff]
    %1631 = vset.pattern.permute.xlu0 0
    %1632 = vperm.xlu0 %1631, %v1596
    %v1633 = vpop.permute.xlu0 %1632
    %1636 = vset.pattern.permute.xlu0 0
    %1637 = vperm.xlu0 %1636, %v1597
    %v1638 = vpop.permute.xlu0 %1637
    %1641 = vset.pattern.permute.xlu0 0
    %1642 = vperm.xlu0 %1641, %v1598
    %v1643 = vpop.permute.xlu0 %1642
    %1646 = vset.pattern.permute.xlu0 0
    %1647 = vperm.xlu0 %1646, %v1599
    %v1648 = vpop.permute.xlu0 %1647
    %1651 = vset.pattern.permute.xlu0 0
    %1652 = vperm.xlu0 %1651, %v1600
    %v1653 = vpop.permute.xlu0 %1652
    %1656 = vset.pattern.permute.xlu0 0
    %1657 = vperm.xlu0 %1656, %v1601
    %v1658 = vpop.permute.xlu0 %1657
    %1661 = vset.pattern.permute.xlu0 0
    %1662 = vperm.xlu0 %1661, %v1602
    %v1663 = vpop.permute.xlu0 %1662
    %1666 = vset.pattern.permute.xlu0 0
    %1667 = vperm.xlu0 %1666, %v1603
    %v1668 = vpop.permute.xlu0 %1667
    %1671 = vset.pattern.permute.xlu0 0
    %1672 = vperm.xlu0 %1671, %v1604
    %v1673 = vpop.permute.xlu0 %1672
    %1676 = vset.pattern.permute.xlu0 0
    %1677 = vperm.xlu0 %1676, %v1605
    %v1678 = vpop.permute.xlu0 %1677
    %1681 = vset.pattern.permute.xlu0 0
    %1682 = vperm.xlu0 %1681, %v1606
    %v1683 = vpop.permute.xlu0 %1682
    %1686 = vset.pattern.permute.xlu0 0
    %1687 = vperm.xlu0 %1686, %v1607
    %v1688 = vpop.permute.xlu0 %1687
    %1691 = vset.pattern.permute.xlu0 0
    %1692 = vperm.xlu0 %1691, %v1608
    %v1693 = vpop.permute.xlu0 %1692
    %1696 = vset.pattern.permute.xlu0 0
    %1697 = vperm.xlu0 %1696, %v1609
    %v1698 = vpop.permute.xlu0 %1697
    %1701 = vset.pattern.permute.xlu0 0
    %1702 = vperm.xlu0 %1701, %v1610
    %v1703 = vpop.permute.xlu0 %1702
    %1706 = vset.pattern.permute.xlu0 0
    %1707 = vperm.xlu0 %1706, %v1611
    %v1708 = vpop.permute.xlu0 %1707
    %1711 = vset.pattern.permute.xlu0 0
    %1712 = vperm.xlu0 %1711, %v1612
    %v1713 = vpop.permute.xlu0 %1712
    %1716 = vset.pattern.permute.xlu0 0
    %1717 = vperm.xlu0 %1716, %v1613
    %v1718 = vpop.permute.xlu0 %1717
    %1721 = vset.pattern.permute.xlu0 0
    %1722 = vperm.xlu0 %1721, %v1614
    %v1723 = vpop.permute.xlu0 %1722
    %1726 = vset.pattern.permute.xlu0 0
    %1727 = vperm.xlu0 %1726, %v1615
    %v1728 = vpop.permute.xlu0 %1727
    %1731 = vset.pattern.permute.xlu0 0
    %1732 = vperm.xlu0 %1731, %v1616
    %v1733 = vpop.permute.xlu0 %1732
    %1736 = vset.pattern.permute.xlu0 0
    %1737 = vperm.xlu0 %1736, %v1617
    %v1738 = vpop.permute.xlu0 %1737
    %1741 = vset.pattern.permute.xlu0 0
    %1742 = vperm.xlu0 %1741, %v1618
    %v1743 = vpop.permute.xlu0 %1742
    %1746 = vset.pattern.permute.xlu0 0
    %1747 = vperm.xlu0 %1746, %v1619
    %v1748 = vpop.permute.xlu0 %1747
    %1751 = vset.pattern.permute.xlu0 0
    %1752 = vperm.xlu0 %1751, %v1620
    %v1753 = vpop.permute.xlu0 %1752
    %1756 = vset.pattern.permute.xlu0 0
    %1757 = vperm.xlu0 %1756, %v1621
    %v1758 = vpop.permute.xlu0 %1757
    %1761 = vset.pattern.permute.xlu0 0
    %1762 = vperm.xlu0 %1761, %v1622
    %v1763 = vpop.permute.xlu0 %1762
    %1766 = vset.pattern.permute.xlu0 0
    %1767 = vperm.xlu0 %1766, %v1623
    %v1768 = vpop.permute.xlu0 %1767
    %1771 = vset.pattern.permute.xlu0 0
    %1772 = vperm.xlu0 %1771, %v1624
    %v1773 = vpop.permute.xlu0 %1772
    %1776 = vset.pattern.permute.xlu0 0
    %1777 = vperm.xlu0 %1776, %v1625
    %v1778 = vpop.permute.xlu0 %1777
    %1781 = vset.pattern.permute.xlu0 0
    %1782 = vperm.xlu0 %1781, %v1626
    %v1783 = vpop.permute.xlu0 %1782
    %1786 = vset.pattern.permute.xlu0 0
    %1787 = vperm.xlu0 %1786, %v1627
    %v1788 = vpop.permute.xlu0 %1787
    %v1790 = vmul.f32 %v1517, %v1633
    %v1791 = vmul.f32 %v1519, %v1638
    %v1792 = vmul.f32 %v1522, %v1643
    %v1793 = vmul.f32 %v1524, %v1648
    %v1794 = vmul.f32 %v1527, %v1653
    %v1795 = vmul.f32 %v1529, %v1658
    %v1796 = vmul.f32 %v1532, %v1663
    %v1797 = vmul.f32 %v1534, %v1668
    %v1798 = vmul.f32 %v1537, %v1673
    %v1799 = vmul.f32 %v1539, %v1678
    %v1800 = vmul.f32 %v1542, %v1683
    %v1801 = vmul.f32 %v1544, %v1688
    %v1802 = vmul.f32 %v1547, %v1693
    %v1803 = vmul.f32 %v1549, %v1698
    %v1804 = vmul.f32 %v1552, %v1703
    %v1805 = vmul.f32 %v1554, %v1708
    %v1806 = vmul.f32 %v1557, %v1713
    %v1807 = vmul.f32 %v1559, %v1718
    %v1808 = vmul.f32 %v1562, %v1723
    %v1809 = vmul.f32 %v1564, %v1728
    %v1810 = vmul.f32 %v1567, %v1733
    %v1811 = vmul.f32 %v1569, %v1738
    %v1812 = vmul.f32 %v1572, %v1743
    %v1813 = vmul.f32 %v1574, %v1748
    %v1814 = vmul.f32 %v1577, %v1753
    %v1815 = vmul.f32 %v1579, %v1758
    %v1816 = vmul.f32 %v1582, %v1763
    %v1817 = vmul.f32 %v1584, %v1768
    %v1818 = vmul.f32 %v1587, %v1773
    %v1819 = vmul.f32 %v1589, %v1778
    %v1820 = vmul.f32 %v1592, %v1783
    %v1821 = vmul.f32 %v1594, %v1788
    %v1824 = vrot.slane %v1628, 1
    %v1825 = vrot.slane %v1628, 2
    %v1826 = vrot.slane %v1628, 3
    %v1827 = vrot.slane %v1628, 4
    %v1828 = vrot.slane %v1628, 5
    %v1829 = vrot.slane %v1628, 6
    %v1830 = vrot.slane %v1628, 7
    %v1831 = vrot.slane %v1629, 1
    %v1832 = vrot.slane %v1629, 2
    %v1833 = vrot.slane %v1629, 3
    %v1834 = vrot.slane %v1629, 4
    %v1835 = vrot.slane %v1629, 5
    %v1836 = vrot.slane %v1629, 6
    %v1837 = vrot.slane %v1629, 7
    %v1838 = vperm.slane %v1628, 0
    %v1839 = vperm.slane %v1824, 0
    %v1840 = vperm.slane %v1825, 0
    %v1841 = vperm.slane %v1826, 0
    %v1842 = vperm.slane %v1827, 0
    %v1843 = vperm.slane %v1828, 0
    %v1844 = vperm.slane %v1829, 0
    %v1845 = vperm.slane %v1830, 0
    %v1846 = vperm.slane %v1629, 0
    %v1847 = vperm.slane %v1831, 0
    %v1848 = vperm.slane %v1832, 0
    %v1849 = vperm.slane %v1833, 0
    %v1850 = vperm.slane %v1834, 0
    %v1851 = vperm.slane %v1835, 0
    %v1852 = vperm.slane %v1836, 0
    %v1853 = vperm.slane %v1837, 0
    %v1870 = vmul.f32 %v1790, %v1838
    %v1871 = vmul.f32 %v1791, %v1838
    %v1872 = vmul.f32 %v1792, %v1839
    %v1873 = vmul.f32 %v1793, %v1839
    %v1874 = vmul.f32 %v1794, %v1840
    %v1875 = vmul.f32 %v1795, %v1840
    %v1876 = vmul.f32 %v1796, %v1841
    %v1877 = vmul.f32 %v1797, %v1841
    %v1878 = vmul.f32 %v1798, %v1842
    %v1879 = vmul.f32 %v1799, %v1842
    %v1880 = vmul.f32 %v1800, %v1843
    %v1881 = vmul.f32 %v1801, %v1843
    %v1882 = vmul.f32 %v1802, %v1844
    %v1883 = vmul.f32 %v1803, %v1844
    %v1884 = vmul.f32 %v1804, %v1845
    %v1885 = vmul.f32 %v1805, %v1845
    %v1886 = vmul.f32 %v1806, %v1846
    %v1887 = vmul.f32 %v1807, %v1846
    %v1888 = vmul.f32 %v1808, %v1847
    %v1889 = vmul.f32 %v1809, %v1847
    %v1890 = vmul.f32 %v1810, %v1848
    %v1891 = vmul.f32 %v1811, %v1848
    %v1892 = vmul.f32 %v1812, %v1849
    %v1893 = vmul.f32 %v1813, %v1849
    %v1894 = vmul.f32 %v1814, %v1850
    %v1895 = vmul.f32 %v1815, %v1850
    %v1896 = vmul.f32 %v1816, %v1851
    %v1897 = vmul.f32 %v1817, %v1851
    %v1898 = vmul.f32 %v1818, %v1852
    %v1899 = vmul.f32 %v1819, %v1852
    %v1900 = vmul.f32 %v1820, %v1853
    %v1901 = vmul.f32 %v1821, %v1853
    %v1902 = vadd.f32 %v1870, %v1872
    %v1903 = vadd.f32 %v1902, %v1874
    %v1904 = vadd.f32 %v1903, %v1876
    %v1905 = vadd.f32 %v1904, %v1878
    %v1906 = vadd.f32 %v1905, %v1880
    %v1907 = vadd.f32 %v1906, %v1882
    %v1908 = vadd.f32 %v1907, %v1884
    %v1909 = vadd.f32 %v1908, %v1886
    %v1910 = vadd.f32 %v1909, %v1888
    %v1911 = vadd.f32 %v1910, %v1890
    %v1912 = vadd.f32 %v1911, %v1892
    %v1913 = vadd.f32 %v1912, %v1894
    %v1914 = vadd.f32 %v1913, %v1896
    %v1915 = vadd.f32 %v1914, %v1898
    %v1916 = vadd.f32 %v1915, %v1900
    %v1917 = vadd.f32 %v1871, %v1873
    %v1918 = vadd.f32 %v1917, %v1875
    %v1919 = vadd.f32 %v1918, %v1877
    %v1920 = vadd.f32 %v1919, %v1879
    %v1921 = vadd.f32 %v1920, %v1881
    %v1922 = vadd.f32 %v1921, %v1883
    %v1923 = vadd.f32 %v1922, %v1885
    %v1924 = vadd.f32 %v1923, %v1887
    %v1925 = vadd.f32 %v1924, %v1889
    %v1926 = vadd.f32 %v1925, %v1891
    %v1927 = vadd.f32 %v1926, %v1893
    %v1928 = vadd.f32 %v1927, %v1895
    %v1929 = vadd.f32 %v1928, %v1897
    %v1930 = vadd.f32 %v1929, %v1899
    %v1931 = vadd.f32 %v1930, %v1901
    %v1932 = vld [vmem:[#allocation4] sm:$0xff]
    %v1933 = vld [vmem:[#allocation4 + $0x8] sm:$0xff]
    %v1934 = vadd.f32 %v1932, %v1916
    %v1935 = vadd.f32 %v1933, %v1931
    %1936 = vst [vmem:[#allocation4] sm:$0xff] %v1934
    %1937 = vst [vmem:[#allocation4 + $0x8] sm:$0xff] %v1935
    %v1938 = vld [vmem:[#allocation4] sm:$0xff]
    %v1939 = vld [vmem:[#allocation4 + $0x8] sm:$0xff]
    %v1940 = vpack.c.bf16 %v1939, %v1938
    %v1941 = vld [vmem:[#allocation11] sm:$0xf]
    %v1942 = vld [vmem:[#allocation11 + $0x4] sm:$0xf]
    %v1943 = vld [vmem:[#allocation11 + $0x8] sm:$0xf]
    %v1944 = vld [vmem:[#allocation11 + $0xc] sm:$0xf]
    %v1945 = vld [vmem:[#allocation11 + $0x10] sm:$0xf]
    %v1946 = vld [vmem:[#allocation11 + $0x14] sm:$0xf]
    %v1947 = vld [vmem:[#allocation11 + $0x18] sm:$0xf]
    %v1948 = vld [vmem:[#allocation11 + $0x1c] sm:$0xf]
    %v1949 = vld [vmem:[#allocation11 + $0x20] sm:$0xf]
    %v1950 = vld [vmem:[#allocation11 + $0x24] sm:$0xf]
    %v1951 = vld [vmem:[#allocation11 + $0x28] sm:$0xf]
    %v1952 = vld [vmem:[#allocation11 + $0x2c] sm:$0xf]
    %v1953 = vld [vmem:[#allocation11 + $0x30] sm:$0xf]
    %v1954 = vld [vmem:[#allocation11 + $0x34] sm:$0xf]
    %v1955 = vld [vmem:[#allocation11 + $0x38] sm:$0xf]
    %v1956 = vld [vmem:[#allocation11 + $0x3c] sm:$0xf]
    %v1957 = vld [vmem:[#allocation13] sm:$0x1]
    %v1959 = vperm.slane %v1957, 0
    %v1977 = vunpack.c.l.b16 %v1941
    %v1978 = vunpack.c.l.b16 %v1942
    %v1979 = vunpack.c.l.b16 %v1943
    %v1980 = vunpack.c.l.b16 %v1944
    %v1981 = vunpack.c.l.b16 %v1945
    %v1982 = vunpack.c.l.b16 %v1946
    %v1983 = vunpack.c.l.b16 %v1947
    %v1984 = vunpack.c.l.b16 %v1948
    %v1985 = vunpack.c.l.b16 %v1949
    %v1986 = vunpack.c.l.b16 %v1950
    %v1987 = vunpack.c.l.b16 %v1951
    %v1988 = vunpack.c.l.b16 %v1952
    %v1989 = vunpack.c.l.b16 %v1953
    %v1990 = vunpack.c.l.b16 %v1954
    %v1991 = vunpack.c.l.b16 %v1955
    %v1992 = vunpack.c.l.b16 %v1956
    %v1993 = vpack.c.b16 %v1978, %v1977
    %v1994 = vpack.c.b16 %v1980, %v1979
    %v1995 = vpack.c.b16 %v1982, %v1981
    %v1996 = vpack.c.b16 %v1984, %v1983
    %v1997 = vpack.c.b16 %v1986, %v1985
    %v1998 = vpack.c.b16 %v1988, %v1987
    %v1999 = vpack.c.b16 %v1990, %v1989
    %v2000 = vpack.c.b16 %v1992, %v1991
    %2009 = vmatpush.bf16.msra.mxu0 %v2000
    %2010 = vmatpush.bf16.msra.mxu0 %v1999
    %2011 = vmatpush.bf16.msra.mxu0 %v1998
    %2012 = vmatpush.bf16.msra.mxu0 %v1997
    %2013 = vmatpush.bf16.msra.mxu0 %v1996
    %2014 = vmatpush.bf16.msra.mxu0 %v1995
    %2015 = vmatpush.bf16.msra.mxu0 %v1994
    %2016 = vmatpush.bf16.msra.mxu0 %v1993
    %2017 = vmatmul.bf16.gmra.mxu0 %v1940
    %v2018 = vpop.f32.mrf.mxu0
    %v2019 = vadd.f32 %v1959, %v2018
    %v2020 = vpop.f32.mrf.mxu0
    %v2021 = vadd.f32 %v1959, %v2020
    %2022 = vdwg.mxu0
    %v2023 = vmax.f32 %v2019, 0.0
    %v2024 = vmax.f32 %v2021, 0.0
    %v2025 = vand.u32 2147483647, %v2019
    %v2026 = vand.u32 2147483647, %v2021
    %v2027 = vsub.f32 0.0, %v2025
    %v2028 = vsub.f32 0.0, %v2026
    %v2029 = vmul.f32 %v2027, 1.442695
    %v2030 = vpow.pop %v2029
    %v2031 = vmul.f32 %v2028, 1.442695
    %v2032 = vpow.pop %v2031
    %v2033 = vadd.f32 %v2030, 1.0
    %v2034 = vlog2.pop %v2033
    %v2035 = vmul.f32 %v2034, 0.6931472
    %v2036 = vmul.f32 -0.5, %v2030
    %v2037 = vadd.f32 %v2036, 1.0
    %v2038 = vmul.f32 %v2037, %v2030
    %v2039 = vand.u32 2147483647, %v2030
    %vm2040 = vcmp.lt.f32.partialorder %v2039, 0.0004427343
    %v2041 = vsel %vm2040, %v2038, %v2035
    %v2042 = vadd.f32 %v2032, 1.0
    %v2043 = vlog2.pop %v2042
    %v2044 = vmul.f32 %v2043, 0.6931472
    %v2045 = vmul.f32 -0.5, %v2032
    %v2046 = vadd.f32 %v2045, 1.0
    %v2047 = vmul.f32 %v2046, %v2032
    %v2048 = vand.u32 2147483647, %v2032
    %vm2049 = vcmp.lt.f32.partialorder %v2048, 0.0004427343
    %v2050 = vsel %vm2049, %v2047, %v2044
    %v2051 = vadd.f32 %v2023, %v2041
    %v2052 = vadd.f32 %v2024, %v2050
    %v2053 = vpack.c.bf16 %v2052, %v2051
    %v2054 = vld [vmem:[#allocation14] sm:$0xf]
    %v2055 = vld [vmem:[#allocation14 + $0x4] sm:$0xf]
    %v2056 = vld [vmem:[#allocation14 + $0x8] sm:$0xf]
    %v2057 = vld [vmem:[#allocation14 + $0xc] sm:$0xf]
    %v2058 = vld [vmem:[#allocation14 + $0x10] sm:$0xf]
    %v2059 = vld [vmem:[#allocation14 + $0x14] sm:$0xf]
    %v2060 = vld [vmem:[#allocation14 + $0x18] sm:$0xf]
    %v2061 = vld [vmem:[#allocation14 + $0x1c] sm:$0xf]
    %v2062 = vld [vmem:[#allocation14 + $0x20] sm:$0xf]
    %v2063 = vld [vmem:[#allocation14 + $0x24] sm:$0xf]
    %v2064 = vld [vmem:[#allocation14 + $0x28] sm:$0xf]
    %v2065 = vld [vmem:[#allocation14 + $0x2c] sm:$0xf]
    %v2066 = vld [vmem:[#allocation14 + $0x30] sm:$0xf]
    %v2067 = vld [vmem:[#allocation14 + $0x34] sm:$0xf]
    %v2068 = vld [vmem:[#allocation14 + $0x38] sm:$0xf]
    %v2069 = vld [vmem:[#allocation14 + $0x3c] sm:$0xf]
    %v2086 = vunpack.c.l.b16 %v2054
    %v2087 = vunpack.c.l.b16 %v2055
    %v2088 = vunpack.c.l.b16 %v2056
    %v2089 = vunpack.c.l.b16 %v2057
    %v2090 = vunpack.c.l.b16 %v2058
    %v2091 = vunpack.c.l.b16 %v2059
    %v2092 = vunpack.c.l.b16 %v2060
    %v2093 = vunpack.c.l.b16 %v2061
    %v2094 = vunpack.c.l.b16 %v2062
    %v2095 = vunpack.c.l.b16 %v2063
    %v2096 = vunpack.c.l.b16 %v2064
    %v2097 = vunpack.c.l.b16 %v2065
    %v2098 = vunpack.c.l.b16 %v2066
    %v2099 = vunpack.c.l.b16 %v2067
    %v2100 = vunpack.c.l.b16 %v2068
    %v2101 = vunpack.c.l.b16 %v2069
    %v2102 = vpack.c.b16 %v2087, %v2086
    %v2103 = vpack.c.b16 %v2089, %v2088
    %v2104 = vpack.c.b16 %v2091, %v2090
    %v2105 = vpack.c.b16 %v2093, %v2092
    %v2106 = vpack.c.b16 %v2095, %v2094
    %v2107 = vpack.c.b16 %v2097, %v2096
    %v2108 = vpack.c.b16 %v2099, %v2098
    %v2109 = vpack.c.b16 %v2101, %v2100
    %2118 = vmatpush.bf16.msra.mxu0 %v2109
    %2119 = vmatpush.bf16.msra.mxu0 %v2108
    %2120 = vmatpush.bf16.msra.mxu0 %v2107
    %2121 = vmatpush.bf16.msra.mxu0 %v2106
    %2122 = vmatpush.bf16.msra.mxu0 %v2105
    %2123 = vmatpush.bf16.msra.mxu0 %v2104
    %2124 = vmatpush.bf16.msra.mxu0 %v2103
    %2125 = vmatpush.bf16.msra.mxu0 %v2102
    %2126 = vmatmul.bf16.gmra.mxu0 %v2053
    %v2127 = vpop.f32.mrf.mxu0
    %v2128 = vadd.f32 0.0, %v2127
    %v2129 = vpop.f32.mrf.mxu0
    %v2130 = vadd.f32 0.0, %v2129
    %2131 = vdwg.mxu0
    %v2132 = vadd.f32 %v573, %v2128
    %v2133 = vadd.f32 %v574, %v2130
    %v2134 = vld [vmem:[%s13] sm:$0x1]
    %v2136 = vperm.slane %v2134, 0
    %v2138 = vadd.f32 %v2132, %v2136
    %v2139 = vadd.f32 %v2133, %v2136
    %s2140 = scalar_lea.vmem %s5, 64
    %v2141 = vld [vmem:[%s2140] sm:$0xf]
    %v2142 = vld [vmem:[%s2140 + $0x4] sm:$0xf]
    %v2143 = vld [vmem:[%s2140 + $0x8] sm:$0xf]
    %v2144 = vld [vmem:[%s2140 + $0xc] sm:$0xf]
    %v2145 = vld [vmem:[%s2140 + $0x10] sm:$0xf]
    %v2146 = vld [vmem:[%s2140 + $0x14] sm:$0xf]
    %v2147 = vld [vmem:[%s2140 + $0x18] sm:$0xf]
    %v2148 = vld [vmem:[%s2140 + $0x1c] sm:$0xf]
    %v2149 = vld [vmem:[%s2140 + $0x20] sm:$0xf]
    %v2150 = vld [vmem:[%s2140 + $0x24] sm:$0xf]
    %v2151 = vld [vmem:[%s2140 + $0x28] sm:$0xf]
    %v2152 = vld [vmem:[%s2140 + $0x2c] sm:$0xf]
    %v2153 = vld [vmem:[%s2140 + $0x30] sm:$0xf]
    %v2154 = vld [vmem:[%s2140 + $0x34] sm:$0xf]
    %v2155 = vld [vmem:[%s2140 + $0x38] sm:$0xf]
    %v2156 = vld [vmem:[%s2140 + $0x3c] sm:$0xf]
    %s2157 = scalar_lea.vmem %s6, 64
    %v2158 = vld [vmem:[%s2157] sm:$0xf]
    %v2159 = vld [vmem:[%s2157 + $0x4] sm:$0xf]
    %v2160 = vld [vmem:[%s2157 + $0x8] sm:$0xf]
    %v2161 = vld [vmem:[%s2157 + $0xc] sm:$0xf]
    %v2162 = vld [vmem:[%s2157 + $0x10] sm:$0xf]
    %v2163 = vld [vmem:[%s2157 + $0x14] sm:$0xf]
    %v2164 = vld [vmem:[%s2157 + $0x18] sm:$0xf]
    %v2165 = vld [vmem:[%s2157 + $0x1c] sm:$0xf]
    %v2166 = vld [vmem:[%s2157 + $0x20] sm:$0xf]
    %v2167 = vld [vmem:[%s2157 + $0x24] sm:$0xf]
    %v2168 = vld [vmem:[%s2157 + $0x28] sm:$0xf]
    %v2169 = vld [vmem:[%s2157 + $0x2c] sm:$0xf]
    %v2170 = vld [vmem:[%s2157 + $0x30] sm:$0xf]
    %v2171 = vld [vmem:[%s2157 + $0x34] sm:$0xf]
    %v2172 = vld [vmem:[%s2157 + $0x38] sm:$0xf]
    %v2173 = vld [vmem:[%s2157 + $0x3c] sm:$0xf]
    %s2174 = scalar_lea.vmem %s7, 1
    %v2175 = vld [vmem:[%s2174] sm:$0x1]
    %s2176 = scalar_lea.vmem [#allocation10], 64
    %v2177 = vld [vmem:[%s2176] sm:$0xf]
    %v2178 = vld [vmem:[%s2176 + $0x4] sm:$0xf]
    %v2179 = vld [vmem:[%s2176 + $0x8] sm:$0xf]
    %v2180 = vld [vmem:[%s2176 + $0xc] sm:$0xf]
    %v2181 = vld [vmem:[%s2176 + $0x10] sm:$0xf]
    %v2182 = vld [vmem:[%s2176 + $0x14] sm:$0xf]
    %v2183 = vld [vmem:[%s2176 + $0x18] sm:$0xf]
    %v2184 = vld [vmem:[%s2176 + $0x1c] sm:$0xf]
    %v2185 = vld [vmem:[%s2176 + $0x20] sm:$0xf]
    %v2186 = vld [vmem:[%s2176 + $0x24] sm:$0xf]
    %v2187 = vld [vmem:[%s2176 + $0x28] sm:$0xf]
    %v2188 = vld [vmem:[%s2176 + $0x2c] sm:$0xf]
    %v2189 = vld [vmem:[%s2176 + $0x30] sm:$0xf]
    %v2190 = vld [vmem:[%s2176 + $0x34] sm:$0xf]
    %v2191 = vld [vmem:[%s2176 + $0x38] sm:$0xf]
    %v2192 = vld [vmem:[%s2176 + $0x3c] sm:$0xf]
    %s2193 = scalar_lea.vmem %s9, 1
    %v2194 = vld [vmem:[%s2193] sm:$0x1]
    %v2195 = vpack.c.bf16 %v2139, %v2138
    %v2212 = vunpack.c.l.b16 %v2141
    %v2213 = vunpack.c.l.b16 %v2142
    %v2214 = vunpack.c.l.b16 %v2143
    %v2215 = vunpack.c.l.b16 %v2144
    %v2216 = vunpack.c.l.b16 %v2145
    %v2217 = vunpack.c.l.b16 %v2146
    %v2218 = vunpack.c.l.b16 %v2147
    %v2219 = vunpack.c.l.b16 %v2148
    %v2220 = vunpack.c.l.b16 %v2149
    %v2221 = vunpack.c.l.b16 %v2150
    %v2222 = vunpack.c.l.b16 %v2151
    %v2223 = vunpack.c.l.b16 %v2152
    %v2224 = vunpack.c.l.b16 %v2153
    %v2225 = vunpack.c.l.b16 %v2154
    %v2226 = vunpack.c.l.b16 %v2155
    %v2227 = vunpack.c.l.b16 %v2156
    %v2228 = vpack.c.b16 %v2213, %v2212
    %v2229 = vpack.c.b16 %v2215, %v2214
    %v2230 = vpack.c.b16 %v2217, %v2216
    %v2231 = vpack.c.b16 %v2219, %v2218
    %v2232 = vpack.c.b16 %v2221, %v2220
    %v2233 = vpack.c.b16 %v2223, %v2222
    %v2234 = vpack.c.b16 %v2225, %v2224
    %v2235 = vpack.c.b16 %v2227, %v2226
    %2244 = vmatpush.bf16.msra.mxu0 %v2235
    %2245 = vmatpush.bf16.msra.mxu0 %v2234
    %2246 = vmatpush.bf16.msra.mxu0 %v2233
    %2247 = vmatpush.bf16.msra.mxu0 %v2232
    %2248 = vmatpush.bf16.msra.mxu0 %v2231
    %2249 = vmatpush.bf16.msra.mxu0 %v2230
    %2250 = vmatpush.bf16.msra.mxu0 %v2229
    %2251 = vmatpush.bf16.msra.mxu0 %v2228
    %2252 = vmatmul.bf16.gmra.mxu0 %v2195
    %v2253 = vpop.f32.mrf.mxu0
    %v2254 = vadd.f32 0.0, %v2253
    %v2255 = vpop.f32.mrf.mxu0
    %v2256 = vadd.f32 0.0, %v2255
    %2257 = vdwg.mxu0
    %2258 = vst [vmem:[#allocation3] sm:$0xff] %v2254
    %2259 = vst [vmem:[#allocation3 + $0x8] sm:$0xff] %v2256
    %2260 = vst [vmem:[#allocation4] sm:$0xff] 0.0
    %2261 = vst [vmem:[#allocation4 + $0x8] sm:$0xff] 0.0
    %v2262 = vld [vmem:[#allocation2] sm:$0xf]
    %v2263 = vld [vmem:[#allocation2 + $0x4] sm:$0xf]
    %v2264 = vld [vmem:[#allocation2 + $0x8] sm:$0xf]
    %v2265 = vld [vmem:[#allocation2 + $0xc] sm:$0xf]
    %v2266 = vld [vmem:[#allocation2 + $0x10] sm:$0xf]
    %v2267 = vld [vmem:[#allocation2 + $0x14] sm:$0xf]
    %v2268 = vld [vmem:[#allocation2 + $0x18] sm:$0xf]
    %v2269 = vld [vmem:[#allocation2 + $0x1c] sm:$0xf]
    %v2270 = vld [vmem:[#allocation2 + $0x20] sm:$0xf]
    %v2271 = vld [vmem:[#allocation2 + $0x24] sm:$0xf]
    %v2272 = vld [vmem:[#allocation2 + $0x28] sm:$0xf]
    %v2273 = vld [vmem:[#allocation2 + $0x2c] sm:$0xf]
    %v2274 = vld [vmem:[#allocation2 + $0x30] sm:$0xf]
    %v2275 = vld [vmem:[#allocation2 + $0x34] sm:$0xf]
    %v2276 = vld [vmem:[#allocation2 + $0x38] sm:$0xf]
    %v2277 = vld [vmem:[#allocation2 + $0x3c] sm:$0xf]
    %v2278 = vld [vmem:[#allocation2 + $0x40] sm:$0xf]
    %v2279 = vld [vmem:[#allocation2 + $0x44] sm:$0xf]
    %v2280 = vld [vmem:[#allocation2 + $0x48] sm:$0xf]
    %v2281 = vld [vmem:[#allocation2 + $0x4c] sm:$0xf]
    %v2282 = vld [vmem:[#allocation2 + $0x50] sm:$0xf]
    %v2283 = vld [vmem:[#allocation2 + $0x54] sm:$0xf]
    %v2284 = vld [vmem:[#allocation2 + $0x58] sm:$0xf]
    %v2285 = vld [vmem:[#allocation2 + $0x5c] sm:$0xf]
    %v2286 = vld [vmem:[#allocation2 + $0x60] sm:$0xf]
    %v2287 = vld [vmem:[#allocation2 + $0x64] sm:$0xf]
    %v2288 = vld [vmem:[#allocation2 + $0x68] sm:$0xf]
    %v2289 = vld [vmem:[#allocation2 + $0x6c] sm:$0xf]
    %v2290 = vld [vmem:[#allocation2 + $0x70] sm:$0xf]
    %v2291 = vld [vmem:[#allocation2 + $0x74] sm:$0xf]
    %v2292 = vld [vmem:[#allocation2 + $0x78] sm:$0xf]
    %v2293 = vld [vmem:[#allocation2 + $0x7c] sm:$0xf]
    %v2295 = vperm.slane %v2175, 0
    %v2329 = vunpack.c.l.b16 %v2262
    %v2330 = vunpack.c.l.b16 %v2263
    %v2331 = vunpack.c.l.b16 %v2264
    %v2332 = vunpack.c.l.b16 %v2265
    %v2333 = vunpack.c.l.b16 %v2266
    %v2334 = vunpack.c.l.b16 %v2267
    %v2335 = vunpack.c.l.b16 %v2268
    %v2336 = vunpack.c.l.b16 %v2269
    %v2337 = vunpack.c.l.b16 %v2270
    %v2338 = vunpack.c.l.b16 %v2271
    %v2339 = vunpack.c.l.b16 %v2272
    %v2340 = vunpack.c.l.b16 %v2273
    %v2341 = vunpack.c.l.b16 %v2274
    %v2342 = vunpack.c.l.b16 %v2275
    %v2343 = vunpack.c.l.b16 %v2276
    %v2344 = vunpack.c.l.b16 %v2277
    %v2345 = vunpack.c.l.b16 %v2278
    %v2346 = vunpack.c.l.b16 %v2279
    %v2347 = vunpack.c.l.b16 %v2280
    %v2348 = vunpack.c.l.b16 %v2281
    %v2349 = vunpack.c.l.b16 %v2282
    %v2350 = vunpack.c.l.b16 %v2283
    %v2351 = vunpack.c.l.b16 %v2284
    %v2352 = vunpack.c.l.b16 %v2285
    %v2353 = vunpack.c.l.b16 %v2286
    %v2354 = vunpack.c.l.b16 %v2287
    %v2355 = vunpack.c.l.b16 %v2288
    %v2356 = vunpack.c.l.b16 %v2289
    %v2357 = vunpack.c.l.b16 %v2290
    %v2358 = vunpack.c.l.b16 %v2291
    %v2359 = vunpack.c.l.b16 %v2292
    %v2360 = vunpack.c.l.b16 %v2293
    %v2361 = vpack.c.b16 %v2330, %v2329
    %v2362 = vpack.c.b16 %v2332, %v2331
    %v2363 = vpack.c.b16 %v2334, %v2333
    %v2364 = vpack.c.b16 %v2336, %v2335
    %v2365 = vpack.c.b16 %v2338, %v2337
    %v2366 = vpack.c.b16 %v2340, %v2339
    %v2367 = vpack.c.b16 %v2342, %v2341
    %v2368 = vpack.c.b16 %v2344, %v2343
    %v2369 = vpack.c.b16 %v2346, %v2345
    %v2370 = vpack.c.b16 %v2348, %v2347
    %v2371 = vpack.c.b16 %v2350, %v2349
    %v2372 = vpack.c.b16 %v2352, %v2351
    %v2373 = vpack.c.b16 %v2354, %v2353
    %v2374 = vpack.c.b16 %v2356, %v2355
    %v2375 = vpack.c.b16 %v2358, %v2357
    %v2376 = vpack.c.b16 %v2360, %v2359
    %v2409 = vunpack.c.l.b16 %v2158
    %v2410 = vunpack.c.l.b16 %v2159
    %v2411 = vunpack.c.l.b16 %v2160
    %v2412 = vunpack.c.l.b16 %v2161
    %v2413 = vunpack.c.l.b16 %v2162
    %v2414 = vunpack.c.l.b16 %v2163
    %v2415 = vunpack.c.l.b16 %v2164
    %v2416 = vunpack.c.l.b16 %v2165
    %v2417 = vunpack.c.l.b16 %v2166
    %v2418 = vunpack.c.l.b16 %v2167
    %v2419 = vunpack.c.l.b16 %v2168
    %v2420 = vunpack.c.l.b16 %v2169
    %v2421 = vunpack.c.l.b16 %v2170
    %v2422 = vunpack.c.l.b16 %v2171
    %v2423 = vunpack.c.l.b16 %v2172
    %v2424 = vunpack.c.l.b16 %v2173
    %v2425 = vpack.c.b16 %v2410, %v2409
    %v2426 = vpack.c.b16 %v2412, %v2411
    %v2427 = vpack.c.b16 %v2414, %v2413
    %v2428 = vpack.c.b16 %v2416, %v2415
    %v2429 = vpack.c.b16 %v2418, %v2417
    %v2430 = vpack.c.b16 %v2420, %v2419
    %v2431 = vpack.c.b16 %v2422, %v2421
    %v2432 = vpack.c.b16 %v2424, %v2423
    %2441 = vmatpush.bf16.msra.mxu0 %v2432
    %2442 = vmatpush.bf16.msra.mxu0 %v2431
    %2443 = vmatpush.bf16.msra.mxu0 %v2430
    %2444 = vmatpush.bf16.msra.mxu0 %v2429
    %2445 = vmatpush.bf16.msra.mxu0 %v2428
    %2446 = vmatpush.bf16.msra.mxu0 %v2427
    %2447 = vmatpush.bf16.msra.mxu0 %v2426
    %2448 = vmatpush.bf16.msra.mxu0 %v2425
    %2449 = vmatmul.bf16.gmra.mxu0 %v2361
    %v2450 = vpop.f32.mrf.mxu0
    %v2451 = vadd.f32 %v2295, %v2450
    %v2452 = vpop.f32.mrf.mxu0
    %v2453 = vadd.f32 %v2295, %v2452
    %2454 = vmatmul.bf16.gmra.mxu0 %v2362
    %v2455 = vpop.f32.mrf.mxu0
    %v2456 = vadd.f32 %v2295, %v2455
    %v2457 = vpop.f32.mrf.mxu0
    %v2458 = vadd.f32 %v2295, %v2457
    %2459 = vmatmul.bf16.gmra.mxu0 %v2363
    %v2460 = vpop.f32.mrf.mxu0
    %v2461 = vadd.f32 %v2295, %v2460
    %v2462 = vpop.f32.mrf.mxu0
    %v2463 = vadd.f32 %v2295, %v2462
    %2464 = vmatmul.bf16.gmra.mxu0 %v2364
    %v2465 = vpop.f32.mrf.mxu0
    %v2466 = vadd.f32 %v2295, %v2465
    %v2467 = vpop.f32.mrf.mxu0
    %v2468 = vadd.f32 %v2295, %v2467
    %2469 = vmatmul.bf16.gmra.mxu0 %v2365
    %v2470 = vpop.f32.mrf.mxu0
    %v2471 = vadd.f32 %v2295, %v2470
    %v2472 = vpop.f32.mrf.mxu0
    %v2473 = vadd.f32 %v2295, %v2472
    %2474 = vmatmul.bf16.gmra.mxu0 %v2366
    %v2475 = vpop.f32.mrf.mxu0
    %v2476 = vadd.f32 %v2295, %v2475
    %v2477 = vpop.f32.mrf.mxu0
    %v2478 = vadd.f32 %v2295, %v2477
    %2479 = vmatmul.bf16.gmra.mxu0 %v2367
    %v2480 = vpop.f32.mrf.mxu0
    %v2481 = vadd.f32 %v2295, %v2480
    %v2482 = vpop.f32.mrf.mxu0
    %v2483 = vadd.f32 %v2295, %v2482
    %2484 = vmatmul.bf16.gmra.mxu0 %v2368
    %v2485 = vpop.f32.mrf.mxu0
    %v2486 = vadd.f32 %v2295, %v2485
    %v2487 = vpop.f32.mrf.mxu0
    %v2488 = vadd.f32 %v2295, %v2487
    %2489 = vmatmul.bf16.gmra.mxu0 %v2369
    %v2490 = vpop.f32.mrf.mxu0
    %v2491 = vadd.f32 %v2295, %v2490
    %v2492 = vpop.f32.mrf.mxu0
    %v2493 = vadd.f32 %v2295, %v2492
    %2494 = vmatmul.bf16.gmra.mxu0 %v2370
    %v2495 = vpop.f32.mrf.mxu0
    %v2496 = vadd.f32 %v2295, %v2495
    %v2497 = vpop.f32.mrf.mxu0
    %v2498 = vadd.f32 %v2295, %v2497
    %2499 = vmatmul.bf16.gmra.mxu0 %v2371
    %v2500 = vpop.f32.mrf.mxu0
    %v2501 = vadd.f32 %v2295, %v2500
    %v2502 = vpop.f32.mrf.mxu0
    %v2503 = vadd.f32 %v2295, %v2502
    %2504 = vmatmul.bf16.gmra.mxu0 %v2372
    %v2505 = vpop.f32.mrf.mxu0
    %v2506 = vadd.f32 %v2295, %v2505
    %v2507 = vpop.f32.mrf.mxu0
    %v2508 = vadd.f32 %v2295, %v2507
    %2509 = vmatmul.bf16.gmra.mxu0 %v2373
    %v2510 = vpop.f32.mrf.mxu0
    %v2511 = vadd.f32 %v2295, %v2510
    %v2512 = vpop.f32.mrf.mxu0
    %v2513 = vadd.f32 %v2295, %v2512
    %2514 = vmatmul.bf16.gmra.mxu0 %v2374
    %v2515 = vpop.f32.mrf.mxu0
    %v2516 = vadd.f32 %v2295, %v2515
    %v2517 = vpop.f32.mrf.mxu0
    %v2518 = vadd.f32 %v2295, %v2517
    %2519 = vmatmul.bf16.gmra.mxu0 %v2375
    %v2520 = vpop.f32.mrf.mxu0
    %v2521 = vadd.f32 %v2295, %v2520
    %v2522 = vpop.f32.mrf.mxu0
    %v2523 = vadd.f32 %v2295, %v2522
    %2524 = vmatmul.bf16.gmra.mxu0 %v2376
    %v2525 = vpop.f32.mrf.mxu0
    %v2526 = vadd.f32 %v2295, %v2525
    %v2527 = vpop.f32.mrf.mxu0
    %v2528 = vadd.f32 %v2295, %v2527
    %2529 = vdwg.mxu0
    %v2530 = vmax.f32 %v2451, 0.0
    %v2531 = vmax.f32 %v2453, 0.0
    %v2532 = vmax.f32 %v2456, 0.0
    %v2533 = vmax.f32 %v2458, 0.0
    %v2534 = vmax.f32 %v2461, 0.0
    %v2535 = vmax.f32 %v2463, 0.0
    %v2536 = vmax.f32 %v2466, 0.0
    %v2537 = vmax.f32 %v2468, 0.0
    %v2538 = vmax.f32 %v2471, 0.0
    %v2539 = vmax.f32 %v2473, 0.0
    %v2540 = vmax.f32 %v2476, 0.0
    %v2541 = vmax.f32 %v2478, 0.0
    %v2542 = vmax.f32 %v2481, 0.0
    %v2543 = vmax.f32 %v2483, 0.0
    %v2544 = vmax.f32 %v2486, 0.0
    %v2545 = vmax.f32 %v2488, 0.0
    %v2546 = vmax.f32 %v2491, 0.0
    %v2547 = vmax.f32 %v2493, 0.0
    %v2548 = vmax.f32 %v2496, 0.0
    %v2549 = vmax.f32 %v2498, 0.0
    %v2550 = vmax.f32 %v2501, 0.0
    %v2551 = vmax.f32 %v2503, 0.0
    %v2552 = vmax.f32 %v2506, 0.0
    %v2553 = vmax.f32 %v2508, 0.0
    %v2554 = vmax.f32 %v2511, 0.0
    %v2555 = vmax.f32 %v2513, 0.0
    %v2556 = vmax.f32 %v2516, 0.0
    %v2557 = vmax.f32 %v2518, 0.0
    %v2558 = vmax.f32 %v2521, 0.0
    %v2559 = vmax.f32 %v2523, 0.0
    %v2560 = vmax.f32 %v2526, 0.0
    %v2561 = vmax.f32 %v2528, 0.0
    %v2562 = vand.u32 2147483647, %v2451
    %v2563 = vand.u32 2147483647, %v2453
    %v2564 = vand.u32 2147483647, %v2456
    %v2565 = vand.u32 2147483647, %v2458
    %v2566 = vand.u32 2147483647, %v2461
    %v2567 = vand.u32 2147483647, %v2463
    %v2568 = vand.u32 2147483647, %v2466
    %v2569 = vand.u32 2147483647, %v2468
    %v2570 = vand.u32 2147483647, %v2471
    %v2571 = vand.u32 2147483647, %v2473
    %v2572 = vand.u32 2147483647, %v2476
    %v2573 = vand.u32 2147483647, %v2478
    %v2574 = vand.u32 2147483647, %v2481
    %v2575 = vand.u32 2147483647, %v2483
    %v2576 = vand.u32 2147483647, %v2486
    %v2577 = vand.u32 2147483647, %v2488
    %v2578 = vand.u32 2147483647, %v2491
    %v2579 = vand.u32 2147483647, %v2493
    %v2580 = vand.u32 2147483647, %v2496
    %v2581 = vand.u32 2147483647, %v2498
    %v2582 = vand.u32 2147483647, %v2501
    %v2583 = vand.u32 2147483647, %v2503
    %v2584 = vand.u32 2147483647, %v2506
    %v2585 = vand.u32 2147483647, %v2508
    %v2586 = vand.u32 2147483647, %v2511
    %v2587 = vand.u32 2147483647, %v2513
    %v2588 = vand.u32 2147483647, %v2516
    %v2589 = vand.u32 2147483647, %v2518
    %v2590 = vand.u32 2147483647, %v2521
    %v2591 = vand.u32 2147483647, %v2523
    %v2592 = vand.u32 2147483647, %v2526
    %v2593 = vand.u32 2147483647, %v2528
    %v2594 = vsub.f32 0.0, %v2562
    %v2595 = vsub.f32 0.0, %v2563
    %v2596 = vsub.f32 0.0, %v2564
    %v2597 = vsub.f32 0.0, %v2565
    %v2598 = vsub.f32 0.0, %v2566
    %v2599 = vsub.f32 0.0, %v2567
    %v2600 = vsub.f32 0.0, %v2568
    %v2601 = vsub.f32 0.0, %v2569
    %v2602 = vsub.f32 0.0, %v2570
    %v2603 = vsub.f32 0.0, %v2571
    %v2604 = vsub.f32 0.0, %v2572
    %v2605 = vsub.f32 0.0, %v2573
    %v2606 = vsub.f32 0.0, %v2574
    %v2607 = vsub.f32 0.0, %v2575
    %v2608 = vsub.f32 0.0, %v2576
    %v2609 = vsub.f32 0.0, %v2577
    %v2610 = vsub.f32 0.0, %v2578
    %v2611 = vsub.f32 0.0, %v2579
    %v2612 = vsub.f32 0.0, %v2580
    %v2613 = vsub.f32 0.0, %v2581
    %v2614 = vsub.f32 0.0, %v2582
    %v2615 = vsub.f32 0.0, %v2583
    %v2616 = vsub.f32 0.0, %v2584
    %v2617 = vsub.f32 0.0, %v2585
    %v2618 = vsub.f32 0.0, %v2586
    %v2619 = vsub.f32 0.0, %v2587
    %v2620 = vsub.f32 0.0, %v2588
    %v2621 = vsub.f32 0.0, %v2589
    %v2622 = vsub.f32 0.0, %v2590
    %v2623 = vsub.f32 0.0, %v2591
    %v2624 = vsub.f32 0.0, %v2592
    %v2625 = vsub.f32 0.0, %v2593
    %v2626 = vmul.f32 %v2594, 1.442695
    %v2627 = vpow.pop %v2626
    %v2628 = vmul.f32 %v2595, 1.442695
    %v2629 = vpow.pop %v2628
    %v2630 = vmul.f32 %v2596, 1.442695
    %v2631 = vpow.pop %v2630
    %v2632 = vmul.f32 %v2597, 1.442695
    %v2633 = vpow.pop %v2632
    %v2634 = vmul.f32 %v2598, 1.442695
    %v2635 = vpow.pop %v2634
    %v2636 = vmul.f32 %v2599, 1.442695
    %v2637 = vpow.pop %v2636
    %v2638 = vmul.f32 %v2600, 1.442695
    %v2639 = vpow.pop %v2638
    %v2640 = vmul.f32 %v2601, 1.442695
    %v2641 = vpow.pop %v2640
    %v2642 = vmul.f32 %v2602, 1.442695
    %v2643 = vpow.pop %v2642
    %v2644 = vmul.f32 %v2603, 1.442695
    %v2645 = vpow.pop %v2644
    %v2646 = vmul.f32 %v2604, 1.442695
    %v2647 = vpow.pop %v2646
    %v2648 = vmul.f32 %v2605, 1.442695
    %v2649 = vpow.pop %v2648
    %v2650 = vmul.f32 %v2606, 1.442695
    %v2651 = vpow.pop %v2650
    %v2652 = vmul.f32 %v2607, 1.442695
    %v2653 = vpow.pop %v2652
    %v2654 = vmul.f32 %v2608, 1.442695
    %v2655 = vpow.pop %v2654
    %v2656 = vmul.f32 %v2609, 1.442695
    %v2657 = vpow.pop %v2656
    %v2658 = vmul.f32 %v2610, 1.442695
    %v2659 = vpow.pop %v2658
    %v2660 = vmul.f32 %v2611, 1.442695
    %v2661 = vpow.pop %v2660
    %v2662 = vmul.f32 %v2612, 1.442695
    %v2663 = vpow.pop %v2662
    %v2664 = vmul.f32 %v2613, 1.442695
    %v2665 = vpow.pop %v2664
    %v2666 = vmul.f32 %v2614, 1.442695
    %v2667 = vpow.pop %v2666
    %v2668 = vmul.f32 %v2615, 1.442695
    %v2669 = vpow.pop %v2668
    %v2670 = vmul.f32 %v2616, 1.442695
    %v2671 = vpow.pop %v2670
    %v2672 = vmul.f32 %v2617, 1.442695
    %v2673 = vpow.pop %v2672
    %v2674 = vmul.f32 %v2618, 1.442695
    %v2675 = vpow.pop %v2674
    %v2676 = vmul.f32 %v2619, 1.442695
    %v2677 = vpow.pop %v2676
    %v2678 = vmul.f32 %v2620, 1.442695
    %v2679 = vpow.pop %v2678
    %v2680 = vmul.f32 %v2621, 1.442695
    %v2681 = vpow.pop %v2680
    %v2682 = vmul.f32 %v2622, 1.442695
    %v2683 = vpow.pop %v2682
    %v2684 = vmul.f32 %v2623, 1.442695
    %v2685 = vpow.pop %v2684
    %v2686 = vmul.f32 %v2624, 1.442695
    %v2687 = vpow.pop %v2686
    %v2688 = vmul.f32 %v2625, 1.442695
    %v2689 = vpow.pop %v2688
    %v2690 = vadd.f32 %v2627, 1.0
    %v2691 = vlog2.pop %v2690
    %v2692 = vmul.f32 %v2691, 0.6931472
    %v2693 = vmul.f32 -0.5, %v2627
    %v2694 = vadd.f32 %v2693, 1.0
    %v2695 = vmul.f32 %v2694, %v2627
    %v2696 = vand.u32 2147483647, %v2627
    %vm2697 = vcmp.lt.f32.partialorder %v2696, 0.0004427343
    %v2698 = vsel %vm2697, %v2695, %v2692
    %v2699 = vadd.f32 %v2629, 1.0
    %v2700 = vlog2.pop %v2699
    %v2701 = vmul.f32 %v2700, 0.6931472
    %v2702 = vmul.f32 -0.5, %v2629
    %v2703 = vadd.f32 %v2702, 1.0
    %v2704 = vmul.f32 %v2703, %v2629
    %v2705 = vand.u32 2147483647, %v2629
    %vm2706 = vcmp.lt.f32.partialorder %v2705, 0.0004427343
    %v2707 = vsel %vm2706, %v2704, %v2701
    %v2708 = vadd.f32 %v2631, 1.0
    %v2709 = vlog2.pop %v2708
    %v2710 = vmul.f32 %v2709, 0.6931472
    %v2711 = vmul.f32 -0.5, %v2631
    %v2712 = vadd.f32 %v2711, 1.0
    %v2713 = vmul.f32 %v2712, %v2631
    %v2714 = vand.u32 2147483647, %v2631
    %vm2715 = vcmp.lt.f32.partialorder %v2714, 0.0004427343
    %v2716 = vsel %vm2715, %v2713, %v2710
    %v2717 = vadd.f32 %v2633, 1.0
    %v2718 = vlog2.pop %v2717
    %v2719 = vmul.f32 %v2718, 0.6931472
    %v2720 = vmul.f32 -0.5, %v2633
    %v2721 = vadd.f32 %v2720, 1.0
    %v2722 = vmul.f32 %v2721, %v2633
    %v2723 = vand.u32 2147483647, %v2633
    %vm2724 = vcmp.lt.f32.partialorder %v2723, 0.0004427343
    %v2725 = vsel %vm2724, %v2722, %v2719
    %v2726 = vadd.f32 %v2635, 1.0
    %v2727 = vlog2.pop %v2726
    %v2728 = vmul.f32 %v2727, 0.6931472
    %v2729 = vmul.f32 -0.5, %v2635
    %v2730 = vadd.f32 %v2729, 1.0
    %v2731 = vmul.f32 %v2730, %v2635
    %v2732 = vand.u32 2147483647, %v2635
    %vm2733 = vcmp.lt.f32.partialorder %v2732, 0.0004427343
    %v2734 = vsel %vm2733, %v2731, %v2728
    %v2735 = vadd.f32 %v2637, 1.0
    %v2736 = vlog2.pop %v2735
    %v2737 = vmul.f32 %v2736, 0.6931472
    %v2738 = vmul.f32 -0.5, %v2637
    %v2739 = vadd.f32 %v2738, 1.0
    %v2740 = vmul.f32 %v2739, %v2637
    %v2741 = vand.u32 2147483647, %v2637
    %vm2742 = vcmp.lt.f32.partialorder %v2741, 0.0004427343
    %v2743 = vsel %vm2742, %v2740, %v2737
    %v2744 = vadd.f32 %v2639, 1.0
    %v2745 = vlog2.pop %v2744
    %v2746 = vmul.f32 %v2745, 0.6931472
    %v2747 = vmul.f32 -0.5, %v2639
    %v2748 = vadd.f32 %v2747, 1.0
    %v2749 = vmul.f32 %v2748, %v2639
    %v2750 = vand.u32 2147483647, %v2639
    %vm2751 = vcmp.lt.f32.partialorder %v2750, 0.0004427343
    %v2752 = vsel %vm2751, %v2749, %v2746
    %v2753 = vadd.f32 %v2641, 1.0
    %v2754 = vlog2.pop %v2753
    %v2755 = vmul.f32 %v2754, 0.6931472
    %v2756 = vmul.f32 -0.5, %v2641
    %v2757 = vadd.f32 %v2756, 1.0
    %v2758 = vmul.f32 %v2757, %v2641
    %v2759 = vand.u32 2147483647, %v2641
    %vm2760 = vcmp.lt.f32.partialorder %v2759, 0.0004427343
    %v2761 = vsel %vm2760, %v2758, %v2755
    %v2762 = vadd.f32 %v2643, 1.0
    %v2763 = vlog2.pop %v2762
    %v2764 = vmul.f32 %v2763, 0.6931472
    %v2765 = vmul.f32 -0.5, %v2643
    %v2766 = vadd.f32 %v2765, 1.0
    %v2767 = vmul.f32 %v2766, %v2643
    %v2768 = vand.u32 2147483647, %v2643
    %vm2769 = vcmp.lt.f32.partialorder %v2768, 0.0004427343
    %v2770 = vsel %vm2769, %v2767, %v2764
    %v2771 = vadd.f32 %v2645, 1.0
    %v2772 = vlog2.pop %v2771
    %v2773 = vmul.f32 %v2772, 0.6931472
    %v2774 = vmul.f32 -0.5, %v2645
    %v2775 = vadd.f32 %v2774, 1.0
    %v2776 = vmul.f32 %v2775, %v2645
    %v2777 = vand.u32 2147483647, %v2645
    %vm2778 = vcmp.lt.f32.partialorder %v2777, 0.0004427343
    %v2779 = vsel %vm2778, %v2776, %v2773
    %v2780 = vadd.f32 %v2647, 1.0
    %v2781 = vlog2.pop %v2780
    %v2782 = vmul.f32 %v2781, 0.6931472
    %v2783 = vmul.f32 -0.5, %v2647
    %v2784 = vadd.f32 %v2783, 1.0
    %v2785 = vmul.f32 %v2784, %v2647
    %v2786 = vand.u32 2147483647, %v2647
    %vm2787 = vcmp.lt.f32.partialorder %v2786, 0.0004427343
    %v2788 = vsel %vm2787, %v2785, %v2782
    %v2789 = vadd.f32 %v2649, 1.0
    %v2790 = vlog2.pop %v2789
    %v2791 = vmul.f32 %v2790, 0.6931472
    %v2792 = vmul.f32 -0.5, %v2649
    %v2793 = vadd.f32 %v2792, 1.0
    %v2794 = vmul.f32 %v2793, %v2649
    %v2795 = vand.u32 2147483647, %v2649
    %vm2796 = vcmp.lt.f32.partialorder %v2795, 0.0004427343
    %v2797 = vsel %vm2796, %v2794, %v2791
    %v2798 = vadd.f32 %v2651, 1.0
    %v2799 = vlog2.pop %v2798
    %v2800 = vmul.f32 %v2799, 0.6931472
    %v2801 = vmul.f32 -0.5, %v2651
    %v2802 = vadd.f32 %v2801, 1.0
    %v2803 = vmul.f32 %v2802, %v2651
    %v2804 = vand.u32 2147483647, %v2651
    %vm2805 = vcmp.lt.f32.partialorder %v2804, 0.0004427343
    %v2806 = vsel %vm2805, %v2803, %v2800
    %v2807 = vadd.f32 %v2653, 1.0
    %v2808 = vlog2.pop %v2807
    %v2809 = vmul.f32 %v2808, 0.6931472
    %v2810 = vmul.f32 -0.5, %v2653
    %v2811 = vadd.f32 %v2810, 1.0
    %v2812 = vmul.f32 %v2811, %v2653
    %v2813 = vand.u32 2147483647, %v2653
    %vm2814 = vcmp.lt.f32.partialorder %v2813, 0.0004427343
    %v2815 = vsel %vm2814, %v2812, %v2809
    %v2816 = vadd.f32 %v2655, 1.0
    %v2817 = vlog2.pop %v2816
    %v2818 = vmul.f32 %v2817, 0.6931472
    %v2819 = vmul.f32 -0.5, %v2655
    %v2820 = vadd.f32 %v2819, 1.0
    %v2821 = vmul.f32 %v2820, %v2655
    %v2822 = vand.u32 2147483647, %v2655
    %vm2823 = vcmp.lt.f32.partialorder %v2822, 0.0004427343
    %v2824 = vsel %vm2823, %v2821, %v2818
    %v2825 = vadd.f32 %v2657, 1.0
    %v2826 = vlog2.pop %v2825
    %v2827 = vmul.f32 %v2826, 0.6931472
    %v2828 = vmul.f32 -0.5, %v2657
    %v2829 = vadd.f32 %v2828, 1.0
    %v2830 = vmul.f32 %v2829, %v2657
    %v2831 = vand.u32 2147483647, %v2657
    %vm2832 = vcmp.lt.f32.partialorder %v2831, 0.0004427343
    %v2833 = vsel %vm2832, %v2830, %v2827
    %v2834 = vadd.f32 %v2659, 1.0
    %v2835 = vlog2.pop %v2834
    %v2836 = vmul.f32 %v2835, 0.6931472
    %v2837 = vmul.f32 -0.5, %v2659
    %v2838 = vadd.f32 %v2837, 1.0
    %v2839 = vmul.f32 %v2838, %v2659
    %v2840 = vand.u32 2147483647, %v2659
    %vm2841 = vcmp.lt.f32.partialorder %v2840, 0.0004427343
    %v2842 = vsel %vm2841, %v2839, %v2836
    %v2843 = vadd.f32 %v2661, 1.0
    %v2844 = vlog2.pop %v2843
    %v2845 = vmul.f32 %v2844, 0.6931472
    %v2846 = vmul.f32 -0.5, %v2661
    %v2847 = vadd.f32 %v2846, 1.0
    %v2848 = vmul.f32 %v2847, %v2661
    %v2849 = vand.u32 2147483647, %v2661
    %vm2850 = vcmp.lt.f32.partialorder %v2849, 0.0004427343
    %v2851 = vsel %vm2850, %v2848, %v2845
    %v2852 = vadd.f32 %v2663, 1.0
    %v2853 = vlog2.pop %v2852
    %v2854 = vmul.f32 %v2853, 0.6931472
    %v2855 = vmul.f32 -0.5, %v2663
    %v2856 = vadd.f32 %v2855, 1.0
    %v2857 = vmul.f32 %v2856, %v2663
    %v2858 = vand.u32 2147483647, %v2663
    %vm2859 = vcmp.lt.f32.partialorder %v2858, 0.0004427343
    %v2860 = vsel %vm2859, %v2857, %v2854
    %v2861 = vadd.f32 %v2665, 1.0
    %v2862 = vlog2.pop %v2861
    %v2863 = vmul.f32 %v2862, 0.6931472
    %v2864 = vmul.f32 -0.5, %v2665
    %v2865 = vadd.f32 %v2864, 1.0
    %v2866 = vmul.f32 %v2865, %v2665
    %v2867 = vand.u32 2147483647, %v2665
    %vm2868 = vcmp.lt.f32.partialorder %v2867, 0.0004427343
    %v2869 = vsel %vm2868, %v2866, %v2863
    %v2870 = vadd.f32 %v2667, 1.0
    %v2871 = vlog2.pop %v2870
    %v2872 = vmul.f32 %v2871, 0.6931472
    %v2873 = vmul.f32 -0.5, %v2667
    %v2874 = vadd.f32 %v2873, 1.0
    %v2875 = vmul.f32 %v2874, %v2667
    %v2876 = vand.u32 2147483647, %v2667
    %vm2877 = vcmp.lt.f32.partialorder %v2876, 0.0004427343
    %v2878 = vsel %vm2877, %v2875, %v2872
    %v2879 = vadd.f32 %v2669, 1.0
    %v2880 = vlog2.pop %v2879
    %v2881 = vmul.f32 %v2880, 0.6931472
    %v2882 = vmul.f32 -0.5, %v2669
    %v2883 = vadd.f32 %v2882, 1.0
    %v2884 = vmul.f32 %v2883, %v2669
    %v2885 = vand.u32 2147483647, %v2669
    %vm2886 = vcmp.lt.f32.partialorder %v2885, 0.0004427343
    %v2887 = vsel %vm2886, %v2884, %v2881
    %v2888 = vadd.f32 %v2671, 1.0
    %v2889 = vlog2.pop %v2888
    %v2890 = vmul.f32 %v2889, 0.6931472
    %v2891 = vmul.f32 -0.5, %v2671
    %v2892 = vadd.f32 %v2891, 1.0
    %v2893 = vmul.f32 %v2892, %v2671
    %v2894 = vand.u32 2147483647, %v2671
    %vm2895 = vcmp.lt.f32.partialorder %v2894, 0.0004427343
    %v2896 = vsel %vm2895, %v2893, %v2890
    %v2897 = vadd.f32 %v2673, 1.0
    %v2898 = vlog2.pop %v2897
    %v2899 = vmul.f32 %v2898, 0.6931472
    %v2900 = vmul.f32 -0.5, %v2673
    %v2901 = vadd.f32 %v2900, 1.0
    %v2902 = vmul.f32 %v2901, %v2673
    %v2903 = vand.u32 2147483647, %v2673
    %vm2904 = vcmp.lt.f32.partialorder %v2903, 0.0004427343
    %v2905 = vsel %vm2904, %v2902, %v2899
    %v2906 = vadd.f32 %v2675, 1.0
    %v2907 = vlog2.pop %v2906
    %v2908 = vmul.f32 %v2907, 0.6931472
    %v2909 = vmul.f32 -0.5, %v2675
    %v2910 = vadd.f32 %v2909, 1.0
    %v2911 = vmul.f32 %v2910, %v2675
    %v2912 = vand.u32 2147483647, %v2675
    %vm2913 = vcmp.lt.f32.partialorder %v2912, 0.0004427343
    %v2914 = vsel %vm2913, %v2911, %v2908
    %v2915 = vadd.f32 %v2677, 1.0
    %v2916 = vlog2.pop %v2915
    %v2917 = vmul.f32 %v2916, 0.6931472
    %v2918 = vmul.f32 -0.5, %v2677
    %v2919 = vadd.f32 %v2918, 1.0
    %v2920 = vmul.f32 %v2919, %v2677
    %v2921 = vand.u32 2147483647, %v2677
    %vm2922 = vcmp.lt.f32.partialorder %v2921, 0.0004427343
    %v2923 = vsel %vm2922, %v2920, %v2917
    %v2924 = vadd.f32 %v2679, 1.0
    %v2925 = vlog2.pop %v2924
    %v2926 = vmul.f32 %v2925, 0.6931472
    %v2927 = vmul.f32 -0.5, %v2679
    %v2928 = vadd.f32 %v2927, 1.0
    %v2929 = vmul.f32 %v2928, %v2679
    %v2930 = vand.u32 2147483647, %v2679
    %vm2931 = vcmp.lt.f32.partialorder %v2930, 0.0004427343
    %v2932 = vsel %vm2931, %v2929, %v2926
    %v2933 = vadd.f32 %v2681, 1.0
    %v2934 = vlog2.pop %v2933
    %v2935 = vmul.f32 %v2934, 0.6931472
    %v2936 = vmul.f32 -0.5, %v2681
    %v2937 = vadd.f32 %v2936, 1.0
    %v2938 = vmul.f32 %v2937, %v2681
    %v2939 = vand.u32 2147483647, %v2681
    %vm2940 = vcmp.lt.f32.partialorder %v2939, 0.0004427343
    %v2941 = vsel %vm2940, %v2938, %v2935
    %v2942 = vadd.f32 %v2683, 1.0
    %v2943 = vlog2.pop %v2942
    %v2944 = vmul.f32 %v2943, 0.6931472
    %v2945 = vmul.f32 -0.5, %v2683
    %v2946 = vadd.f32 %v2945, 1.0
    %v2947 = vmul.f32 %v2946, %v2683
    %v2948 = vand.u32 2147483647, %v2683
    %vm2949 = vcmp.lt.f32.partialorder %v2948, 0.0004427343
    %v2950 = vsel %vm2949, %v2947, %v2944
    %v2951 = vadd.f32 %v2685, 1.0
    %v2952 = vlog2.pop %v2951
    %v2953 = vmul.f32 %v2952, 0.6931472
    %v2954 = vmul.f32 -0.5, %v2685
    %v2955 = vadd.f32 %v2954, 1.0
    %v2956 = vmul.f32 %v2955, %v2685
    %v2957 = vand.u32 2147483647, %v2685
    %vm2958 = vcmp.lt.f32.partialorder %v2957, 0.0004427343
    %v2959 = vsel %vm2958, %v2956, %v2953
    %v2960 = vadd.f32 %v2687, 1.0
    %v2961 = vlog2.pop %v2960
    %v2962 = vmul.f32 %v2961, 0.6931472
    %v2963 = vmul.f32 -0.5, %v2687
    %v2964 = vadd.f32 %v2963, 1.0
    %v2965 = vmul.f32 %v2964, %v2687
    %v2966 = vand.u32 2147483647, %v2687
    %vm2967 = vcmp.lt.f32.partialorder %v2966, 0.0004427343
    %v2968 = vsel %vm2967, %v2965, %v2962
    %v2969 = vadd.f32 %v2689, 1.0
    %v2970 = vlog2.pop %v2969
    %v2971 = vmul.f32 %v2970, 0.6931472
    %v2972 = vmul.f32 -0.5, %v2689
    %v2973 = vadd.f32 %v2972, 1.0
    %v2974 = vmul.f32 %v2973, %v2689
    %v2975 = vand.u32 2147483647, %v2689
    %vm2976 = vcmp.lt.f32.partialorder %v2975, 0.0004427343
    %v2977 = vsel %vm2976, %v2974, %v2971
    %v2978 = vadd.f32 %v2530, %v2698
    %v2979 = vadd.f32 %v2531, %v2707
    %v2980 = vadd.f32 %v2532, %v2716
    %v2981 = vadd.f32 %v2533, %v2725
    %v2982 = vadd.f32 %v2534, %v2734
    %v2983 = vadd.f32 %v2535, %v2743
    %v2984 = vadd.f32 %v2536, %v2752
    %v2985 = vadd.f32 %v2537, %v2761
    %v2986 = vadd.f32 %v2538, %v2770
    %v2987 = vadd.f32 %v2539, %v2779
    %v2988 = vadd.f32 %v2540, %v2788
    %v2989 = vadd.f32 %v2541, %v2797
    %v2990 = vadd.f32 %v2542, %v2806
    %v2991 = vadd.f32 %v2543, %v2815
    %v2992 = vadd.f32 %v2544, %v2824
    %v2993 = vadd.f32 %v2545, %v2833
    %v2994 = vadd.f32 %v2546, %v2842
    %v2995 = vadd.f32 %v2547, %v2851
    %v2996 = vadd.f32 %v2548, %v2860
    %v2997 = vadd.f32 %v2549, %v2869
    %v2998 = vadd.f32 %v2550, %v2878
    %v2999 = vadd.f32 %v2551, %v2887
    %v3000 = vadd.f32 %v2552, %v2896
    %v3001 = vadd.f32 %v2553, %v2905
    %v3002 = vadd.f32 %v2554, %v2914
    %v3003 = vadd.f32 %v2555, %v2923
    %v3004 = vadd.f32 %v2556, %v2932
    %v3005 = vadd.f32 %v2557, %v2941
    %v3006 = vadd.f32 %v2558, %v2950
    %v3007 = vadd.f32 %v2559, %v2959
    %v3008 = vadd.f32 %v2560, %v2968
    %v3009 = vadd.f32 %v2561, %v2977
    %v3010 = vpack.c.bf16 %v2979, %v2978
    %v3011 = vpack.c.bf16 %v2981, %v2980
    %v3012 = vpack.c.bf16 %v2983, %v2982
    %v3013 = vpack.c.bf16 %v2985, %v2984
    %v3014 = vpack.c.bf16 %v2987, %v2986
    %v3015 = vpack.c.bf16 %v2989, %v2988
    %v3016 = vpack.c.bf16 %v2991, %v2990
    %v3017 = vpack.c.bf16 %v2993, %v2992
    %v3018 = vpack.c.bf16 %v2995, %v2994
    %v3019 = vpack.c.bf16 %v2997, %v2996
    %v3020 = vpack.c.bf16 %v2999, %v2998
    %v3021 = vpack.c.bf16 %v3001, %v3000
    %v3022 = vpack.c.bf16 %v3003, %v3002
    %v3023 = vpack.c.bf16 %v3005, %v3004
    %v3024 = vpack.c.bf16 %v3007, %v3006
    %v3025 = vpack.c.bf16 %v3009, %v3008
    %v3027 = vperm.slane %v2194, 0
    %v3045 = vunpack.c.l.b16 %v2177
    %v3046 = vunpack.c.l.b16 %v2178
    %v3047 = vunpack.c.l.b16 %v2179
    %v3048 = vunpack.c.l.b16 %v2180
    %v3049 = vunpack.c.l.b16 %v2181
    %v3050 = vunpack.c.l.b16 %v2182
    %v3051 = vunpack.c.l.b16 %v2183
    %v3052 = vunpack.c.l.b16 %v2184
    %v3053 = vunpack.c.l.b16 %v2185
    %v3054 = vunpack.c.l.b16 %v2186
    %v3055 = vunpack.c.l.b16 %v2187
    %v3056 = vunpack.c.l.b16 %v2188
    %v3057 = vunpack.c.l.b16 %v2189
    %v3058 = vunpack.c.l.b16 %v2190
    %v3059 = vunpack.c.l.b16 %v2191
    %v3060 = vunpack.c.l.b16 %v2192
    %v3061 = vpack.c.b16 %v3046, %v3045
    %v3062 = vpack.c.b16 %v3048, %v3047
    %v3063 = vpack.c.b16 %v3050, %v3049
    %v3064 = vpack.c.b16 %v3052, %v3051
    %v3065 = vpack.c.b16 %v3054, %v3053
    %v3066 = vpack.c.b16 %v3056, %v3055
    %v3067 = vpack.c.b16 %v3058, %v3057
    %v3068 = vpack.c.b16 %v3060, %v3059
    %3077 = vmatpush.bf16.msra.mxu0 %v3068
    %3078 = vmatpush.bf16.msra.mxu0 %v3067
    %3079 = vmatpush.bf16.msra.mxu0 %v3066
    %3080 = vmatpush.bf16.msra.mxu0 %v3065
    %3081 = vmatpush.bf16.msra.mxu0 %v3064
    %3082 = vmatpush.bf16.msra.mxu0 %v3063
    %3083 = vmatpush.bf16.msra.mxu0 %v3062
    %3084 = vmatpush.bf16.msra.mxu0 %v3061
    %3085 = vmatmul.bf16.gmra.mxu0 %v3010
    %v3086 = vpop.f32.mrf.mxu0
    %v3087 = vadd.f32 %v3027, %v3086
    %v3088 = vpop.f32.mrf.mxu0
    %v3089 = vadd.f32 %v3027, %v3088
    %3090 = vmatmul.bf16.gmra.mxu0 %v3011
    %v3091 = vpop.f32.mrf.mxu0
    %v3092 = vadd.f32 %v3027, %v3091
    %v3093 = vpop.f32.mrf.mxu0
    %v3094 = vadd.f32 %v3027, %v3093
    %3095 = vmatmul.bf16.gmra.mxu0 %v3012
    %v3096 = vpop.f32.mrf.mxu0
    %v3097 = vadd.f32 %v3027, %v3096
    %v3098 = vpop.f32.mrf.mxu0
    %v3099 = vadd.f32 %v3027, %v3098
    %3100 = vmatmul.bf16.gmra.mxu0 %v3013
    %v3101 = vpop.f32.mrf.mxu0
    %v3102 = vadd.f32 %v3027, %v3101
    %v3103 = vpop.f32.mrf.mxu0
    %v3104 = vadd.f32 %v3027, %v3103
    %3105 = vmatmul.bf16.gmra.mxu0 %v3014
    %v3106 = vpop.f32.mrf.mxu0
    %v3107 = vadd.f32 %v3027, %v3106
    %v3108 = vpop.f32.mrf.mxu0
    %v3109 = vadd.f32 %v3027, %v3108
    %3110 = vmatmul.bf16.gmra.mxu0 %v3015
    %v3111 = vpop.f32.mrf.mxu0
    %v3112 = vadd.f32 %v3027, %v3111
    %v3113 = vpop.f32.mrf.mxu0
    %v3114 = vadd.f32 %v3027, %v3113
    %3115 = vmatmul.bf16.gmra.mxu0 %v3016
    %v3116 = vpop.f32.mrf.mxu0
    %v3117 = vadd.f32 %v3027, %v3116
    %v3118 = vpop.f32.mrf.mxu0
    %v3119 = vadd.f32 %v3027, %v3118
    %3120 = vmatmul.bf16.gmra.mxu0 %v3017
    %v3121 = vpop.f32.mrf.mxu0
    %v3122 = vadd.f32 %v3027, %v3121
    %v3123 = vpop.f32.mrf.mxu0
    %v3124 = vadd.f32 %v3027, %v3123
    %3125 = vmatmul.bf16.gmra.mxu0 %v3018
    %v3126 = vpop.f32.mrf.mxu0
    %v3127 = vadd.f32 %v3027, %v3126
    %v3128 = vpop.f32.mrf.mxu0
    %v3129 = vadd.f32 %v3027, %v3128
    %3130 = vmatmul.bf16.gmra.mxu0 %v3019
    %v3131 = vpop.f32.mrf.mxu0
    %v3132 = vadd.f32 %v3027, %v3131
    %v3133 = vpop.f32.mrf.mxu0
    %v3134 = vadd.f32 %v3027, %v3133
    %3135 = vmatmul.bf16.gmra.mxu0 %v3020
    %v3136 = vpop.f32.mrf.mxu0
    %v3137 = vadd.f32 %v3027, %v3136
    %v3138 = vpop.f32.mrf.mxu0
    %v3139 = vadd.f32 %v3027, %v3138
    %3140 = vmatmul.bf16.gmra.mxu0 %v3021
    %v3141 = vpop.f32.mrf.mxu0
    %v3142 = vadd.f32 %v3027, %v3141
    %v3143 = vpop.f32.mrf.mxu0
    %v3144 = vadd.f32 %v3027, %v3143
    %3145 = vmatmul.bf16.gmra.mxu0 %v3022
    %v3146 = vpop.f32.mrf.mxu0
    %v3147 = vadd.f32 %v3027, %v3146
    %v3148 = vpop.f32.mrf.mxu0
    %v3149 = vadd.f32 %v3027, %v3148
    %3150 = vmatmul.bf16.gmra.mxu0 %v3023
    %v3151 = vpop.f32.mrf.mxu0
    %v3152 = vadd.f32 %v3027, %v3151
    %v3153 = vpop.f32.mrf.mxu0
    %v3154 = vadd.f32 %v3027, %v3153
    %3155 = vmatmul.bf16.gmra.mxu0 %v3024
    %v3156 = vpop.f32.mrf.mxu0
    %v3157 = vadd.f32 %v3027, %v3156
    %v3158 = vpop.f32.mrf.mxu0
    %v3159 = vadd.f32 %v3027, %v3158
    %3160 = vmatmul.bf16.gmra.mxu0 %v3025
    %v3161 = vpop.f32.mrf.mxu0
    %v3162 = vadd.f32 %v3027, %v3161
    %v3163 = vpop.f32.mrf.mxu0
    %v3164 = vadd.f32 %v3027, %v3163
    %3165 = vdwg.mxu0
    %v3166 = vld [vmem:[%s1] sm:$0xff]
    %v3167 = vld [vmem:[%s1 + $0x8] sm:$0xff]
    %v3168 = vld [vmem:[%s1 + $0x10] sm:$0xff]
    %v3169 = vld [vmem:[%s1 + $0x18] sm:$0xff]
    %v3170 = vld [vmem:[%s1 + $0x20] sm:$0xff]
    %v3171 = vld [vmem:[%s1 + $0x28] sm:$0xff]
    %v3172 = vld [vmem:[%s1 + $0x30] sm:$0xff]
    %v3173 = vld [vmem:[%s1 + $0x38] sm:$0xff]
    %v3174 = vld [vmem:[%s1 + $0x40] sm:$0xff]
    %v3175 = vld [vmem:[%s1 + $0x48] sm:$0xff]
    %v3176 = vld [vmem:[%s1 + $0x50] sm:$0xff]
    %v3177 = vld [vmem:[%s1 + $0x58] sm:$0xff]
    %v3178 = vld [vmem:[%s1 + $0x60] sm:$0xff]
    %v3179 = vld [vmem:[%s1 + $0x68] sm:$0xff]
    %v3180 = vld [vmem:[%s1 + $0x70] sm:$0xff]
    %v3181 = vld [vmem:[%s1 + $0x78] sm:$0xff]
    %v3182 = vld [vmem:[%s1 + $0x80] sm:$0xff]
    %v3183 = vld [vmem:[%s1 + $0x88] sm:$0xff]
    %v3184 = vld [vmem:[%s1 + $0x90] sm:$0xff]
    %v3185 = vld [vmem:[%s1 + $0x98] sm:$0xff]
    %v3186 = vld [vmem:[%s1 + $0xa0] sm:$0xff]
    %v3187 = vld [vmem:[%s1 + $0xa8] sm:$0xff]
    %v3188 = vld [vmem:[%s1 + $0xb0] sm:$0xff]
    %v3189 = vld [vmem:[%s1 + $0xb8] sm:$0xff]
    %v3190 = vld [vmem:[%s1 + $0xc0] sm:$0xff]
    %v3191 = vld [vmem:[%s1 + $0xc8] sm:$0xff]
    %v3192 = vld [vmem:[%s1 + $0xd0] sm:$0xff]
    %v3193 = vld [vmem:[%s1 + $0xd8] sm:$0xff]
    %v3194 = vld [vmem:[%s1 + $0xe0] sm:$0xff]
    %v3195 = vld [vmem:[%s1 + $0xe8] sm:$0xff]
    %v3196 = vld [vmem:[%s1 + $0xf0] sm:$0xff]
    %v3197 = vld [vmem:[%s1 + $0xf8] sm:$0xff]
    %v3198 = vld [vmem:[#allocation3] sm:$0xff]
    %v3199 = vld [vmem:[#allocation3 + $0x8] sm:$0xff]
    %3201 = vset.pattern.permute.xlu0 0
    %3202 = vperm.xlu0 %3201, %v3166
    %v3203 = vpop.permute.xlu0 %3202
    %3206 = vset.pattern.permute.xlu0 0
    %3207 = vperm.xlu0 %3206, %v3167
    %v3208 = vpop.permute.xlu0 %3207
    %3211 = vset.pattern.permute.xlu0 0
    %3212 = vperm.xlu0 %3211, %v3168
    %v3213 = vpop.permute.xlu0 %3212
    %3216 = vset.pattern.permute.xlu0 0
    %3217 = vperm.xlu0 %3216, %v3169
    %v3218 = vpop.permute.xlu0 %3217
    %3221 = vset.pattern.permute.xlu0 0
    %3222 = vperm.xlu0 %3221, %v3170
    %v3223 = vpop.permute.xlu0 %3222
    %3226 = vset.pattern.permute.xlu0 0
    %3227 = vperm.xlu0 %3226, %v3171
    %v3228 = vpop.permute.xlu0 %3227
    %3231 = vset.pattern.permute.xlu0 0
    %3232 = vperm.xlu0 %3231, %v3172
    %v3233 = vpop.permute.xlu0 %3232
    %3236 = vset.pattern.permute.xlu0 0
    %3237 = vperm.xlu0 %3236, %v3173
    %v3238 = vpop.permute.xlu0 %3237
    %3241 = vset.pattern.permute.xlu0 0
    %3242 = vperm.xlu0 %3241, %v3174
    %v3243 = vpop.permute.xlu0 %3242
    %3246 = vset.pattern.permute.xlu0 0
    %3247 = vperm.xlu0 %3246, %v3175
    %v3248 = vpop.permute.xlu0 %3247
    %3251 = vset.pattern.permute.xlu0 0
    %3252 = vperm.xlu0 %3251, %v3176
    %v3253 = vpop.permute.xlu0 %3252
    %3256 = vset.pattern.permute.xlu0 0
    %3257 = vperm.xlu0 %3256, %v3177
    %v3258 = vpop.permute.xlu0 %3257
    %3261 = vset.pattern.permute.xlu0 0
    %3262 = vperm.xlu0 %3261, %v3178
    %v3263 = vpop.permute.xlu0 %3262
    %3266 = vset.pattern.permute.xlu0 0
    %3267 = vperm.xlu0 %3266, %v3179
    %v3268 = vpop.permute.xlu0 %3267
    %3271 = vset.pattern.permute.xlu0 0
    %3272 = vperm.xlu0 %3271, %v3180
    %v3273 = vpop.permute.xlu0 %3272
    %3276 = vset.pattern.permute.xlu0 0
    %3277 = vperm.xlu0 %3276, %v3181
    %v3278 = vpop.permute.xlu0 %3277
    %3281 = vset.pattern.permute.xlu0 0
    %3282 = vperm.xlu0 %3281, %v3182
    %v3283 = vpop.permute.xlu0 %3282
    %3286 = vset.pattern.permute.xlu0 0
    %3287 = vperm.xlu0 %3286, %v3183
    %v3288 = vpop.permute.xlu0 %3287
    %3291 = vset.pattern.permute.xlu0 0
    %3292 = vperm.xlu0 %3291, %v3184
    %v3293 = vpop.permute.xlu0 %3292
    %3296 = vset.pattern.permute.xlu0 0
    %3297 = vperm.xlu0 %3296, %v3185
    %v3298 = vpop.permute.xlu0 %3297
    %3301 = vset.pattern.permute.xlu0 0
    %3302 = vperm.xlu0 %3301, %v3186
    %v3303 = vpop.permute.xlu0 %3302
    %3306 = vset.pattern.permute.xlu0 0
    %3307 = vperm.xlu0 %3306, %v3187
    %v3308 = vpop.permute.xlu0 %3307
    %3311 = vset.pattern.permute.xlu0 0
    %3312 = vperm.xlu0 %3311, %v3188
    %v3313 = vpop.permute.xlu0 %3312
    %3316 = vset.pattern.permute.xlu0 0
    %3317 = vperm.xlu0 %3316, %v3189
    %v3318 = vpop.permute.xlu0 %3317
    %3321 = vset.pattern.permute.xlu0 0
    %3322 = vperm.xlu0 %3321, %v3190
    %v3323 = vpop.permute.xlu0 %3322
    %3326 = vset.pattern.permute.xlu0 0
    %3327 = vperm.xlu0 %3326, %v3191
    %v3328 = vpop.permute.xlu0 %3327
    %3331 = vset.pattern.permute.xlu0 0
    %3332 = vperm.xlu0 %3331, %v3192
    %v3333 = vpop.permute.xlu0 %3332
    %3336 = vset.pattern.permute.xlu0 0
    %3337 = vperm.xlu0 %3336, %v3193
    %v3338 = vpop.permute.xlu0 %3337
    %3341 = vset.pattern.permute.xlu0 0
    %3342 = vperm.xlu0 %3341, %v3194
    %v3343 = vpop.permute.xlu0 %3342
    %3346 = vset.pattern.permute.xlu0 0
    %3347 = vperm.xlu0 %3346, %v3195
    %v3348 = vpop.permute.xlu0 %3347
    %3351 = vset.pattern.permute.xlu0 0
    %3352 = vperm.xlu0 %3351, %v3196
    %v3353 = vpop.permute.xlu0 %3352
    %3356 = vset.pattern.permute.xlu0 0
    %3357 = vperm.xlu0 %3356, %v3197
    %v3358 = vpop.permute.xlu0 %3357
    %v3360 = vmul.f32 %v3087, %v3203
    %v3361 = vmul.f32 %v3089, %v3208
    %v3362 = vmul.f32 %v3092, %v3213
    %v3363 = vmul.f32 %v3094, %v3218
    %v3364 = vmul.f32 %v3097, %v3223
    %v3365 = vmul.f32 %v3099, %v3228
    %v3366 = vmul.f32 %v3102, %v3233
    %v3367 = vmul.f32 %v3104, %v3238
    %v3368 = vmul.f32 %v3107, %v3243
    %v3369 = vmul.f32 %v3109, %v3248
    %v3370 = vmul.f32 %v3112, %v3253
    %v3371 = vmul.f32 %v3114, %v3258
    %v3372 = vmul.f32 %v3117, %v3263
    %v3373 = vmul.f32 %v3119, %v3268
    %v3374 = vmul.f32 %v3122, %v3273
    %v3375 = vmul.f32 %v3124, %v3278
    %v3376 = vmul.f32 %v3127, %v3283
    %v3377 = vmul.f32 %v3129, %v3288
    %v3378 = vmul.f32 %v3132, %v3293
    %v3379 = vmul.f32 %v3134, %v3298
    %v3380 = vmul.f32 %v3137, %v3303
    %v3381 = vmul.f32 %v3139, %v3308
    %v3382 = vmul.f32 %v3142, %v3313
    %v3383 = vmul.f32 %v3144, %v3318
    %v3384 = vmul.f32 %v3147, %v3323
    %v3385 = vmul.f32 %v3149, %v3328
    %v3386 = vmul.f32 %v3152, %v3333
    %v3387 = vmul.f32 %v3154, %v3338
    %v3388 = vmul.f32 %v3157, %v3343
    %v3389 = vmul.f32 %v3159, %v3348
    %v3390 = vmul.f32 %v3162, %v3353
    %v3391 = vmul.f32 %v3164, %v3358
    %v3394 = vrot.slane %v3198, 1
    %v3395 = vrot.slane %v3198, 2
    %v3396 = vrot.slane %v3198, 3
    %v3397 = vrot.slane %v3198, 4
    %v3398 = vrot.slane %v3198, 5
    %v3399 = vrot.slane %v3198, 6
    %v3400 = vrot.slane %v3198, 7
    %v3401 = vrot.slane %v3199, 1
    %v3402 = vrot.slane %v3199, 2
    %v3403 = vrot.slane %v3199, 3
    %v3404 = vrot.slane %v3199, 4
    %v3405 = vrot.slane %v3199, 5
    %v3406 = vrot.slane %v3199, 6
    %v3407 = vrot.slane %v3199, 7
    %v3408 = vperm.slane %v3198, 0
    %v3409 = vperm.slane %v3394, 0
    %v3410 = vperm.slane %v3395, 0
    %v3411 = vperm.slane %v3396, 0
    %v3412 = vperm.slane %v3397, 0
    %v3413 = vperm.slane %v3398, 0
    %v3414 = vperm.slane %v3399, 0
    %v3415 = vperm.slane %v3400, 0
    %v3416 = vperm.slane %v3199, 0
    %v3417 = vperm.slane %v3401, 0
    %v3418 = vperm.slane %v3402, 0
    %v3419 = vperm.slane %v3403, 0
    %v3420 = vperm.slane %v3404, 0
    %v3421 = vperm.slane %v3405, 0
    %v3422 = vperm.slane %v3406, 0
    %v3423 = vperm.slane %v3407, 0
    %v3440 = vmul.f32 %v3360, %v3408
    %v3441 = vmul.f32 %v3361, %v3408
    %v3442 = vmul.f32 %v3362, %v3409
    %v3443 = vmul.f32 %v3363, %v3409
    %v3444 = vmul.f32 %v3364, %v3410
    %v3445 = vmul.f32 %v3365, %v3410
    %v3446 = vmul.f32 %v3366, %v3411
    %v3447 = vmul.f32 %v3367, %v3411
    %v3448 = vmul.f32 %v3368, %v3412
    %v3449 = vmul.f32 %v3369, %v3412
    %v3450 = vmul.f32 %v3370, %v3413
    %v3451 = vmul.f32 %v3371, %v3413
    %v3452 = vmul.f32 %v3372, %v3414
    %v3453 = vmul.f32 %v3373, %v3414
    %v3454 = vmul.f32 %v3374, %v3415
    %v3455 = vmul.f32 %v3375, %v3415
    %v3456 = vmul.f32 %v3376, %v3416
    %v3457 = vmul.f32 %v3377, %v3416
    %v3458 = vmul.f32 %v3378, %v3417
    %v3459 = vmul.f32 %v3379, %v3417
    %v3460 = vmul.f32 %v3380, %v3418
    %v3461 = vmul.f32 %v3381, %v3418
    %v3462 = vmul.f32 %v3382, %v3419
    %v3463 = vmul.f32 %v3383, %v3419
    %v3464 = vmul.f32 %v3384, %v3420
    %v3465 = vmul.f32 %v3385, %v3420
    %v3466 = vmul.f32 %v3386, %v3421
    %v3467 = vmul.f32 %v3387, %v3421
    %v3468 = vmul.f32 %v3388, %v3422
    %v3469 = vmul.f32 %v3389, %v3422
    %v3470 = vmul.f32 %v3390, %v3423
    %v3471 = vmul.f32 %v3391, %v3423
    %v3472 = vadd.f32 %v3440, %v3442
    %v3473 = vadd.f32 %v3472, %v3444
    %v3474 = vadd.f32 %v3473, %v3446
    %v3475 = vadd.f32 %v3474, %v3448
    %v3476 = vadd.f32 %v3475, %v3450
    %v3477 = vadd.f32 %v3476, %v3452
    %v3478 = vadd.f32 %v3477, %v3454
    %v3479 = vadd.f32 %v3478, %v3456
    %v3480 = vadd.f32 %v3479, %v3458
    %v3481 = vadd.f32 %v3480, %v3460
    %v3482 = vadd.f32 %v3481, %v3462
    %v3483 = vadd.f32 %v3482, %v3464
    %v3484 = vadd.f32 %v3483, %v3466
    %v3485 = vadd.f32 %v3484, %v3468
    %v3486 = vadd.f32 %v3485, %v3470
    %v3487 = vadd.f32 %v3441, %v3443
    %v3488 = vadd.f32 %v3487, %v3445
    %v3489 = vadd.f32 %v3488, %v3447
    %v3490 = vadd.f32 %v3489, %v3449
    %v3491 = vadd.f32 %v3490, %v3451
    %v3492 = vadd.f32 %v3491, %v3453
    %v3493 = vadd.f32 %v3492, %v3455
    %v3494 = vadd.f32 %v3493, %v3457
    %v3495 = vadd.f32 %v3494, %v3459
    %v3496 = vadd.f32 %v3495, %v3461
    %v3497 = vadd.f32 %v3496, %v3463
    %v3498 = vadd.f32 %v3497, %v3465
    %v3499 = vadd.f32 %v3498, %v3467
    %v3500 = vadd.f32 %v3499, %v3469
    %v3501 = vadd.f32 %v3500, %v3471
    %v3502 = vld [vmem:[#allocation4] sm:$0xff]
    %v3503 = vld [vmem:[#allocation4 + $0x8] sm:$0xff]
    %v3504 = vadd.f32 %v3502, %v3486
    %v3505 = vadd.f32 %v3503, %v3501
    %3506 = vst [vmem:[#allocation4] sm:$0xff] %v3504
    %3507 = vst [vmem:[#allocation4 + $0x8] sm:$0xff] %v3505
    %v3508 = vld [vmem:[#allocation4] sm:$0xff]
    %v3509 = vld [vmem:[#allocation4 + $0x8] sm:$0xff]
    %v3510 = vpack.c.bf16 %v3509, %v3508
    %s3511 = scalar_lea.vmem [#allocation11], 64
    %v3512 = vld [vmem:[%s3511] sm:$0xf]
    %v3513 = vld [vmem:[%s3511 + $0x4] sm:$0xf]
    %v3514 = vld [vmem:[%s3511 + $0x8] sm:$0xf]
    %v3515 = vld [vmem:[%s3511 + $0xc] sm:$0xf]
    %v3516 = vld [vmem:[%s3511 + $0x10] sm:$0xf]
    %v3517 = vld [vmem:[%s3511 + $0x14] sm:$0xf]
    %v3518 = vld [vmem:[%s3511 + $0x18] sm:$0xf]
    %v3519 = vld [vmem:[%s3511 + $0x1c] sm:$0xf]
    %v3520 = vld [vmem:[%s3511 + $0x20] sm:$0xf]
    %v3521 = vld [vmem:[%s3511 + $0x24] sm:$0xf]
    %v3522 = vld [vmem:[%s3511 + $0x28] sm:$0xf]
    %v3523 = vld [vmem:[%s3511 + $0x2c] sm:$0xf]
    %v3524 = vld [vmem:[%s3511 + $0x30] sm:$0xf]
    %v3525 = vld [vmem:[%s3511 + $0x34] sm:$0xf]
    %v3526 = vld [vmem:[%s3511 + $0x38] sm:$0xf]
    %v3527 = vld [vmem:[%s3511 + $0x3c] sm:$0xf]
    %s3528 = scalar_lea.vmem [#allocation13], 1
    %v3529 = vld [vmem:[%s3528] sm:$0x1]
    %v3531 = vperm.slane %v3529, 0
    %v3549 = vunpack.c.l.b16 %v3512
    %v3550 = vunpack.c.l.b16 %v3513
    %v3551 = vunpack.c.l.b16 %v3514
    %v3552 = vunpack.c.l.b16 %v3515
    %v3553 = vunpack.c.l.b16 %v3516
    %v3554 = vunpack.c.l.b16 %v3517
    %v3555 = vunpack.c.l.b16 %v3518
    %v3556 = vunpack.c.l.b16 %v3519
    %v3557 = vunpack.c.l.b16 %v3520
    %v3558 = vunpack.c.l.b16 %v3521
    %v3559 = vunpack.c.l.b16 %v3522
    %v3560 = vunpack.c.l.b16 %v3523
    %v3561 = vunpack.c.l.b16 %v3524
    %v3562 = vunpack.c.l.b16 %v3525
    %v3563 = vunpack.c.l.b16 %v3526
    %v3564 = vunpack.c.l.b16 %v3527
    %v3565 = vpack.c.b16 %v3550, %v3549
    %v3566 = vpack.c.b16 %v3552, %v3551
    %v3567 = vpack.c.b16 %v3554, %v3553
    %v3568 = vpack.c.b16 %v3556, %v3555
    %v3569 = vpack.c.b16 %v3558, %v3557
    %v3570 = vpack.c.b16 %v3560, %v3559
    %v3571 = vpack.c.b16 %v3562, %v3561
    %v3572 = vpack.c.b16 %v3564, %v3563
    %3581 = vmatpush.bf16.msra.mxu0 %v3572
    %3582 = vmatpush.bf16.msra.mxu0 %v3571
    %3583 = vmatpush.bf16.msra.mxu0 %v3570
    %3584 = vmatpush.bf16.msra.mxu0 %v3569
    %3585 = vmatpush.bf16.msra.mxu0 %v3568
    %3586 = vmatpush.bf16.msra.mxu0 %v3567
    %3587 = vmatpush.bf16.msra.mxu0 %v3566
    %3588 = vmatpush.bf16.msra.mxu0 %v3565
    %3589 = vmatmul.bf16.gmra.mxu0 %v3510
    %v3590 = vpop.f32.mrf.mxu0
    %v3591 = vadd.f32 %v3531, %v3590
    %v3592 = vpop.f32.mrf.mxu0
    %v3593 = vadd.f32 %v3531, %v3592
    %3594 = vdwg.mxu0
    %v3595 = vmax.f32 %v3591, 0.0
    %v3596 = vmax.f32 %v3593, 0.0
    %v3597 = vand.u32 2147483647, %v3591
    %v3598 = vand.u32 2147483647, %v3593
    %v3599 = vsub.f32 0.0, %v3597
    %v3600 = vsub.f32 0.0, %v3598
    %v3601 = vmul.f32 %v3599, 1.442695
    %v3602 = vpow.pop %v3601
    %v3603 = vmul.f32 %v3600, 1.442695
    %v3604 = vpow.pop %v3603
    %v3605 = vadd.f32 %v3602, 1.0
    %v3606 = vlog2.pop %v3605
    %v3607 = vmul.f32 %v3606, 0.6931472
    %v3608 = vmul.f32 -0.5, %v3602
    %v3609 = vadd.f32 %v3608, 1.0
    %v3610 = vmul.f32 %v3609, %v3602
    %v3611 = vand.u32 2147483647, %v3602
    %vm3612 = vcmp.lt.f32.partialorder %v3611, 0.0004427343
    %v3613 = vsel %vm3612, %v3610, %v3607
    %v3614 = vadd.f32 %v3604, 1.0
    %v3615 = vlog2.pop %v3614
    %v3616 = vmul.f32 %v3615, 0.6931472
    %v3617 = vmul.f32 -0.5, %v3604
    %v3618 = vadd.f32 %v3617, 1.0
    %v3619 = vmul.f32 %v3618, %v3604
    %v3620 = vand.u32 2147483647, %v3604
    %vm3621 = vcmp.lt.f32.partialorder %v3620, 0.0004427343
    %v3622 = vsel %vm3621, %v3619, %v3616
    %v3623 = vadd.f32 %v3595, %v3613
    %v3624 = vadd.f32 %v3596, %v3622
    %v3625 = vpack.c.bf16 %v3624, %v3623
    %s3626 = scalar_lea.vmem [#allocation14], 64
    %v3627 = vld [vmem:[%s3626] sm:$0xf]
    %v3628 = vld [vmem:[%s3626 + $0x4] sm:$0xf]
    %v3629 = vld [vmem:[%s3626 + $0x8] sm:$0xf]
    %v3630 = vld [vmem:[%s3626 + $0xc] sm:$0xf]
    %v3631 = vld [vmem:[%s3626 + $0x10] sm:$0xf]
    %v3632 = vld [vmem:[%s3626 + $0x14] sm:$0xf]
    %v3633 = vld [vmem:[%s3626 + $0x18] sm:$0xf]
    %v3634 = vld [vmem:[%s3626 + $0x1c] sm:$0xf]
    %v3635 = vld [vmem:[%s3626 + $0x20] sm:$0xf]
    %v3636 = vld [vmem:[%s3626 + $0x24] sm:$0xf]
    %v3637 = vld [vmem:[%s3626 + $0x28] sm:$0xf]
    %v3638 = vld [vmem:[%s3626 + $0x2c] sm:$0xf]
    %v3639 = vld [vmem:[%s3626 + $0x30] sm:$0xf]
    %v3640 = vld [vmem:[%s3626 + $0x34] sm:$0xf]
    %v3641 = vld [vmem:[%s3626 + $0x38] sm:$0xf]
    %v3642 = vld [vmem:[%s3626 + $0x3c] sm:$0xf]
    %v3659 = vunpack.c.l.b16 %v3627
    %v3660 = vunpack.c.l.b16 %v3628
    %v3661 = vunpack.c.l.b16 %v3629
    %v3662 = vunpack.c.l.b16 %v3630
    %v3663 = vunpack.c.l.b16 %v3631
    %v3664 = vunpack.c.l.b16 %v3632
    %v3665 = vunpack.c.l.b16 %v3633
    %v3666 = vunpack.c.l.b16 %v3634
    %v3667 = vunpack.c.l.b16 %v3635
    %v3668 = vunpack.c.l.b16 %v3636
    %v3669 = vunpack.c.l.b16 %v3637
    %v3670 = vunpack.c.l.b16 %v3638
    %v3671 = vunpack.c.l.b16 %v3639
    %v3672 = vunpack.c.l.b16 %v3640
    %v3673 = vunpack.c.l.b16 %v3641
    %v3674 = vunpack.c.l.b16 %v3642
    %v3675 = vpack.c.b16 %v3660, %v3659
    %v3676 = vpack.c.b16 %v3662, %v3661
    %v3677 = vpack.c.b16 %v3664, %v3663
    %v3678 = vpack.c.b16 %v3666, %v3665
    %v3679 = vpack.c.b16 %v3668, %v3667
    %v3680 = vpack.c.b16 %v3670, %v3669
    %v3681 = vpack.c.b16 %v3672, %v3671
    %v3682 = vpack.c.b16 %v3674, %v3673
    %3691 = vmatpush.bf16.msra.mxu0 %v3682
    %3692 = vmatpush.bf16.msra.mxu0 %v3681
    %3693 = vmatpush.bf16.msra.mxu0 %v3680
    %3694 = vmatpush.bf16.msra.mxu0 %v3679
    %3695 = vmatpush.bf16.msra.mxu0 %v3678
    %3696 = vmatpush.bf16.msra.mxu0 %v3677
    %3697 = vmatpush.bf16.msra.mxu0 %v3676
    %3698 = vmatpush.bf16.msra.mxu0 %v3675
    %3699 = vmatmul.bf16.gmra.mxu0 %v3625
    %v3700 = vpop.f32.mrf.mxu0
    %v3701 = vadd.f32 0.0, %v3700
    %v3702 = vpop.f32.mrf.mxu0
    %v3703 = vadd.f32 0.0, %v3702
    %3704 = vdwg.mxu0
    %v3705 = vadd.f32 %v2138, %v3701
    %v3706 = vadd.f32 %v2139, %v3703
    %s3707 = scalar_lea.vmem %s13, 1
    %v3708 = vld [vmem:[%s3707] sm:$0x1]
    %v3710 = vperm.slane %v3708, 0
    %v3712 = vadd.f32 %v3705, %v3710
    %v3713 = vadd.f32 %v3706, %v3710
    %s3714 = scalar_lea.vmem %s5, 128
    %v3715 = vld [vmem:[%s3714] sm:$0xf]
    %v3716 = vld [vmem:[%s3714 + $0x4] sm:$0xf]
    %v3717 = vld [vmem:[%s3714 + $0x8] sm:$0xf]
    %v3718 = vld [vmem:[%s3714 + $0xc] sm:$0xf]
    %v3719 = vld [vmem:[%s3714 + $0x10] sm:$0xf]
    %v3720 = vld [vmem:[%s3714 + $0x14] sm:$0xf]
    %v3721 = vld [vmem:[%s3714 + $0x18] sm:$0xf]
    %v3722 = vld [vmem:[%s3714 + $0x1c] sm:$0xf]
    %v3723 = vld [vmem:[%s3714 + $0x20] sm:$0xf]
    %v3724 = vld [vmem:[%s3714 + $0x24] sm:$0xf]
    %v3725 = vld [vmem:[%s3714 + $0x28] sm:$0xf]
    %v3726 = vld [vmem:[%s3714 + $0x2c] sm:$0xf]
    %v3727 = vld [vmem:[%s3714 + $0x30] sm:$0xf]
    %v3728 = vld [vmem:[%s3714 + $0x34] sm:$0xf]
    %v3729 = vld [vmem:[%s3714 + $0x38] sm:$0xf]
    %v3730 = vld [vmem:[%s3714 + $0x3c] sm:$0xf]
    %s3731 = scalar_lea.vmem %s6, 128
    %v3732 = vld [vmem:[%s3731] sm:$0xf]
    %v3733 = vld [vmem:[%s3731 + $0x4] sm:$0xf]
    %v3734 = vld [vmem:[%s3731 + $0x8] sm:$0xf]
    %v3735 = vld [vmem:[%s3731 + $0xc] sm:$0xf]
    %v3736 = vld [vmem:[%s3731 + $0x10] sm:$0xf]
    %v3737 = vld [vmem:[%s3731 + $0x14] sm:$0xf]
    %v3738 = vld [vmem:[%s3731 + $0x18] sm:$0xf]
    %v3739 = vld [vmem:[%s3731 + $0x1c] sm:$0xf]
    %v3740 = vld [vmem:[%s3731 + $0x20] sm:$0xf]
    %v3741 = vld [vmem:[%s3731 + $0x24] sm:$0xf]
    %v3742 = vld [vmem:[%s3731 + $0x28] sm:$0xf]
    %v3743 = vld [vmem:[%s3731 + $0x2c] sm:$0xf]
    %v3744 = vld [vmem:[%s3731 + $0x30] sm:$0xf]
    %v3745 = vld [vmem:[%s3731 + $0x34] sm:$0xf]
    %v3746 = vld [vmem:[%s3731 + $0x38] sm:$0xf]
    %v3747 = vld [vmem:[%s3731 + $0x3c] sm:$0xf]
    %s3748 = scalar_lea.vmem %s7, 2
    %v3749 = vld [vmem:[%s3748] sm:$0x1]
    %s3750 = scalar_lea.vmem [#allocation10], 128
    %v3751 = vld [vmem:[%s3750] sm:$0xf]
    %v3752 = vld [vmem:[%s3750 + $0x4] sm:$0xf]
    %v3753 = vld [vmem:[%s3750 + $0x8] sm:$0xf]
    %v3754 = vld [vmem:[%s3750 + $0xc] sm:$0xf]
    %v3755 = vld [vmem:[%s3750 + $0x10] sm:$0xf]
    %v3756 = vld [vmem:[%s3750 + $0x14] sm:$0xf]
    %v3757 = vld [vmem:[%s3750 + $0x18] sm:$0xf]
    %v3758 = vld [vmem:[%s3750 + $0x1c] sm:$0xf]
    %v3759 = vld [vmem:[%s3750 + $0x20] sm:$0xf]
    %v3760 = vld [vmem:[%s3750 + $0x24] sm:$0xf]
    %v3761 = vld [vmem:[%s3750 + $0x28] sm:$0xf]
    %v3762 = vld [vmem:[%s3750 + $0x2c] sm:$0xf]
    %v3763 = vld [vmem:[%s3750 + $0x30] sm:$0xf]
    %v3764 = vld [vmem:[%s3750 + $0x34] sm:$0xf]
    %v3765 = vld [vmem:[%s3750 + $0x38] sm:$0xf]
    %v3766 = vld [vmem:[%s3750 + $0x3c] sm:$0xf]
    %s3767 = scalar_lea.vmem %s9, 2
    %v3768 = vld [vmem:[%s3767] sm:$0x1]
    %v3769 = vpack.c.bf16 %v3713, %v3712
    %v3786 = vunpack.c.l.b16 %v3715
    %v3787 = vunpack.c.l.b16 %v3716
    %v3788 = vunpack.c.l.b16 %v3717
    %v3789 = vunpack.c.l.b16 %v3718
    %v3790 = vunpack.c.l.b16 %v3719
    %v3791 = vunpack.c.l.b16 %v3720
    %v3792 = vunpack.c.l.b16 %v3721
    %v3793 = vunpack.c.l.b16 %v3722
    %v3794 = vunpack.c.l.b16 %v3723
    %v3795 = vunpack.c.l.b16 %v3724
    %v3796 = vunpack.c.l.b16 %v3725
    %v3797 = vunpack.c.l.b16 %v3726
    %v3798 = vunpack.c.l.b16 %v3727
    %v3799 = vunpack.c.l.b16 %v3728
    %v3800 = vunpack.c.l.b16 %v3729
    %v3801 = vunpack.c.l.b16 %v3730
    %v3802 = vpack.c.b16 %v3787, %v3786
    %v3803 = vpack.c.b16 %v3789, %v3788
    %v3804 = vpack.c.b16 %v3791, %v3790
    %v3805 = vpack.c.b16 %v3793, %v3792
    %v3806 = vpack.c.b16 %v3795, %v3794
    %v3807 = vpack.c.b16 %v3797, %v3796
    %v3808 = vpack.c.b16 %v3799, %v3798
    %v3809 = vpack.c.b16 %v3801, %v3800
    %3818 = vmatpush.bf16.msra.mxu0 %v3809
    %3819 = vmatpush.bf16.msra.mxu0 %v3808
    %3820 = vmatpush.bf16.msra.mxu0 %v3807
    %3821 = vmatpush.bf16.msra.mxu0 %v3806
    %3822 = vmatpush.bf16.msra.mxu0 %v3805
    %3823 = vmatpush.bf16.msra.mxu0 %v3804
    %3824 = vmatpush.bf16.msra.mxu0 %v3803
    %3825 = vmatpush.bf16.msra.mxu0 %v3802
    %3826 = vmatmul.bf16.gmra.mxu0 %v3769
    %v3827 = vpop.f32.mrf.mxu0
    %v3828 = vadd.f32 0.0, %v3827
    %v3829 = vpop.f32.mrf.mxu0
    %v3830 = vadd.f32 0.0, %v3829
    %3831 = vdwg.mxu0
    %3832 = vst [vmem:[#allocation3] sm:$0xff] %v3828
    %3833 = vst [vmem:[#allocation3 + $0x8] sm:$0xff] %v3830
    %3834 = vst [vmem:[#allocation4] sm:$0xff] 0.0
    %3835 = vst [vmem:[#allocation4 + $0x8] sm:$0xff] 0.0
    %v3836 = vld [vmem:[#allocation2] sm:$0xf]
    %v3837 = vld [vmem:[#allocation2 + $0x4] sm:$0xf]
    %v3838 = vld [vmem:[#allocation2 + $0x8] sm:$0xf]
    %v3839 = vld [vmem:[#allocation2 + $0xc] sm:$0xf]
    %v3840 = vld [vmem:[#allocation2 + $0x10] sm:$0xf]
    %v3841 = vld [vmem:[#allocation2 + $0x14] sm:$0xf]
    %v3842 = vld [vmem:[#allocation2 + $0x18] sm:$0xf]
    %v3843 = vld [vmem:[#allocation2 + $0x1c] sm:$0xf]
    %v3844 = vld [vmem:[#allocation2 + $0x20] sm:$0xf]
    %v3845 = vld [vmem:[#allocation2 + $0x24] sm:$0xf]
    %v3846 = vld [vmem:[#allocation2 + $0x28] sm:$0xf]
    %v3847 = vld [vmem:[#allocation2 + $0x2c] sm:$0xf]
    %v3848 = vld [vmem:[#allocation2 + $0x30] sm:$0xf]
    %v3849 = vld [vmem:[#allocation2 + $0x34] sm:$0xf]
    %v3850 = vld [vmem:[#allocation2 + $0x38] sm:$0xf]
    %v3851 = vld [vmem:[#allocation2 + $0x3c] sm:$0xf]
    %v3852 = vld [vmem:[#allocation2 + $0x40] sm:$0xf]
    %v3853 = vld [vmem:[#allocation2 + $0x44] sm:$0xf]
    %v3854 = vld [vmem:[#allocation2 + $0x48] sm:$0xf]
    %v3855 = vld [vmem:[#allocation2 + $0x4c] sm:$0xf]
    %v3856 = vld [vmem:[#allocation2 + $0x50] sm:$0xf]
    %v3857 = vld [vmem:[#allocation2 + $0x54] sm:$0xf]
    %v3858 = vld [vmem:[#allocation2 + $0x58] sm:$0xf]
    %v3859 = vld [vmem:[#allocation2 + $0x5c] sm:$0xf]
    %v3860 = vld [vmem:[#allocation2 + $0x60] sm:$0xf]
    %v3861 = vld [vmem:[#allocation2 + $0x64] sm:$0xf]
    %v3862 = vld [vmem:[#allocation2 + $0x68] sm:$0xf]
    %v3863 = vld [vmem:[#allocation2 + $0x6c] sm:$0xf]
    %v3864 = vld [vmem:[#allocation2 + $0x70] sm:$0xf]
    %v3865 = vld [vmem:[#allocation2 + $0x74] sm:$0xf]
    %v3866 = vld [vmem:[#allocation2 + $0x78] sm:$0xf]
    %v3867 = vld [vmem:[#allocation2 + $0x7c] sm:$0xf]
    %v3869 = vperm.slane %v3749, 0
    %v3903 = vunpack.c.l.b16 %v3836
    %v3904 = vunpack.c.l.b16 %v3837
    %v3905 = vunpack.c.l.b16 %v3838
    %v3906 = vunpack.c.l.b16 %v3839
    %v3907 = vunpack.c.l.b16 %v3840
    %v3908 = vunpack.c.l.b16 %v3841
    %v3909 = vunpack.c.l.b16 %v3842
    %v3910 = vunpack.c.l.b16 %v3843
    %v3911 = vunpack.c.l.b16 %v3844
    %v3912 = vunpack.c.l.b16 %v3845
    %v3913 = vunpack.c.l.b16 %v3846
    %v3914 = vunpack.c.l.b16 %v3847
    %v3915 = vunpack.c.l.b16 %v3848
    %v3916 = vunpack.c.l.b16 %v3849
    %v3917 = vunpack.c.l.b16 %v3850
    %v3918 = vunpack.c.l.b16 %v3851
    %v3919 = vunpack.c.l.b16 %v3852
    %v3920 = vunpack.c.l.b16 %v3853
    %v3921 = vunpack.c.l.b16 %v3854
    %v3922 = vunpack.c.l.b16 %v3855
    %v3923 = vunpack.c.l.b16 %v3856
    %v3924 = vunpack.c.l.b16 %v3857
    %v3925 = vunpack.c.l.b16 %v3858
    %v3926 = vunpack.c.l.b16 %v3859
    %v3927 = vunpack.c.l.b16 %v3860
    %v3928 = vunpack.c.l.b16 %v3861
    %v3929 = vunpack.c.l.b16 %v3862
    %v3930 = vunpack.c.l.b16 %v3863
    %v3931 = vunpack.c.l.b16 %v3864
    %v3932 = vunpack.c.l.b16 %v3865
    %v3933 = vunpack.c.l.b16 %v3866
    %v3934 = vunpack.c.l.b16 %v3867
    %v3935 = vpack.c.b16 %v3904, %v3903
    %v3936 = vpack.c.b16 %v3906, %v3905
    %v3937 = vpack.c.b16 %v3908, %v3907
    %v3938 = vpack.c.b16 %v3910, %v3909
    %v3939 = vpack.c.b16 %v3912, %v3911
    %v3940 = vpack.c.b16 %v3914, %v3913
    %v3941 = vpack.c.b16 %v3916, %v3915
    %v3942 = vpack.c.b16 %v3918, %v3917
    %v3943 = vpack.c.b16 %v3920, %v3919
    %v3944 = vpack.c.b16 %v3922, %v3921
    %v3945 = vpack.c.b16 %v3924, %v3923
    %v3946 = vpack.c.b16 %v3926, %v3925
    %v3947 = vpack.c.b16 %v3928, %v3927
    %v3948 = vpack.c.b16 %v3930, %v3929
    %v3949 = vpack.c.b16 %v3932, %v3931
    %v3950 = vpack.c.b16 %v3934, %v3933
    %v3983 = vunpack.c.l.b16 %v3732
    %v3984 = vunpack.c.l.b16 %v3733
    %v3985 = vunpack.c.l.b16 %v3734
    %v3986 = vunpack.c.l.b16 %v3735
    %v3987 = vunpack.c.l.b16 %v3736
    %v3988 = vunpack.c.l.b16 %v3737
    %v3989 = vunpack.c.l.b16 %v3738
    %v3990 = vunpack.c.l.b16 %v3739
    %v3991 = vunpack.c.l.b16 %v3740
    %v3992 = vunpack.c.l.b16 %v3741
    %v3993 = vunpack.c.l.b16 %v3742
    %v3994 = vunpack.c.l.b16 %v3743
    %v3995 = vunpack.c.l.b16 %v3744
    %v3996 = vunpack.c.l.b16 %v3745
    %v3997 = vunpack.c.l.b16 %v3746
    %v3998 = vunpack.c.l.b16 %v3747
    %v3999 = vpack.c.b16 %v3984, %v3983
    %v4000 = vpack.c.b16 %v3986, %v3985
    %v4001 = vpack.c.b16 %v3988, %v3987
    %v4002 = vpack.c.b16 %v3990, %v3989
    %v4003 = vpack.c.b16 %v3992, %v3991
    %v4004 = vpack.c.b16 %v3994, %v3993
    %v4005 = vpack.c.b16 %v3996, %v3995
    %v4006 = vpack.c.b16 %v3998, %v3997
    %4015 = vmatpush.bf16.msra.mxu0 %v4006
    %4016 = vmatpush.bf16.msra.mxu0 %v4005
    %4017 = vmatpush.bf16.msra.mxu0 %v4004
    %4018 = vmatpush.bf16.msra.mxu0 %v4003
    %4019 = vmatpush.bf16.msra.mxu0 %v4002
    %4020 = vmatpush.bf16.msra.mxu0 %v4001
    %4021 = vmatpush.bf16.msra.mxu0 %v4000
    %4022 = vmatpush.bf16.msra.mxu0 %v3999
    %4023 = vmatmul.bf16.gmra.mxu0 %v3935
    %v4024 = vpop.f32.mrf.mxu0
    %v4025 = vadd.f32 %v3869, %v4024
    %v4026 = vpop.f32.mrf.mxu0
    %v4027 = vadd.f32 %v3869, %v4026
    %4028 = vmatmul.bf16.gmra.mxu0 %v3936
    %v4029 = vpop.f32.mrf.mxu0
    %v4030 = vadd.f32 %v3869, %v4029
    %v4031 = vpop.f32.mrf.mxu0
    %v4032 = vadd.f32 %v3869, %v4031
    %4033 = vmatmul.bf16.gmra.mxu0 %v3937
    %v4034 = vpop.f32.mrf.mxu0
    %v4035 = vadd.f32 %v3869, %v4034
    %v4036 = vpop.f32.mrf.mxu0
    %v4037 = vadd.f32 %v3869, %v4036
    %4038 = vmatmul.bf16.gmra.mxu0 %v3938
    %v4039 = vpop.f32.mrf.mxu0
    %v4040 = vadd.f32 %v3869, %v4039
    %v4041 = vpop.f32.mrf.mxu0
    %v4042 = vadd.f32 %v3869, %v4041
    %4043 = vmatmul.bf16.gmra.mxu0 %v3939
    %v4044 = vpop.f32.mrf.mxu0
    %v4045 = vadd.f32 %v3869, %v4044
    %v4046 = vpop.f32.mrf.mxu0
    %v4047 = vadd.f32 %v3869, %v4046
    %4048 = vmatmul.bf16.gmra.mxu0 %v3940
    %v4049 = vpop.f32.mrf.mxu0
    %v4050 = vadd.f32 %v3869, %v4049
    %v4051 = vpop.f32.mrf.mxu0
    %v4052 = vadd.f32 %v3869, %v4051
    %4053 = vmatmul.bf16.gmra.mxu0 %v3941
    %v4054 = vpop.f32.mrf.mxu0
    %v4055 = vadd.f32 %v3869, %v4054
    %v4056 = vpop.f32.mrf.mxu0
    %v4057 = vadd.f32 %v3869, %v4056
    %4058 = vmatmul.bf16.gmra.mxu0 %v3942
    %v4059 = vpop.f32.mrf.mxu0
    %v4060 = vadd.f32 %v3869, %v4059
    %v4061 = vpop.f32.mrf.mxu0
    %v4062 = vadd.f32 %v3869, %v4061
    %4063 = vmatmul.bf16.gmra.mxu0 %v3943
    %v4064 = vpop.f32.mrf.mxu0
    %v4065 = vadd.f32 %v3869, %v4064
    %v4066 = vpop.f32.mrf.mxu0
    %v4067 = vadd.f32 %v3869, %v4066
    %4068 = vmatmul.bf16.gmra.mxu0 %v3944
    %v4069 = vpop.f32.mrf.mxu0
    %v4070 = vadd.f32 %v3869, %v4069
    %v4071 = vpop.f32.mrf.mxu0
    %v4072 = vadd.f32 %v3869, %v4071
    %4073 = vmatmul.bf16.gmra.mxu0 %v3945
    %v4074 = vpop.f32.mrf.mxu0
    %v4075 = vadd.f32 %v3869, %v4074
    %v4076 = vpop.f32.mrf.mxu0
    %v4077 = vadd.f32 %v3869, %v4076
    %4078 = vmatmul.bf16.gmra.mxu0 %v3946
    %v4079 = vpop.f32.mrf.mxu0
    %v4080 = vadd.f32 %v3869, %v4079
    %v4081 = vpop.f32.mrf.mxu0
    %v4082 = vadd.f32 %v3869, %v4081
    %4083 = vmatmul.bf16.gmra.mxu0 %v3947
    %v4084 = vpop.f32.mrf.mxu0
    %v4085 = vadd.f32 %v3869, %v4084
    %v4086 = vpop.f32.mrf.mxu0
    %v4087 = vadd.f32 %v3869, %v4086
    %4088 = vmatmul.bf16.gmra.mxu0 %v3948
    %v4089 = vpop.f32.mrf.mxu0
    %v4090 = vadd.f32 %v3869, %v4089
    %v4091 = vpop.f32.mrf.mxu0
    %v4092 = vadd.f32 %v3869, %v4091
    %4093 = vmatmul.bf16.gmra.mxu0 %v3949
    %v4094 = vpop.f32.mrf.mxu0
    %v4095 = vadd.f32 %v3869, %v4094
    %v4096 = vpop.f32.mrf.mxu0
    %v4097 = vadd.f32 %v3869, %v4096
    %4098 = vmatmul.bf16.gmra.mxu0 %v3950
    %v4099 = vpop.f32.mrf.mxu0
    %v4100 = vadd.f32 %v3869, %v4099
    %v4101 = vpop.f32.mrf.mxu0
    %v4102 = vadd.f32 %v3869, %v4101
    %4103 = vdwg.mxu0
    %v4104 = vmax.f32 %v4025, 0.0
    %v4105 = vmax.f32 %v4027, 0.0
    %v4106 = vmax.f32 %v4030, 0.0
    %v4107 = vmax.f32 %v4032, 0.0
    %v4108 = vmax.f32 %v4035, 0.0
    %v4109 = vmax.f32 %v4037, 0.0
    %v4110 = vmax.f32 %v4040, 0.0
    %v4111 = vmax.f32 %v4042, 0.0
    %v4112 = vmax.f32 %v4045, 0.0
    %v4113 = vmax.f32 %v4047, 0.0
    %v4114 = vmax.f32 %v4050, 0.0
    %v4115 = vmax.f32 %v4052, 0.0
    %v4116 = vmax.f32 %v4055, 0.0
    %v4117 = vmax.f32 %v4057, 0.0
    %v4118 = vmax.f32 %v4060, 0.0
    %v4119 = vmax.f32 %v4062, 0.0
    %v4120 = vmax.f32 %v4065, 0.0
    %v4121 = vmax.f32 %v4067, 0.0
    %v4122 = vmax.f32 %v4070, 0.0
    %v4123 = vmax.f32 %v4072, 0.0
    %v4124 = vmax.f32 %v4075, 0.0
    %v4125 = vmax.f32 %v4077, 0.0
    %v4126 = vmax.f32 %v4080, 0.0
    %v4127 = vmax.f32 %v4082, 0.0
    %v4128 = vmax.f32 %v4085, 0.0
    %v4129 = vmax.f32 %v4087, 0.0
    %v4130 = vmax.f32 %v4090, 0.0
    %v4131 = vmax.f32 %v4092, 0.0
    %v4132 = vmax.f32 %v4095, 0.0
    %v4133 = vmax.f32 %v4097, 0.0
    %v4134 = vmax.f32 %v4100, 0.0
    %v4135 = vmax.f32 %v4102, 0.0
    %v4136 = vand.u32 2147483647, %v4025
    %v4137 = vand.u32 2147483647, %v4027
    %v4138 = vand.u32 2147483647, %v4030
    %v4139 = vand.u32 2147483647, %v4032
    %v4140 = vand.u32 2147483647, %v4035
    %v4141 = vand.u32 2147483647, %v4037
    %v4142 = vand.u32 2147483647, %v4040
    %v4143 = vand.u32 2147483647, %v4042
    %v4144 = vand.u32 2147483647, %v4045
    %v4145 = vand.u32 2147483647, %v4047
    %v4146 = vand.u32 2147483647, %v4050
    %v4147 = vand.u32 2147483647, %v4052
    %v4148 = vand.u32 2147483647, %v4055
    %v4149 = vand.u32 2147483647, %v4057
    %v4150 = vand.u32 2147483647, %v4060
    %v4151 = vand.u32 2147483647, %v4062
    %v4152 = vand.u32 2147483647, %v4065
    %v4153 = vand.u32 2147483647, %v4067
    %v4154 = vand.u32 2147483647, %v4070
    %v4155 = vand.u32 2147483647, %v4072
    %v4156 = vand.u32 2147483647, %v4075
    %v4157 = vand.u32 2147483647, %v4077
    %v4158 = vand.u32 2147483647, %v4080
    %v4159 = vand.u32 2147483647, %v4082
    %v4160 = vand.u32 2147483647, %v4085
    %v4161 = vand.u32 2147483647, %v4087
    %v4162 = vand.u32 2147483647, %v4090
    %v4163 = vand.u32 2147483647, %v4092
    %v4164 = vand.u32 2147483647, %v4095
    %v4165 = vand.u32 2147483647, %v4097
    %v4166 = vand.u32 2147483647, %v4100
    %v4167 = vand.u32 2147483647, %v4102
    %v4168 = vsub.f32 0.0, %v4136
    %v4169 = vsub.f32 0.0, %v4137
    %v4170 = vsub.f32 0.0, %v4138
    %v4171 = vsub.f32 0.0, %v4139
    %v4172 = vsub.f32 0.0, %v4140
    %v4173 = vsub.f32 0.0, %v4141
    %v4174 = vsub.f32 0.0, %v4142
    %v4175 = vsub.f32 0.0, %v4143
    %v4176 = vsub.f32 0.0, %v4144
    %v4177 = vsub.f32 0.0, %v4145
    %v4178 = vsub.f32 0.0, %v4146
    %v4179 = vsub.f32 0.0, %v4147
    %v4180 = vsub.f32 0.0, %v4148
    %v4181 = vsub.f32 0.0, %v4149
    %v4182 = vsub.f32 0.0, %v4150
    %v4183 = vsub.f32 0.0, %v4151
    %v4184 = vsub.f32 0.0, %v4152
    %v4185 = vsub.f32 0.0, %v4153
    %v4186 = vsub.f32 0.0, %v4154
    %v4187 = vsub.f32 0.0, %v4155
    %v4188 = vsub.f32 0.0, %v4156
    %v4189 = vsub.f32 0.0, %v4157
    %v4190 = vsub.f32 0.0, %v4158
    %v4191 = vsub.f32 0.0, %v4159
    %v4192 = vsub.f32 0.0, %v4160
    %v4193 = vsub.f32 0.0, %v4161
    %v4194 = vsub.f32 0.0, %v4162
    %v4195 = vsub.f32 0.0, %v4163
    %v4196 = vsub.f32 0.0, %v4164
    %v4197 = vsub.f32 0.0, %v4165
    %v4198 = vsub.f32 0.0, %v4166
    %v4199 = vsub.f32 0.0, %v4167
    %v4200 = vmul.f32 %v4168, 1.442695
    %v4201 = vpow.pop %v4200
    %v4202 = vmul.f32 %v4169, 1.442695
    %v4203 = vpow.pop %v4202
    %v4204 = vmul.f32 %v4170, 1.442695
    %v4205 = vpow.pop %v4204
    %v4206 = vmul.f32 %v4171, 1.442695
    %v4207 = vpow.pop %v4206
    %v4208 = vmul.f32 %v4172, 1.442695
    %v4209 = vpow.pop %v4208
    %v4210 = vmul.f32 %v4173, 1.442695
    %v4211 = vpow.pop %v4210
    %v4212 = vmul.f32 %v4174, 1.442695
    %v4213 = vpow.pop %v4212
    %v4214 = vmul.f32 %v4175, 1.442695
    %v4215 = vpow.pop %v4214
    %v4216 = vmul.f32 %v4176, 1.442695
    %v4217 = vpow.pop %v4216
    %v4218 = vmul.f32 %v4177, 1.442695
    %v4219 = vpow.pop %v4218
    %v4220 = vmul.f32 %v4178, 1.442695
    %v4221 = vpow.pop %v4220
    %v4222 = vmul.f32 %v4179, 1.442695
    %v4223 = vpow.pop %v4222
    %v4224 = vmul.f32 %v4180, 1.442695
    %v4225 = vpow.pop %v4224
    %v4226 = vmul.f32 %v4181, 1.442695
    %v4227 = vpow.pop %v4226
    %v4228 = vmul.f32 %v4182, 1.442695
    %v4229 = vpow.pop %v4228
    %v4230 = vmul.f32 %v4183, 1.442695
    %v4231 = vpow.pop %v4230
    %v4232 = vmul.f32 %v4184, 1.442695
    %v4233 = vpow.pop %v4232
    %v4234 = vmul.f32 %v4185, 1.442695
    %v4235 = vpow.pop %v4234
    %v4236 = vmul.f32 %v4186, 1.442695
    %v4237 = vpow.pop %v4236
    %v4238 = vmul.f32 %v4187, 1.442695
    %v4239 = vpow.pop %v4238
    %v4240 = vmul.f32 %v4188, 1.442695
    %v4241 = vpow.pop %v4240
    %v4242 = vmul.f32 %v4189, 1.442695
    %v4243 = vpow.pop %v4242
    %v4244 = vmul.f32 %v4190, 1.442695
    %v4245 = vpow.pop %v4244
    %v4246 = vmul.f32 %v4191, 1.442695
    %v4247 = vpow.pop %v4246
    %v4248 = vmul.f32 %v4192, 1.442695
    %v4249 = vpow.pop %v4248
    %v4250 = vmul.f32 %v4193, 1.442695
    %v4251 = vpow.pop %v4250
    %v4252 = vmul.f32 %v4194, 1.442695
    %v4253 = vpow.pop %v4252
    %v4254 = vmul.f32 %v4195, 1.442695
    %v4255 = vpow.pop %v4254
    %v4256 = vmul.f32 %v4196, 1.442695
    %v4257 = vpow.pop %v4256
    %v4258 = vmul.f32 %v4197, 1.442695
    %v4259 = vpow.pop %v4258
    %v4260 = vmul.f32 %v4198, 1.442695
    %v4261 = vpow.pop %v4260
    %v4262 = vmul.f32 %v4199, 1.442695
    %v4263 = vpow.pop %v4262
    %v4264 = vadd.f32 %v4201, 1.0
    %v4265 = vlog2.pop %v4264
    %v4266 = vmul.f32 %v4265, 0.6931472
    %v4267 = vmul.f32 -0.5, %v4201
    %v4268 = vadd.f32 %v4267, 1.0
    %v4269 = vmul.f32 %v4268, %v4201
    %v4270 = vand.u32 2147483647, %v4201
    %vm4271 = vcmp.lt.f32.partialorder %v4270, 0.0004427343
    %v4272 = vsel %vm4271, %v4269, %v4266
    %v4273 = vadd.f32 %v4203, 1.0
    %v4274 = vlog2.pop %v4273
    %v4275 = vmul.f32 %v4274, 0.6931472
    %v4276 = vmul.f32 -0.5, %v4203
    %v4277 = vadd.f32 %v4276, 1.0
    %v4278 = vmul.f32 %v4277, %v4203
    %v4279 = vand.u32 2147483647, %v4203
    %vm4280 = vcmp.lt.f32.partialorder %v4279, 0.0004427343
    %v4281 = vsel %vm4280, %v4278, %v4275
    %v4282 = vadd.f32 %v4205, 1.0
    %v4283 = vlog2.pop %v4282
    %v4284 = vmul.f32 %v4283, 0.6931472
    %v4285 = vmul.f32 -0.5, %v4205
    %v4286 = vadd.f32 %v4285, 1.0
    %v4287 = vmul.f32 %v4286, %v4205
    %v4288 = vand.u32 2147483647, %v4205
    %vm4289 = vcmp.lt.f32.partialorder %v4288, 0.0004427343
    %v4290 = vsel %vm4289, %v4287, %v4284
    %v4291 = vadd.f32 %v4207, 1.0
    %v4292 = vlog2.pop %v4291
    %v4293 = vmul.f32 %v4292, 0.6931472
    %v4294 = vmul.f32 -0.5, %v4207
    %v4295 = vadd.f32 %v4294, 1.0
    %v4296 = vmul.f32 %v4295, %v4207
    %v4297 = vand.u32 2147483647, %v4207
    %vm4298 = vcmp.lt.f32.partialorder %v4297, 0.0004427343
    %v4299 = vsel %vm4298, %v4296, %v4293
    %v4300 = vadd.f32 %v4209, 1.0
    %v4301 = vlog2.pop %v4300
    %v4302 = vmul.f32 %v4301, 0.6931472
    %v4303 = vmul.f32 -0.5, %v4209
    %v4304 = vadd.f32 %v4303, 1.0
    %v4305 = vmul.f32 %v4304, %v4209
    %v4306 = vand.u32 2147483647, %v4209
    %vm4307 = vcmp.lt.f32.partialorder %v4306, 0.0004427343
    %v4308 = vsel %vm4307, %v4305, %v4302
    %v4309 = vadd.f32 %v4211, 1.0
    %v4310 = vlog2.pop %v4309
    %v4311 = vmul.f32 %v4310, 0.6931472
    %v4312 = vmul.f32 -0.5, %v4211
    %v4313 = vadd.f32 %v4312, 1.0
    %v4314 = vmul.f32 %v4313, %v4211
    %v4315 = vand.u32 2147483647, %v4211
    %vm4316 = vcmp.lt.f32.partialorder %v4315, 0.0004427343
    %v4317 = vsel %vm4316, %v4314, %v4311
    %v4318 = vadd.f32 %v4213, 1.0
    %v4319 = vlog2.pop %v4318
    %v4320 = vmul.f32 %v4319, 0.6931472
    %v4321 = vmul.f32 -0.5, %v4213
    %v4322 = vadd.f32 %v4321, 1.0
    %v4323 = vmul.f32 %v4322, %v4213
    %v4324 = vand.u32 2147483647, %v4213
    %vm4325 = vcmp.lt.f32.partialorder %v4324, 0.0004427343
    %v4326 = vsel %vm4325, %v4323, %v4320
    %v4327 = vadd.f32 %v4215, 1.0
    %v4328 = vlog2.pop %v4327
    %v4329 = vmul.f32 %v4328, 0.6931472
    %v4330 = vmul.f32 -0.5, %v4215
    %v4331 = vadd.f32 %v4330, 1.0
    %v4332 = vmul.f32 %v4331, %v4215
    %v4333 = vand.u32 2147483647, %v4215
    %vm4334 = vcmp.lt.f32.partialorder %v4333, 0.0004427343
    %v4335 = vsel %vm4334, %v4332, %v4329
    %v4336 = vadd.f32 %v4217, 1.0
    %v4337 = vlog2.pop %v4336
    %v4338 = vmul.f32 %v4337, 0.6931472
    %v4339 = vmul.f32 -0.5, %v4217
    %v4340 = vadd.f32 %v4339, 1.0
    %v4341 = vmul.f32 %v4340, %v4217
    %v4342 = vand.u32 2147483647, %v4217
    %vm4343 = vcmp.lt.f32.partialorder %v4342, 0.0004427343
    %v4344 = vsel %vm4343, %v4341, %v4338
    %v4345 = vadd.f32 %v4219, 1.0
    %v4346 = vlog2.pop %v4345
    %v4347 = vmul.f32 %v4346, 0.6931472
    %v4348 = vmul.f32 -0.5, %v4219
    %v4349 = vadd.f32 %v4348, 1.0
    %v4350 = vmul.f32 %v4349, %v4219
    %v4351 = vand.u32 2147483647, %v4219
    %vm4352 = vcmp.lt.f32.partialorder %v4351, 0.0004427343
    %v4353 = vsel %vm4352, %v4350, %v4347
    %v4354 = vadd.f32 %v4221, 1.0
    %v4355 = vlog2.pop %v4354
    %v4356 = vmul.f32 %v4355, 0.6931472
    %v4357 = vmul.f32 -0.5, %v4221
    %v4358 = vadd.f32 %v4357, 1.0
    %v4359 = vmul.f32 %v4358, %v4221
    %v4360 = vand.u32 2147483647, %v4221
    %vm4361 = vcmp.lt.f32.partialorder %v4360, 0.0004427343
    %v4362 = vsel %vm4361, %v4359, %v4356
    %v4363 = vadd.f32 %v4223, 1.0
    %v4364 = vlog2.pop %v4363
    %v4365 = vmul.f32 %v4364, 0.6931472
    %v4366 = vmul.f32 -0.5, %v4223
    %v4367 = vadd.f32 %v4366, 1.0
    %v4368 = vmul.f32 %v4367, %v4223
    %v4369 = vand.u32 2147483647, %v4223
    %vm4370 = vcmp.lt.f32.partialorder %v4369, 0.0004427343
    %v4371 = vsel %vm4370, %v4368, %v4365
    %v4372 = vadd.f32 %v4225, 1.0
    %v4373 = vlog2.pop %v4372
    %v4374 = vmul.f32 %v4373, 0.6931472
    %v4375 = vmul.f32 -0.5, %v4225
    %v4376 = vadd.f32 %v4375, 1.0
    %v4377 = vmul.f32 %v4376, %v4225
    %v4378 = vand.u32 2147483647, %v4225
    %vm4379 = vcmp.lt.f32.partialorder %v4378, 0.0004427343
    %v4380 = vsel %vm4379, %v4377, %v4374
    %v4381 = vadd.f32 %v4227, 1.0
    %v4382 = vlog2.pop %v4381
    %v4383 = vmul.f32 %v4382, 0.6931472
    %v4384 = vmul.f32 -0.5, %v4227
    %v4385 = vadd.f32 %v4384, 1.0
    %v4386 = vmul.f32 %v4385, %v4227
    %v4387 = vand.u32 2147483647, %v4227
    %vm4388 = vcmp.lt.f32.partialorder %v4387, 0.0004427343
    %v4389 = vsel %vm4388, %v4386, %v4383
    %v4390 = vadd.f32 %v4229, 1.0
    %v4391 = vlog2.pop %v4390
    %v4392 = vmul.f32 %v4391, 0.6931472
    %v4393 = vmul.f32 -0.5, %v4229
    %v4394 = vadd.f32 %v4393, 1.0
    %v4395 = vmul.f32 %v4394, %v4229
    %v4396 = vand.u32 2147483647, %v4229
    %vm4397 = vcmp.lt.f32.partialorder %v4396, 0.0004427343
    %v4398 = vsel %vm4397, %v4395, %v4392
    %v4399 = vadd.f32 %v4231, 1.0
    %v4400 = vlog2.pop %v4399
    %v4401 = vmul.f32 %v4400, 0.6931472
    %v4402 = vmul.f32 -0.5, %v4231
    %v4403 = vadd.f32 %v4402, 1.0
    %v4404 = vmul.f32 %v4403, %v4231
    %v4405 = vand.u32 2147483647, %v4231
    %vm4406 = vcmp.lt.f32.partialorder %v4405, 0.0004427343
    %v4407 = vsel %vm4406, %v4404, %v4401
    %v4408 = vadd.f32 %v4233, 1.0
    %v4409 = vlog2.pop %v4408
    %v4410 = vmul.f32 %v4409, 0.6931472
    %v4411 = vmul.f32 -0.5, %v4233
    %v4412 = vadd.f32 %v4411, 1.0
    %v4413 = vmul.f32 %v4412, %v4233
    %v4414 = vand.u32 2147483647, %v4233
    %vm4415 = vcmp.lt.f32.partialorder %v4414, 0.0004427343
    %v4416 = vsel %vm4415, %v4413, %v4410
    %v4417 = vadd.f32 %v4235, 1.0
    %v4418 = vlog2.pop %v4417
    %v4419 = vmul.f32 %v4418, 0.6931472
    %v4420 = vmul.f32 -0.5, %v4235
    %v4421 = vadd.f32 %v4420, 1.0
    %v4422 = vmul.f32 %v4421, %v4235
    %v4423 = vand.u32 2147483647, %v4235
    %vm4424 = vcmp.lt.f32.partialorder %v4423, 0.0004427343
    %v4425 = vsel %vm4424, %v4422, %v4419
    %v4426 = vadd.f32 %v4237, 1.0
    %v4427 = vlog2.pop %v4426
    %v4428 = vmul.f32 %v4427, 0.6931472
    %v4429 = vmul.f32 -0.5, %v4237
    %v4430 = vadd.f32 %v4429, 1.0
    %v4431 = vmul.f32 %v4430, %v4237
    %v4432 = vand.u32 2147483647, %v4237
    %vm4433 = vcmp.lt.f32.partialorder %v4432, 0.0004427343
    %v4434 = vsel %vm4433, %v4431, %v4428
    %v4435 = vadd.f32 %v4239, 1.0
    %v4436 = vlog2.pop %v4435
    %v4437 = vmul.f32 %v4436, 0.6931472
    %v4438 = vmul.f32 -0.5, %v4239
    %v4439 = vadd.f32 %v4438, 1.0
    %v4440 = vmul.f32 %v4439, %v4239
    %v4441 = vand.u32 2147483647, %v4239
    %vm4442 = vcmp.lt.f32.partialorder %v4441, 0.0004427343
    %v4443 = vsel %vm4442, %v4440, %v4437
    %v4444 = vadd.f32 %v4241, 1.0
    %v4445 = vlog2.pop %v4444
    %v4446 = vmul.f32 %v4445, 0.6931472
    %v4447 = vmul.f32 -0.5, %v4241
    %v4448 = vadd.f32 %v4447, 1.0
    %v4449 = vmul.f32 %v4448, %v4241
    %v4450 = vand.u32 2147483647, %v4241
    %vm4451 = vcmp.lt.f32.partialorder %v4450, 0.0004427343
    %v4452 = vsel %vm4451, %v4449, %v4446
    %v4453 = vadd.f32 %v4243, 1.0
    %v4454 = vlog2.pop %v4453
    %v4455 = vmul.f32 %v4454, 0.6931472
    %v4456 = vmul.f32 -0.5, %v4243
    %v4457 = vadd.f32 %v4456, 1.0
    %v4458 = vmul.f32 %v4457, %v4243
    %v4459 = vand.u32 2147483647, %v4243
    %vm4460 = vcmp.lt.f32.partialorder %v4459, 0.0004427343
    %v4461 = vsel %vm4460, %v4458, %v4455
    %v4462 = vadd.f32 %v4245, 1.0
    %v4463 = vlog2.pop %v4462
    %v4464 = vmul.f32 %v4463, 0.6931472
    %v4465 = vmul.f32 -0.5, %v4245
    %v4466 = vadd.f32 %v4465, 1.0
    %v4467 = vmul.f32 %v4466, %v4245
    %v4468 = vand.u32 2147483647, %v4245
    %vm4469 = vcmp.lt.f32.partialorder %v4468, 0.0004427343
    %v4470 = vsel %vm4469, %v4467, %v4464
    %v4471 = vadd.f32 %v4247, 1.0
    %v4472 = vlog2.pop %v4471
    %v4473 = vmul.f32 %v4472, 0.6931472
    %v4474 = vmul.f32 -0.5, %v4247
    %v4475 = vadd.f32 %v4474, 1.0
    %v4476 = vmul.f32 %v4475, %v4247
    %v4477 = vand.u32 2147483647, %v4247
    %vm4478 = vcmp.lt.f32.partialorder %v4477, 0.0004427343
    %v4479 = vsel %vm4478, %v4476, %v4473
    %v4480 = vadd.f32 %v4249, 1.0
    %v4481 = vlog2.pop %v4480
    %v4482 = vmul.f32 %v4481, 0.6931472
    %v4483 = vmul.f32 -0.5, %v4249
    %v4484 = vadd.f32 %v4483, 1.0
    %v4485 = vmul.f32 %v4484, %v4249
    %v4486 = vand.u32 2147483647, %v4249
    %vm4487 = vcmp.lt.f32.partialorder %v4486, 0.0004427343
    %v4488 = vsel %vm4487, %v4485, %v4482
    %v4489 = vadd.f32 %v4251, 1.0
    %v4490 = vlog2.pop %v4489
    %v4491 = vmul.f32 %v4490, 0.6931472
    %v4492 = vmul.f32 -0.5, %v4251
    %v4493 = vadd.f32 %v4492, 1.0
    %v4494 = vmul.f32 %v4493, %v4251
    %v4495 = vand.u32 2147483647, %v4251
    %vm4496 = vcmp.lt.f32.partialorder %v4495, 0.0004427343
    %v4497 = vsel %vm4496, %v4494, %v4491
    %v4498 = vadd.f32 %v4253, 1.0
    %v4499 = vlog2.pop %v4498
    %v4500 = vmul.f32 %v4499, 0.6931472
    %v4501 = vmul.f32 -0.5, %v4253
    %v4502 = vadd.f32 %v4501, 1.0
    %v4503 = vmul.f32 %v4502, %v4253
    %v4504 = vand.u32 2147483647, %v4253
    %vm4505 = vcmp.lt.f32.partialorder %v4504, 0.0004427343
    %v4506 = vsel %vm4505, %v4503, %v4500
    %v4507 = vadd.f32 %v4255, 1.0
    %v4508 = vlog2.pop %v4507
    %v4509 = vmul.f32 %v4508, 0.6931472
    %v4510 = vmul.f32 -0.5, %v4255
    %v4511 = vadd.f32 %v4510, 1.0
    %v4512 = vmul.f32 %v4511, %v4255
    %v4513 = vand.u32 2147483647, %v4255
    %vm4514 = vcmp.lt.f32.partialorder %v4513, 0.0004427343
    %v4515 = vsel %vm4514, %v4512, %v4509
    %v4516 = vadd.f32 %v4257, 1.0
    %v4517 = vlog2.pop %v4516
    %v4518 = vmul.f32 %v4517, 0.6931472
    %v4519 = vmul.f32 -0.5, %v4257
    %v4520 = vadd.f32 %v4519, 1.0
    %v4521 = vmul.f32 %v4520, %v4257
    %v4522 = vand.u32 2147483647, %v4257
    %vm4523 = vcmp.lt.f32.partialorder %v4522, 0.0004427343
    %v4524 = vsel %vm4523, %v4521, %v4518
    %v4525 = vadd.f32 %v4259, 1.0
    %v4526 = vlog2.pop %v4525
    %v4527 = vmul.f32 %v4526, 0.6931472
    %v4528 = vmul.f32 -0.5, %v4259
    %v4529 = vadd.f32 %v4528, 1.0
    %v4530 = vmul.f32 %v4529, %v4259
    %v4531 = vand.u32 2147483647, %v4259
    %vm4532 = vcmp.lt.f32.partialorder %v4531, 0.0004427343
    %v4533 = vsel %vm4532, %v4530, %v4527
    %v4534 = vadd.f32 %v4261, 1.0
    %v4535 = vlog2.pop %v4534
    %v4536 = vmul.f32 %v4535, 0.6931472
    %v4537 = vmul.f32 -0.5, %v4261
    %v4538 = vadd.f32 %v4537, 1.0
    %v4539 = vmul.f32 %v4538, %v4261
    %v4540 = vand.u32 2147483647, %v4261
    %vm4541 = vcmp.lt.f32.partialorder %v4540, 0.0004427343
    %v4542 = vsel %vm4541, %v4539, %v4536
    %v4543 = vadd.f32 %v4263, 1.0
    %v4544 = vlog2.pop %v4543
    %v4545 = vmul.f32 %v4544, 0.6931472
    %v4546 = vmul.f32 -0.5, %v4263
    %v4547 = vadd.f32 %v4546, 1.0
    %v4548 = vmul.f32 %v4547, %v4263
    %v4549 = vand.u32 2147483647, %v4263
    %vm4550 = vcmp.lt.f32.partialorder %v4549, 0.0004427343
    %v4551 = vsel %vm4550, %v4548, %v4545
    %v4552 = vadd.f32 %v4104, %v4272
    %v4553 = vadd.f32 %v4105, %v4281
    %v4554 = vadd.f32 %v4106, %v4290
    %v4555 = vadd.f32 %v4107, %v4299
    %v4556 = vadd.f32 %v4108, %v4308
    %v4557 = vadd.f32 %v4109, %v4317
    %v4558 = vadd.f32 %v4110, %v4326
    %v4559 = vadd.f32 %v4111, %v4335
    %v4560 = vadd.f32 %v4112, %v4344
    %v4561 = vadd.f32 %v4113, %v4353
    %v4562 = vadd.f32 %v4114, %v4362
    %v4563 = vadd.f32 %v4115, %v4371
    %v4564 = vadd.f32 %v4116, %v4380
    %v4565 = vadd.f32 %v4117, %v4389
    %v4566 = vadd.f32 %v4118, %v4398
    %v4567 = vadd.f32 %v4119, %v4407
    %v4568 = vadd.f32 %v4120, %v4416
    %v4569 = vadd.f32 %v4121, %v4425
    %v4570 = vadd.f32 %v4122, %v4434
    %v4571 = vadd.f32 %v4123, %v4443
    %v4572 = vadd.f32 %v4124, %v4452
    %v4573 = vadd.f32 %v4125, %v4461
    %v4574 = vadd.f32 %v4126, %v4470
    %v4575 = vadd.f32 %v4127, %v4479
    %v4576 = vadd.f32 %v4128, %v4488
    %v4577 = vadd.f32 %v4129, %v4497
    %v4578 = vadd.f32 %v4130, %v4506
    %v4579 = vadd.f32 %v4131, %v4515
    %v4580 = vadd.f32 %v4132, %v4524
    %v4581 = vadd.f32 %v4133, %v4533
    %v4582 = vadd.f32 %v4134, %v4542
    %v4583 = vadd.f32 %v4135, %v4551
    %v4584 = vpack.c.bf16 %v4553, %v4552
    %v4585 = vpack.c.bf16 %v4555, %v4554
    %v4586 = vpack.c.bf16 %v4557, %v4556
    %v4587 = vpack.c.bf16 %v4559, %v4558
    %v4588 = vpack.c.bf16 %v4561, %v4560
    %v4589 = vpack.c.bf16 %v4563, %v4562
    %v4590 = vpack.c.bf16 %v4565, %v4564
    %v4591 = vpack.c.bf16 %v4567, %v4566
    %v4592 = vpack.c.bf16 %v4569, %v4568
    %v4593 = vpack.c.bf16 %v4571, %v4570
    %v4594 = vpack.c.bf16 %v4573, %v4572
    %v4595 = vpack.c.bf16 %v4575, %v4574
    %v4596 = vpack.c.bf16 %v4577, %v4576
    %v4597 = vpack.c.bf16 %v4579, %v4578
    %v4598 = vpack.c.bf16 %v4581, %v4580
    %v4599 = vpack.c.bf16 %v4583, %v4582
    %v4601 = vperm.slane %v3768, 0
    %v4619 = vunpack.c.l.b16 %v3751
    %v4620 = vunpack.c.l.b16 %v3752
    %v4621 = vunpack.c.l.b16 %v3753
    %v4622 = vunpack.c.l.b16 %v3754
    %v4623 = vunpack.c.l.b16 %v3755
    %v4624 = vunpack.c.l.b16 %v3756
    %v4625 = vunpack.c.l.b16 %v3757
    %v4626 = vunpack.c.l.b16 %v3758
    %v4627 = vunpack.c.l.b16 %v3759
    %v4628 = vunpack.c.l.b16 %v3760
    %v4629 = vunpack.c.l.b16 %v3761
    %v4630 = vunpack.c.l.b16 %v3762
    %v4631 = vunpack.c.l.b16 %v3763
    %v4632 = vunpack.c.l.b16 %v3764
    %v4633 = vunpack.c.l.b16 %v3765
    %v4634 = vunpack.c.l.b16 %v3766
    %v4635 = vpack.c.b16 %v4620, %v4619
    %v4636 = vpack.c.b16 %v4622, %v4621
    %v4637 = vpack.c.b16 %v4624, %v4623
    %v4638 = vpack.c.b16 %v4626, %v4625
    %v4639 = vpack.c.b16 %v4628, %v4627
    %v4640 = vpack.c.b16 %v4630, %v4629
    %v4641 = vpack.c.b16 %v4632, %v4631
    %v4642 = vpack.c.b16 %v4634, %v4633
    %4651 = vmatpush.bf16.msra.mxu0 %v4642
    %4652 = vmatpush.bf16.msra.mxu0 %v4641
    %4653 = vmatpush.bf16.msra.mxu0 %v4640
    %4654 = vmatpush.bf16.msra.mxu0 %v4639
    %4655 = vmatpush.bf16.msra.mxu0 %v4638
    %4656 = vmatpush.bf16.msra.mxu0 %v4637
    %4657 = vmatpush.bf16.msra.mxu0 %v4636
    %4658 = vmatpush.bf16.msra.mxu0 %v4635
    %4659 = vmatmul.bf16.gmra.mxu0 %v4584
    %v4660 = vpop.f32.mrf.mxu0
    %v4661 = vadd.f32 %v4601, %v4660
    %v4662 = vpop.f32.mrf.mxu0
    %v4663 = vadd.f32 %v4601, %v4662
    %4664 = vmatmul.bf16.gmra.mxu0 %v4585
    %v4665 = vpop.f32.mrf.mxu0
    %v4666 = vadd.f32 %v4601, %v4665
    %v4667 = vpop.f32.mrf.mxu0
    %v4668 = vadd.f32 %v4601, %v4667
    %4669 = vmatmul.bf16.gmra.mxu0 %v4586
    %v4670 = vpop.f32.mrf.mxu0
    %v4671 = vadd.f32 %v4601, %v4670
    %v4672 = vpop.f32.mrf.mxu0
    %v4673 = vadd.f32 %v4601, %v4672
    %4674 = vmatmul.bf16.gmra.mxu0 %v4587
    %v4675 = vpop.f32.mrf.mxu0
    %v4676 = vadd.f32 %v4601, %v4675
    %v4677 = vpop.f32.mrf.mxu0
    %v4678 = vadd.f32 %v4601, %v4677
    %4679 = vmatmul.bf16.gmra.mxu0 %v4588
    %v4680 = vpop.f32.mrf.mxu0
    %v4681 = vadd.f32 %v4601, %v4680
    %v4682 = vpop.f32.mrf.mxu0
    %v4683 = vadd.f32 %v4601, %v4682
    %4684 = vmatmul.bf16.gmra.mxu0 %v4589
    %v4685 = vpop.f32.mrf.mxu0
    %v4686 = vadd.f32 %v4601, %v4685
    %v4687 = vpop.f32.mrf.mxu0
    %v4688 = vadd.f32 %v4601, %v4687
    %4689 = vmatmul.bf16.gmra.mxu0 %v4590
    %v4690 = vpop.f32.mrf.mxu0
    %v4691 = vadd.f32 %v4601, %v4690
    %v4692 = vpop.f32.mrf.mxu0
    %v4693 = vadd.f32 %v4601, %v4692
    %4694 = vmatmul.bf16.gmra.mxu0 %v4591
    %v4695 = vpop.f32.mrf.mxu0
    %v4696 = vadd.f32 %v4601, %v4695
    %v4697 = vpop.f32.mrf.mxu0
    %v4698 = vadd.f32 %v4601, %v4697
    %4699 = vmatmul.bf16.gmra.mxu0 %v4592
    %v4700 = vpop.f32.mrf.mxu0
    %v4701 = vadd.f32 %v4601, %v4700
    %v4702 = vpop.f32.mrf.mxu0
    %v4703 = vadd.f32 %v4601, %v4702
    %4704 = vmatmul.bf16.gmra.mxu0 %v4593
    %v4705 = vpop.f32.mrf.mxu0
    %v4706 = vadd.f32 %v4601, %v4705
    %v4707 = vpop.f32.mrf.mxu0
    %v4708 = vadd.f32 %v4601, %v4707
    %4709 = vmatmul.bf16.gmra.mxu0 %v4594
    %v4710 = vpop.f32.mrf.mxu0
    %v4711 = vadd.f32 %v4601, %v4710
    %v4712 = vpop.f32.mrf.mxu0
    %v4713 = vadd.f32 %v4601, %v4712
    %4714 = vmatmul.bf16.gmra.mxu0 %v4595
    %v4715 = vpop.f32.mrf.mxu0
    %v4716 = vadd.f32 %v4601, %v4715
    %v4717 = vpop.f32.mrf.mxu0
    %v4718 = vadd.f32 %v4601, %v4717
    %4719 = vmatmul.bf16.gmra.mxu0 %v4596
    %v4720 = vpop.f32.mrf.mxu0
    %v4721 = vadd.f32 %v4601, %v4720
    %v4722 = vpop.f32.mrf.mxu0
    %v4723 = vadd.f32 %v4601, %v4722
    %4724 = vmatmul.bf16.gmra.mxu0 %v4597
    %v4725 = vpop.f32.mrf.mxu0
    %v4726 = vadd.f32 %v4601, %v4725
    %v4727 = vpop.f32.mrf.mxu0
    %v4728 = vadd.f32 %v4601, %v4727
    %4729 = vmatmul.bf16.gmra.mxu0 %v4598
    %v4730 = vpop.f32.mrf.mxu0
    %v4731 = vadd.f32 %v4601, %v4730
    %v4732 = vpop.f32.mrf.mxu0
    %v4733 = vadd.f32 %v4601, %v4732
    %4734 = vmatmul.bf16.gmra.mxu0 %v4599
    %v4735 = vpop.f32.mrf.mxu0
    %v4736 = vadd.f32 %v4601, %v4735
    %v4737 = vpop.f32.mrf.mxu0
    %v4738 = vadd.f32 %v4601, %v4737
    %4739 = vdwg.mxu0
    %v4740 = vld [vmem:[%s1] sm:$0xff]
    %v4741 = vld [vmem:[%s1 + $0x8] sm:$0xff]
    %v4742 = vld [vmem:[%s1 + $0x10] sm:$0xff]
    %v4743 = vld [vmem:[%s1 + $0x18] sm:$0xff]
    %v4744 = vld [vmem:[%s1 + $0x20] sm:$0xff]
    %v4745 = vld [vmem:[%s1 + $0x28] sm:$0xff]
    %v4746 = vld [vmem:[%s1 + $0x30] sm:$0xff]
    %v4747 = vld [vmem:[%s1 + $0x38] sm:$0xff]
    %v4748 = vld [vmem:[%s1 + $0x40] sm:$0xff]
    %v4749 = vld [vmem:[%s1 + $0x48] sm:$0xff]
    %v4750 = vld [vmem:[%s1 + $0x50] sm:$0xff]
    %v4751 = vld [vmem:[%s1 + $0x58] sm:$0xff]
    %v4752 = vld [vmem:[%s1 + $0x60] sm:$0xff]
    %v4753 = vld [vmem:[%s1 + $0x68] sm:$0xff]
    %v4754 = vld [vmem:[%s1 + $0x70] sm:$0xff]
    %v4755 = vld [vmem:[%s1 + $0x78] sm:$0xff]
    %v4756 = vld [vmem:[%s1 + $0x80] sm:$0xff]
    %v4757 = vld [vmem:[%s1 + $0x88] sm:$0xff]
    %v4758 = vld [vmem:[%s1 + $0x90] sm:$0xff]
    %v4759 = vld [vmem:[%s1 + $0x98] sm:$0xff]
    %v4760 = vld [vmem:[%s1 + $0xa0] sm:$0xff]
    %v4761 = vld [vmem:[%s1 + $0xa8] sm:$0xff]
    %v4762 = vld [vmem:[%s1 + $0xb0] sm:$0xff]
    %v4763 = vld [vmem:[%s1 + $0xb8] sm:$0xff]
    %v4764 = vld [vmem:[%s1 + $0xc0] sm:$0xff]
    %v4765 = vld [vmem:[%s1 + $0xc8] sm:$0xff]
    %v4766 = vld [vmem:[%s1 + $0xd0] sm:$0xff]
    %v4767 = vld [vmem:[%s1 + $0xd8] sm:$0xff]
    %v4768 = vld [vmem:[%s1 + $0xe0] sm:$0xff]
    %v4769 = vld [vmem:[%s1 + $0xe8] sm:$0xff]
    %v4770 = vld [vmem:[%s1 + $0xf0] sm:$0xff]
    %v4771 = vld [vmem:[%s1 + $0xf8] sm:$0xff]
    %v4772 = vld [vmem:[#allocation3] sm:$0xff]
    %v4773 = vld [vmem:[#allocation3 + $0x8] sm:$0xff]
    %4775 = vset.pattern.permute.xlu0 0
    %4776 = vperm.xlu0 %4775, %v4740
    %v4777 = vpop.permute.xlu0 %4776
    %4780 = vset.pattern.permute.xlu0 0
    %4781 = vperm.xlu0 %4780, %v4741
    %v4782 = vpop.permute.xlu0 %4781
    %4785 = vset.pattern.permute.xlu0 0
    %4786 = vperm.xlu0 %4785, %v4742
    %v4787 = vpop.permute.xlu0 %4786
    %4790 = vset.pattern.permute.xlu0 0
    %4791 = vperm.xlu0 %4790, %v4743
    %v4792 = vpop.permute.xlu0 %4791
    %4795 = vset.pattern.permute.xlu0 0
    %4796 = vperm.xlu0 %4795, %v4744
    %v4797 = vpop.permute.xlu0 %4796
    %4800 = vset.pattern.permute.xlu0 0
    %4801 = vperm.xlu0 %4800, %v4745
    %v4802 = vpop.permute.xlu0 %4801
    %4805 = vset.pattern.permute.xlu0 0
    %4806 = vperm.xlu0 %4805, %v4746
    %v4807 = vpop.permute.xlu0 %4806
    %4810 = vset.pattern.permute.xlu0 0
    %4811 = vperm.xlu0 %4810, %v4747
    %v4812 = vpop.permute.xlu0 %4811
    %4815 = vset.pattern.permute.xlu0 0
    %4816 = vperm.xlu0 %4815, %v4748
    %v4817 = vpop.permute.xlu0 %4816
    %4820 = vset.pattern.permute.xlu0 0
    %4821 = vperm.xlu0 %4820, %v4749
    %v4822 = vpop.permute.xlu0 %4821
    %4825 = vset.pattern.permute.xlu0 0
    %4826 = vperm.xlu0 %4825, %v4750
    %v4827 = vpop.permute.xlu0 %4826
    %4830 = vset.pattern.permute.xlu0 0
    %4831 = vperm.xlu0 %4830, %v4751
    %v4832 = vpop.permute.xlu0 %4831
    %4835 = vset.pattern.permute.xlu0 0
    %4836 = vperm.xlu0 %4835, %v4752
    %v4837 = vpop.permute.xlu0 %4836
    %4840 = vset.pattern.permute.xlu0 0
    %4841 = vperm.xlu0 %4840, %v4753
    %v4842 = vpop.permute.xlu0 %4841
    %4845 = vset.pattern.permute.xlu0 0
    %4846 = vperm.xlu0 %4845, %v4754
    %v4847 = vpop.permute.xlu0 %4846
    %4850 = vset.pattern.permute.xlu0 0
    %4851 = vperm.xlu0 %4850, %v4755
    %v4852 = vpop.permute.xlu0 %4851
    %4855 = vset.pattern.permute.xlu0 0
    %4856 = vperm.xlu0 %4855, %v4756
    %v4857 = vpop.permute.xlu0 %4856
    %4860 = vset.pattern.permute.xlu0 0
    %4861 = vperm.xlu0 %4860, %v4757
    %v4862 = vpop.permute.xlu0 %4861
    %4865 = vset.pattern.permute.xlu0 0
    %4866 = vperm.xlu0 %4865, %v4758
    %v4867 = vpop.permute.xlu0 %4866
    %4870 = vset.pattern.permute.xlu0 0
    %4871 = vperm.xlu0 %4870, %v4759
    %v4872 = vpop.permute.xlu0 %4871
    %4875 = vset.pattern.permute.xlu0 0
    %4876 = vperm.xlu0 %4875, %v4760
    %v4877 = vpop.permute.xlu0 %4876
    %4880 = vset.pattern.permute.xlu0 0
    %4881 = vperm.xlu0 %4880, %v4761
    %v4882 = vpop.permute.xlu0 %4881
    %4885 = vset.pattern.permute.xlu0 0
    %4886 = vperm.xlu0 %4885, %v4762
    %v4887 = vpop.permute.xlu0 %4886
    %4890 = vset.pattern.permute.xlu0 0
    %4891 = vperm.xlu0 %4890, %v4763
    %v4892 = vpop.permute.xlu0 %4891
    %4895 = vset.pattern.permute.xlu0 0
    %4896 = vperm.xlu0 %4895, %v4764
    %v4897 = vpop.permute.xlu0 %4896
    %4900 = vset.pattern.permute.xlu0 0
    %4901 = vperm.xlu0 %4900, %v4765
    %v4902 = vpop.permute.xlu0 %4901
    %4905 = vset.pattern.permute.xlu0 0
    %4906 = vperm.xlu0 %4905, %v4766
    %v4907 = vpop.permute.xlu0 %4906
    %4910 = vset.pattern.permute.xlu0 0
    %4911 = vperm.xlu0 %4910, %v4767
    %v4912 = vpop.permute.xlu0 %4911
    %4915 = vset.pattern.permute.xlu0 0
    %4916 = vperm.xlu0 %4915, %v4768
    %v4917 = vpop.permute.xlu0 %4916
    %4920 = vset.pattern.permute.xlu0 0
    %4921 = vperm.xlu0 %4920, %v4769
    %v4922 = vpop.permute.xlu0 %4921
    %4925 = vset.pattern.permute.xlu0 0
    %4926 = vperm.xlu0 %4925, %v4770
    %v4927 = vpop.permute.xlu0 %4926
    %4930 = vset.pattern.permute.xlu0 0
    %4931 = vperm.xlu0 %4930, %v4771
    %v4932 = vpop.permute.xlu0 %4931
    %v4934 = vmul.f32 %v4661, %v4777
    %v4935 = vmul.f32 %v4663, %v4782
    %v4936 = vmul.f32 %v4666, %v4787
    %v4937 = vmul.f32 %v4668, %v4792
    %v4938 = vmul.f32 %v4671, %v4797
    %v4939 = vmul.f32 %v4673, %v4802
    %v4940 = vmul.f32 %v4676, %v4807
    %v4941 = vmul.f32 %v4678, %v4812
    %v4942 = vmul.f32 %v4681, %v4817
    %v4943 = vmul.f32 %v4683, %v4822
    %v4944 = vmul.f32 %v4686, %v4827
    %v4945 = vmul.f32 %v4688, %v4832
    %v4946 = vmul.f32 %v4691, %v4837
    %v4947 = vmul.f32 %v4693, %v4842
    %v4948 = vmul.f32 %v4696, %v4847
    %v4949 = vmul.f32 %v4698, %v4852
    %v4950 = vmul.f32 %v4701, %v4857
    %v4951 = vmul.f32 %v4703, %v4862
    %v4952 = vmul.f32 %v4706, %v4867
    %v4953 = vmul.f32 %v4708, %v4872
    %v4954 = vmul.f32 %v4711, %v4877
    %v4955 = vmul.f32 %v4713, %v4882
    %v4956 = vmul.f32 %v4716, %v4887
    %v4957 = vmul.f32 %v4718, %v4892
    %v4958 = vmul.f32 %v4721, %v4897
    %v4959 = vmul.f32 %v4723, %v4902
    %v4960 = vmul.f32 %v4726, %v4907
    %v4961 = vmul.f32 %v4728, %v4912
    %v4962 = vmul.f32 %v4731, %v4917
    %v4963 = vmul.f32 %v4733, %v4922
    %v4964 = vmul.f32 %v4736, %v4927
    %v4965 = vmul.f32 %v4738, %v4932
    %v4968 = vrot.slane %v4772, 1
    %v4969 = vrot.slane %v4772, 2
    %v4970 = vrot.slane %v4772, 3
    %v4971 = vrot.slane %v4772, 4
    %v4972 = vrot.slane %v4772, 5
    %v4973 = vrot.slane %v4772, 6
    %v4974 = vrot.slane %v4772, 7
    %v4975 = vrot.slane %v4773, 1
    %v4976 = vrot.slane %v4773, 2
    %v4977 = vrot.slane %v4773, 3
    %v4978 = vrot.slane %v4773, 4
    %v4979 = vrot.slane %v4773, 5
    %v4980 = vrot.slane %v4773, 6
    %v4981 = vrot.slane %v4773, 7
    %v4982 = vperm.slane %v4772, 0
    %v4983 = vperm.slane %v4968, 0
    %v4984 = vperm.slane %v4969, 0
    %v4985 = vperm.slane %v4970, 0
    %v4986 = vperm.slane %v4971, 0
    %v4987 = vperm.slane %v4972, 0
    %v4988 = vperm.slane %v4973, 0
    %v4989 = vperm.slane %v4974, 0
    %v4990 = vperm.slane %v4773, 0
    %v4991 = vperm.slane %v4975, 0
    %v4992 = vperm.slane %v4976, 0
    %v4993 = vperm.slane %v4977, 0
    %v4994 = vperm.slane %v4978, 0
    %v4995 = vperm.slane %v4979, 0
    %v4996 = vperm.slane %v4980, 0
    %v4997 = vperm.slane %v4981, 0
    %v5014 = vmul.f32 %v4934, %v4982
    %v5015 = vmul.f32 %v4935, %v4982
    %v5016 = vmul.f32 %v4936, %v4983
    %v5017 = vmul.f32 %v4937, %v4983
    %v5018 = vmul.f32 %v4938, %v4984
    %v5019 = vmul.f32 %v4939, %v4984
    %v5020 = vmul.f32 %v4940, %v4985
    %v5021 = vmul.f32 %v4941, %v4985
    %v5022 = vmul.f32 %v4942, %v4986
    %v5023 = vmul.f32 %v4943, %v4986
    %v5024 = vmul.f32 %v4944, %v4987
    %v5025 = vmul.f32 %v4945, %v4987
    %v5026 = vmul.f32 %v4946, %v4988
    %v5027 = vmul.f32 %v4947, %v4988
    %v5028 = vmul.f32 %v4948, %v4989
    %v5029 = vmul.f32 %v4949, %v4989
    %v5030 = vmul.f32 %v4950, %v4990
    %v5031 = vmul.f32 %v4951, %v4990
    %v5032 = vmul.f32 %v4952, %v4991
    %v5033 = vmul.f32 %v4953, %v4991
    %v5034 = vmul.f32 %v4954, %v4992
    %v5035 = vmul.f32 %v4955, %v4992
    %v5036 = vmul.f32 %v4956, %v4993
    %v5037 = vmul.f32 %v4957, %v4993
    %v5038 = vmul.f32 %v4958, %v4994
    %v5039 = vmul.f32 %v4959, %v4994
    %v5040 = vmul.f32 %v4960, %v4995
    %v5041 = vmul.f32 %v4961, %v4995
    %v5042 = vmul.f32 %v4962, %v4996
    %v5043 = vmul.f32 %v4963, %v4996
    %v5044 = vmul.f32 %v4964, %v4997
    %v5045 = vmul.f32 %v4965, %v4997
    %v5046 = vadd.f32 %v5014, %v5016
    %v5047 = vadd.f32 %v5046, %v5018
    %v5048 = vadd.f32 %v5047, %v5020
    %v5049 = vadd.f32 %v5048, %v5022
    %v5050 = vadd.f32 %v5049, %v5024
    %v5051 = vadd.f32 %v5050, %v5026
    %v5052 = vadd.f32 %v5051, %v5028
    %v5053 = vadd.f32 %v5052, %v5030
    %v5054 = vadd.f32 %v5053, %v5032
    %v5055 = vadd.f32 %v5054, %v5034
    %v5056 = vadd.f32 %v5055, %v5036
    %v5057 = vadd.f32 %v5056, %v5038
    %v5058 = vadd.f32 %v5057, %v5040
    %v5059 = vadd.f32 %v5058, %v5042
    %v5060 = vadd.f32 %v5059, %v5044
    %v5061 = vadd.f32 %v5015, %v5017
    %v5062 = vadd.f32 %v5061, %v5019
    %v5063 = vadd.f32 %v5062, %v5021
    %v5064 = vadd.f32 %v5063, %v5023
    %v5065 = vadd.f32 %v5064, %v5025
    %v5066 = vadd.f32 %v5065, %v5027
    %v5067 = vadd.f32 %v5066, %v5029
    %v5068 = vadd.f32 %v5067, %v5031
    %v5069 = vadd.f32 %v5068, %v5033
    %v5070 = vadd.f32 %v5069, %v5035
    %v5071 = vadd.f32 %v5070, %v5037
    %v5072 = vadd.f32 %v5071, %v5039
    %v5073 = vadd.f32 %v5072, %v5041
    %v5074 = vadd.f32 %v5073, %v5043
    %v5075 = vadd.f32 %v5074, %v5045
    %v5076 = vld [vmem:[#allocation4] sm:$0xff]
    %v5077 = vld [vmem:[#allocation4 + $0x8] sm:$0xff]
    %v5078 = vadd.f32 %v5076, %v5060
    %v5079 = vadd.f32 %v5077, %v5075
    %5080 = vst [vmem:[#allocation4] sm:$0xff] %v5078
    %5081 = vst [vmem:[#allocation4 + $0x8] sm:$0xff] %v5079
    %v5082 = vld [vmem:[#allocation4] sm:$0xff]
    %v5083 = vld [vmem:[#allocation4 + $0x8] sm:$0xff]
    %v5084 = vpack.c.bf16 %v5083, %v5082
    %s5085 = scalar_lea.vmem [#allocation11], 128
    %v5086 = vld [vmem:[%s5085] sm:$0xf]
    %v5087 = vld [vmem:[%s5085 + $0x4] sm:$0xf]
    %v5088 = vld [vmem:[%s5085 + $0x8] sm:$0xf]
    %v5089 = vld [vmem:[%s5085 + $0xc] sm:$0xf]
    %v5090 = vld [vmem:[%s5085 + $0x10] sm:$0xf]
    %v5091 = vld [vmem:[%s5085 + $0x14] sm:$0xf]
    %v5092 = vld [vmem:[%s5085 + $0x18] sm:$0xf]
    %v5093 = vld [vmem:[%s5085 + $0x1c] sm:$0xf]
    %v5094 = vld [vmem:[%s5085 + $0x20] sm:$0xf]
    %v5095 = vld [vmem:[%s5085 + $0x24] sm:$0xf]
    %v5096 = vld [vmem:[%s5085 + $0x28] sm:$0xf]
    %v5097 = vld [vmem:[%s5085 + $0x2c] sm:$0xf]
    %v5098 = vld [vmem:[%s5085 + $0x30] sm:$0xf]
    %v5099 = vld [vmem:[%s5085 + $0x34] sm:$0xf]
    %v5100 = vld [vmem:[%s5085 + $0x38] sm:$0xf]
    %v5101 = vld [vmem:[%s5085 + $0x3c] sm:$0xf]
    %s5102 = scalar_lea.vmem [#allocation13], 2
    %v5103 = vld [vmem:[%s5102] sm:$0x1]
    %v5105 = vperm.slane %v5103, 0
    %v5123 = vunpack.c.l.b16 %v5086
    %v5124 = vunpack.c.l.b16 %v5087
    %v5125 = vunpack.c.l.b16 %v5088
    %v5126 = vunpack.c.l.b16 %v5089
    %v5127 = vunpack.c.l.b16 %v5090
    %v5128 = vunpack.c.l.b16 %v5091
    %v5129 = vunpack.c.l.b16 %v5092
    %v5130 = vunpack.c.l.b16 %v5093
    %v5131 = vunpack.c.l.b16 %v5094
    %v5132 = vunpack.c.l.b16 %v5095
    %v5133 = vunpack.c.l.b16 %v5096
    %v5134 = vunpack.c.l.b16 %v5097
    %v5135 = vunpack.c.l.b16 %v5098
    %v5136 = vunpack.c.l.b16 %v5099
    %v5137 = vunpack.c.l.b16 %v5100
    %v5138 = vunpack.c.l.b16 %v5101
    %v5139 = vpack.c.b16 %v5124, %v5123
    %v5140 = vpack.c.b16 %v5126, %v5125
    %v5141 = vpack.c.b16 %v5128, %v5127
    %v5142 = vpack.c.b16 %v5130, %v5129
    %v5143 = vpack.c.b16 %v5132, %v5131
    %v5144 = vpack.c.b16 %v5134, %v5133
    %v5145 = vpack.c.b16 %v5136, %v5135
    %v5146 = vpack.c.b16 %v5138, %v5137
    %5155 = vmatpush.bf16.msra.mxu0 %v5146
    %5156 = vmatpush.bf16.msra.mxu0 %v5145
    %5157 = vmatpush.bf16.msra.mxu0 %v5144
    %5158 = vmatpush.bf16.msra.mxu0 %v5143
    %5159 = vmatpush.bf16.msra.mxu0 %v5142
    %5160 = vmatpush.bf16.msra.mxu0 %v5141
    %5161 = vmatpush.bf16.msra.mxu0 %v5140
    %5162 = vmatpush.bf16.msra.mxu0 %v5139
    %5163 = vmatmul.bf16.gmra.mxu0 %v5084
    %v5164 = vpop.f32.mrf.mxu0
    %v5165 = vadd.f32 %v5105, %v5164
    %v5166 = vpop.f32.mrf.mxu0
    %v5167 = vadd.f32 %v5105, %v5166
    %5168 = vdwg.mxu0
    %v5169 = vmax.f32 %v5165, 0.0
    %v5170 = vmax.f32 %v5167, 0.0
    %v5171 = vand.u32 2147483647, %v5165
    %v5172 = vand.u32 2147483647, %v5167
    %v5173 = vsub.f32 0.0, %v5171
    %v5174 = vsub.f32 0.0, %v5172
    %v5175 = vmul.f32 %v5173, 1.442695
    %v5176 = vpow.pop %v5175
    %v5177 = vmul.f32 %v5174, 1.442695
    %v5178 = vpow.pop %v5177
    %v5179 = vadd.f32 %v5176, 1.0
    %v5180 = vlog2.pop %v5179
    %v5181 = vmul.f32 %v5180, 0.6931472
    %v5182 = vmul.f32 -0.5, %v5176
    %v5183 = vadd.f32 %v5182, 1.0
    %v5184 = vmul.f32 %v5183, %v5176
    %v5185 = vand.u32 2147483647, %v5176
    %vm5186 = vcmp.lt.f32.partialorder %v5185, 0.0004427343
    %v5187 = vsel %vm5186, %v5184, %v5181
    %v5188 = vadd.f32 %v5178, 1.0
    %v5189 = vlog2.pop %v5188
    %v5190 = vmul.f32 %v5189, 0.6931472
    %v5191 = vmul.f32 -0.5, %v5178
    %v5192 = vadd.f32 %v5191, 1.0
    %v5193 = vmul.f32 %v5192, %v5178
    %v5194 = vand.u32 2147483647, %v5178
    %vm5195 = vcmp.lt.f32.partialorder %v5194, 0.0004427343
    %v5196 = vsel %vm5195, %v5193, %v5190
    %v5197 = vadd.f32 %v5169, %v5187
    %v5198 = vadd.f32 %v5170, %v5196
    %v5199 = vpack.c.bf16 %v5198, %v5197
    %s5200 = scalar_lea.vmem [#allocation14], 128
    %v5201 = vld [vmem:[%s5200] sm:$0xf]
    %v5202 = vld [vmem:[%s5200 + $0x4] sm:$0xf]
    %v5203 = vld [vmem:[%s5200 + $0x8] sm:$0xf]
    %v5204 = vld [vmem:[%s5200 + $0xc] sm:$0xf]
    %v5205 = vld [vmem:[%s5200 + $0x10] sm:$0xf]
    %v5206 = vld [vmem:[%s5200 + $0x14] sm:$0xf]
    %v5207 = vld [vmem:[%s5200 + $0x18] sm:$0xf]
    %v5208 = vld [vmem:[%s5200 + $0x1c] sm:$0xf]
    %v5209 = vld [vmem:[%s5200 + $0x20] sm:$0xf]
    %v5210 = vld [vmem:[%s5200 + $0x24] sm:$0xf]
    %v5211 = vld [vmem:[%s5200 + $0x28] sm:$0xf]
    %v5212 = vld [vmem:[%s5200 + $0x2c] sm:$0xf]
    %v5213 = vld [vmem:[%s5200 + $0x30] sm:$0xf]
    %v5214 = vld [vmem:[%s5200 + $0x34] sm:$0xf]
    %v5215 = vld [vmem:[%s5200 + $0x38] sm:$0xf]
    %v5216 = vld [vmem:[%s5200 + $0x3c] sm:$0xf]
    %v5233 = vunpack.c.l.b16 %v5201
    %v5234 = vunpack.c.l.b16 %v5202
    %v5235 = vunpack.c.l.b16 %v5203
    %v5236 = vunpack.c.l.b16 %v5204
    %v5237 = vunpack.c.l.b16 %v5205
    %v5238 = vunpack.c.l.b16 %v5206
    %v5239 = vunpack.c.l.b16 %v5207
    %v5240 = vunpack.c.l.b16 %v5208
    %v5241 = vunpack.c.l.b16 %v5209
    %v5242 = vunpack.c.l.b16 %v5210
    %v5243 = vunpack.c.l.b16 %v5211
    %v5244 = vunpack.c.l.b16 %v5212
    %v5245 = vunpack.c.l.b16 %v5213
    %v5246 = vunpack.c.l.b16 %v5214
    %v5247 = vunpack.c.l.b16 %v5215
    %v5248 = vunpack.c.l.b16 %v5216
    %v5249 = vpack.c.b16 %v5234, %v5233
    %v5250 = vpack.c.b16 %v5236, %v5235
    %v5251 = vpack.c.b16 %v5238, %v5237
    %v5252 = vpack.c.b16 %v5240, %v5239
    %v5253 = vpack.c.b16 %v5242, %v5241
    %v5254 = vpack.c.b16 %v5244, %v5243
    %v5255 = vpack.c.b16 %v5246, %v5245
    %v5256 = vpack.c.b16 %v5248, %v5247
    %5265 = vmatpush.bf16.msra.mxu0 %v5256
    %5266 = vmatpush.bf16.msra.mxu0 %v5255
    %5267 = vmatpush.bf16.msra.mxu0 %v5254
    %5268 = vmatpush.bf16.msra.mxu0 %v5253
    %5269 = vmatpush.bf16.msra.mxu0 %v5252
    %5270 = vmatpush.bf16.msra.mxu0 %v5251
    %5271 = vmatpush.bf16.msra.mxu0 %v5250
    %5272 = vmatpush.bf16.msra.mxu0 %v5249
    %5273 = vmatmul.bf16.gmra.mxu0 %v5199
    %v5274 = vpop.f32.mrf.mxu0
    %v5275 = vadd.f32 0.0, %v5274
    %v5276 = vpop.f32.mrf.mxu0
    %v5277 = vadd.f32 0.0, %v5276
    %5278 = vdwg.mxu0
    %v5279 = vadd.f32 %v3712, %v5275
    %v5280 = vadd.f32 %v3713, %v5277
    %s5281 = scalar_lea.vmem %s13, 2
    %v5282 = vld [vmem:[%s5281] sm:$0x1]
    %v5284 = vperm.slane %v5282, 0
    %v5286 = vadd.f32 %v5279, %v5284
    %v5287 = vadd.f32 %v5280, %v5284
    %v5288 = vpack.c.bf16 %v5287, %v5286
    %v5289 = vld [vmem:[%s14] sm:$0xf]
    %v5290 = vld [vmem:[%s14 + $0x4] sm:$0xf]
    %v5291 = vld [vmem:[%s14 + $0x8] sm:$0xf]
    %v5292 = vld [vmem:[%s14 + $0xc] sm:$0xf]
    %v5293 = vld [vmem:[%s14 + $0x10] sm:$0xf]
    %v5294 = vld [vmem:[%s14 + $0x14] sm:$0xf]
    %v5295 = vld [vmem:[%s14 + $0x18] sm:$0xf]
    %v5296 = vld [vmem:[%s14 + $0x1c] sm:$0xf]
    %v5297 = vld [vmem:[%s14 + $0x20] sm:$0xf]
    %v5298 = vld [vmem:[%s14 + $0x24] sm:$0xf]
    %v5299 = vld [vmem:[%s14 + $0x28] sm:$0xf]
    %v5300 = vld [vmem:[%s14 + $0x2c] sm:$0xf]
    %v5301 = vld [vmem:[%s14 + $0x30] sm:$0xf]
    %v5302 = vld [vmem:[%s14 + $0x34] sm:$0xf]
    %v5303 = vld [vmem:[%s14 + $0x38] sm:$0xf]
    %v5304 = vld [vmem:[%s14 + $0x3c] sm:$0xf]
    %v5305 = vld [vmem:[%s15] sm:$0x1]
    %v5307 = vperm.slane %v5305, 0
    %v5325 = vunpack.c.l.b16 %v5289
    %v5326 = vunpack.c.l.b16 %v5290
    %v5327 = vunpack.c.l.b16 %v5291
    %v5328 = vunpack.c.l.b16 %v5292
    %v5329 = vunpack.c.l.b16 %v5293
    %v5330 = vunpack.c.l.b16 %v5294
    %v5331 = vunpack.c.l.b16 %v5295
    %v5332 = vunpack.c.l.b16 %v5296
    %v5333 = vunpack.c.l.b16 %v5297
    %v5334 = vunpack.c.l.b16 %v5298
    %v5335 = vunpack.c.l.b16 %v5299
    %v5336 = vunpack.c.l.b16 %v5300
    %v5337 = vunpack.c.l.b16 %v5301
    %v5338 = vunpack.c.l.b16 %v5302
    %v5339 = vunpack.c.l.b16 %v5303
    %v5340 = vunpack.c.l.b16 %v5304
    %v5341 = vpack.c.b16 %v5326, %v5325
    %v5342 = vpack.c.b16 %v5328, %v5327
    %v5343 = vpack.c.b16 %v5330, %v5329
    %v5344 = vpack.c.b16 %v5332, %v5331
    %v5345 = vpack.c.b16 %v5334, %v5333
    %v5346 = vpack.c.b16 %v5336, %v5335
    %v5347 = vpack.c.b16 %v5338, %v5337
    %v5348 = vpack.c.b16 %v5340, %v5339
    %5357 = vmatpush.bf16.msra.mxu0 %v5348
    %5358 = vmatpush.bf16.msra.mxu0 %v5347
    %5359 = vmatpush.bf16.msra.mxu0 %v5346
    %5360 = vmatpush.bf16.msra.mxu0 %v5345
    %5361 = vmatpush.bf16.msra.mxu0 %v5344
    %5362 = vmatpush.bf16.msra.mxu0 %v5343
    %5363 = vmatpush.bf16.msra.mxu0 %v5342
    %5364 = vmatpush.bf16.msra.mxu0 %v5341
    %5365 = vmatmul.bf16.gmra.mxu0 %v5288
    %v5366 = vpop.f32.mrf.mxu0
    %v5367 = vadd.f32 %v5307, %v5366
    %v5368 = vpop.f32.mrf.mxu0
    %v5369 = vadd.f32 %v5307, %v5368
    %5370 = vdwg.mxu0
    %v5371 = vmax.f32 %v5367, 0.0
    %v5372 = vmax.f32 %v5369, 0.0
    %v5373 = vand.u32 2147483647, %v5367
    %v5374 = vand.u32 2147483647, %v5369
    %v5375 = vsub.f32 0.0, %v5373
    %v5376 = vsub.f32 0.0, %v5374
    %v5377 = vmul.f32 %v5375, 1.442695
    %v5378 = vpow.pop %v5377
    %v5379 = vmul.f32 %v5376, 1.442695
    %v5380 = vpow.pop %v5379
    %v5381 = vadd.f32 %v5378, 1.0
    %v5382 = vlog2.pop %v5381
    %v5383 = vmul.f32 %v5382, 0.6931472
    %v5384 = vmul.f32 -0.5, %v5378
    %v5385 = vadd.f32 %v5384, 1.0
    %v5386 = vmul.f32 %v5385, %v5378
    %v5387 = vand.u32 2147483647, %v5378
    %vm5388 = vcmp.lt.f32.partialorder %v5387, 0.0004427343
    %v5389 = vsel %vm5388, %v5386, %v5383
    %v5390 = vadd.f32 %v5380, 1.0
    %v5391 = vlog2.pop %v5390
    %v5392 = vmul.f32 %v5391, 0.6931472
    %v5393 = vmul.f32 -0.5, %v5380
    %v5394 = vadd.f32 %v5393, 1.0
    %v5395 = vmul.f32 %v5394, %v5380
    %v5396 = vand.u32 2147483647, %v5380
    %vm5397 = vcmp.lt.f32.partialorder %v5396, 0.0004427343
    %v5398 = vsel %vm5397, %v5395, %v5392
    %v5399 = vadd.f32 %v5371, %v5389
    %v5400 = vadd.f32 %v5372, %v5398
    %v5401 = vpack.c.bf16 %v5400, %v5399
    %v5402 = vld [vmem:[%s16] sm:$0xf]
    %v5403 = vld [vmem:[%s16 + $0x4] sm:$0xf]
    %v5404 = vld [vmem:[%s16 + $0x8] sm:$0xf]
    %v5405 = vld [vmem:[%s16 + $0xc] sm:$0xf]
    %v5406 = vld [vmem:[%s16 + $0x10] sm:$0xf]
    %v5407 = vld [vmem:[%s16 + $0x14] sm:$0xf]
    %v5408 = vld [vmem:[%s16 + $0x18] sm:$0xf]
    %v5409 = vld [vmem:[%s16 + $0x1c] sm:$0xf]
    %v5410 = vld [vmem:[%s16 + $0x20] sm:$0xf]
    %v5411 = vld [vmem:[%s16 + $0x24] sm:$0xf]
    %v5412 = vld [vmem:[%s16 + $0x28] sm:$0xf]
    %v5413 = vld [vmem:[%s16 + $0x2c] sm:$0xf]
    %v5414 = vld [vmem:[%s16 + $0x30] sm:$0xf]
    %v5415 = vld [vmem:[%s16 + $0x34] sm:$0xf]
    %v5416 = vld [vmem:[%s16 + $0x38] sm:$0xf]
    %v5417 = vld [vmem:[%s16 + $0x3c] sm:$0xf]
    %v5418 = vld [vmem:[%s17] sm:$0x1]
    %v5420 = vperm.slane %v5418, 0
    %v5438 = vunpack.c.l.b16 %v5402
    %v5439 = vunpack.c.l.b16 %v5403
    %v5440 = vunpack.c.l.b16 %v5404
    %v5441 = vunpack.c.l.b16 %v5405
    %v5442 = vunpack.c.l.b16 %v5406
    %v5443 = vunpack.c.l.b16 %v5407
    %v5444 = vunpack.c.l.b16 %v5408
    %v5445 = vunpack.c.l.b16 %v5409
    %v5446 = vunpack.c.l.b16 %v5410
    %v5447 = vunpack.c.l.b16 %v5411
    %v5448 = vunpack.c.l.b16 %v5412
    %v5449 = vunpack.c.l.b16 %v5413
    %v5450 = vunpack.c.l.b16 %v5414
    %v5451 = vunpack.c.l.b16 %v5415
    %v5452 = vunpack.c.l.b16 %v5416
    %v5453 = vunpack.c.l.b16 %v5417
    %v5454 = vpack.c.b16 %v5439, %v5438
    %v5455 = vpack.c.b16 %v5441, %v5440
    %v5456 = vpack.c.b16 %v5443, %v5442
    %v5457 = vpack.c.b16 %v5445, %v5444
    %v5458 = vpack.c.b16 %v5447, %v5446
    %v5459 = vpack.c.b16 %v5449, %v5448
    %v5460 = vpack.c.b16 %v5451, %v5450
    %v5461 = vpack.c.b16 %v5453, %v5452
    %5470 = vmatpush.bf16.msra.mxu0 %v5461
    %5471 = vmatpush.bf16.msra.mxu0 %v5460
    %5472 = vmatpush.bf16.msra.mxu0 %v5459
    %5473 = vmatpush.bf16.msra.mxu0 %v5458
    %5474 = vmatpush.bf16.msra.mxu0 %v5457
    %5475 = vmatpush.bf16.msra.mxu0 %v5456
    %5476 = vmatpush.bf16.msra.mxu0 %v5455
    %5477 = vmatpush.bf16.msra.mxu0 %v5454
    %5478 = vmatmul.bf16.gmra.mxu0 %v5401
    %v5479 = vpop.f32.mrf.mxu0
    %v5480 = vadd.f32 %v5420, %v5479
    %v5481 = vpop.f32.mrf.mxu0
    %v5482 = vadd.f32 %v5420, %v5481
    %5483 = vdwg.mxu0
    %v5484 = vld [vmem:[#allocation5] sm:$0xf]
    %v5485 = vpack.c.bf16 %v5482, %v5480
    %vm5486 = vcmask 130048
    %v5488 = vsel %vm5486, %v5484, 0
    %5490 = vmatpush.bf16.msra.mxu0 0
    %5491 = vmatpush.bf16.msra.mxu0 0
    %5492 = vmatpush.bf16.msra.mxu0 0
    %5493 = vmatpush.bf16.msra.mxu0 0
    %5494 = vmatpush.bf16.msra.mxu0 0
    %5495 = vmatpush.bf16.msra.mxu0 0
    %5496 = vmatpush.bf16.msra.mxu0 0
    %5497 = vmatpush.bf16.msra.mxu0 %v5485
    %5498 = vmatmul.bf16.gmra.mxu0 %v5488
    %v5499 = vpop.f32.mrf.mxu0
    %v5500 = vadd.f32 0.0, %v5499
    %v5501 = vpop.f32.mrf.mxu0
    %5502 = vdwg.mxu0
    %5503 = vst [vmem:[#allocation16] sm:$0xff] %v5500
    // Predicated region
    $region98: #{tpu_custom_call.1} parent=1 // pred_check
      _
    $region99: #{tpu_custom_call.1} parent=1 // pred_check_branch
      %5505 = sbr.rel (0) target = $region101
    $region100: #{tpu_custom_call.1} parent=1 // pred_region
      %5507 = vsyncadd [#allocation7], 0
      %s5509 = sshll.u32 [#allocation16], 4
      %s5510 = int_to_ptr.vmem [resolvable:$true] %s5509
      %s5511 = sshll.u32 %s18, 4
      %s5512 = int_to_ptr.hbm [resolvable:$true] %s5511
      %5514 = dma.vmem_to_hbm [thread:$0]  %s5510, 128, %s5512, [#allocation7]
    $region101: #{tpu_custom_call.1} parent=1 // pred_fallthru
      _
    // Predicated region
    $region102: #{tpu_custom_call.1} parent=1 // pred_check
      _
    $region103: #{tpu_custom_call.1} parent=1 // pred_check_branch
      %5516 = sbr.rel (0) target = $region105
    $region104: #{tpu_custom_call.1} parent=1 // pred_region
      %5518 = dma.done [#allocation7], 128
    $region105: #{tpu_custom_call.1} parent=1 // pred_fallthru
      _
    %5519 = vsyncpa [#allocation6], 1
    %5520 = vsyncpa [#allocation9], 1
    %5521 = vsyncpa [#allocation12], 1
    %5522 = vsyncpa [#allocation15], 1
    %5523 = vsyncpa [#allocation7], 1

</llo_original>
